<compile_context>
chip_gen: v7x
topology: tpu7x:2x2x1
jax: 0.10.0
libtpu: 0.0.40
codegen_flags: <defaults>
</compile_context>

<pallas_src>
import functools

import jax
import jax.numpy as jnp
from jax.experimental import pallas as pl
from jax.experimental.pallas import tpu as pltpu


def _round_up(x, m):
    return (x + m - 1) // m * m


def _dense_edge_conv_kernel(n, K, C, G, compute_dtype, x_ref, nb_ref, w_ref, out_ref):
    x = x_ref[0]                                    # (C, tn) f32, points on lanes
    xc = x.astype(compute_dtype)

    # ---- unpack the single packed weight array: 3 blocks of G rows per layer ----
    w_center, w_extra, bias = [], [], []
    for i in range(n):
        r = 3 * i * G
        ew = C if i == 0 else i * G                 # layer0 extra = diff block, else h-stack block
        w_center.append(w_ref[r:r + G, 0:C].astype(compute_dtype))
        w_extra.append(w_ref[r + G:r + 2 * G, 0:ew].astype(compute_dtype))
        bias.append(w_ref[r + 2 * G:r + 3 * G, 0:1])            # (G, 1) f32

    # ---- hoist the per-point (center) contribution of every layer out of the K loop ----
    base = [jnp.dot(w_center[i], xc, preferred_element_type=jnp.float32) + bias[i]
            for i in range(n)]                      # each (G, tn) f32

    # ---- running max over the K neighbors (never materialize (K*N, C_out)) ----
    max_h = [None] * n
    for k in range(K):
        d = nb_ref[0, k].astype(compute_dtype) - xc            # (C, tn) edge feature (nn - x)
        hs = []
        for i in range(n):
            if i == 0:
                rhs = d
            elif i == 1:
                rhs = hs[0].astype(compute_dtype)
            else:
                # [h_{i-1}, ..., h_0] stacked on the sublane axis; G is 8-aligned => vreg placement
                rhs = jnp.concatenate([hs[j] for j in range(i - 1, -1, -1)],
                                      axis=0).astype(compute_dtype)
            # single dot per layer per neighbor; keep acc = base + dot pattern (MRB-friendly on v7x)
            acc = base[i] + jnp.dot(w_extra[i], rhs, preferred_element_type=jnp.float32)
            if i == 0 or i < n - 1:                 # relu on all layers except the last
                acc = jnp.maximum(acc, 0.0)
            hs.append(acc)
        for i in range(n):
            max_h[i] = hs[i] if k == 0 else jnp.maximum(max_h[i], hs[i])

    # ---- write output slab [h_{n-1}, ..., h_0, x] along the channel (sublane) axis ----
    for i in range(n):
        out_ref[0, (n - 1 - i) * G:(n - i) * G, :] = max_h[i].astype(out_ref.dtype)
    out_ref[0, n * G:, :] = x.astype(out_ref.dtype)             # center is constant over K


def knn_graph(x, k):
    """x: (B, C, N) -> idx (B, N, k) of k nearest neighbors (self excluded)."""
    # TODO(synk): group_knn's `unique=True` de-duplication is approximated by plain top-k over
    # squared distances with the self index dropped; exact-duplicate points are not deduped.
    pts = jnp.transpose(x, (0, 2, 1))                                   # (B, N, C)
    sq = jnp.sum(pts * pts, axis=-1)                                    # (B, N)
    d2 = sq[:, :, None] + sq[:, None, :] - 2.0 * jnp.einsum("bnc,bmc->bnm", pts, pts)
    _, idx = jax.lax.top_k(-d2, k + 1)                                  # (B, N, k+1)
    return idx[:, :, 1:]                                                # drop self


def _pack_weights(weights, biases, C, G, n):
    """Pack every layer's transposed conv blocks + bias into one (3*n*G, Cmax) array.

    Per layer i (G rows each, top to bottom): center block (G, C); extra block
    (layer 0: diff (G, C), layer i>=1: pre-concatenated h-stack (G, i*G)); bias (G, 1).
    """
    cmax = max(C, (n - 1) * G, 1)
    blocks = []
    for i, (w, bb) in enumerate(zip(weights, biases)):
        wt = jnp.transpose(w).astype(jnp.float32)                       # (G, C_in_i)
        if i == 0:
            center, extra = wt[:, 0:C], wt[:, C:2 * C]
        else:
            extra, center = wt[:, 0:i * G], wt[:, i * G:i * G + C]
        b = jnp.reshape(bb, (G, 1)).astype(jnp.float32)
        for blk in (center, extra, b):
            blocks.append(jnp.pad(blk, ((0, 0), (0, cmax - blk.shape[1]))))
    return jnp.concatenate(blocks, axis=0)                              # (3*n*G, cmax)


def dense_edge_conv(x, weights, biases, k, tile_n=None,
                    compute_dtype=jnp.bfloat16, neighbor_dtype=jnp.bfloat16):
    """Pallas-backed forward.  x: (B, C, N) -> (y (B, C+n*G, N) f32, idx (B, N, k)).

    compute_dtype: dtype of the MXU operands (f32 accumulation is always kept via
    preferred_element_type).  neighbor_dtype: HBM storage dtype of the gathered neighbors
    (the dominant DMA).  Use jnp.float32 for both to get an exact (2e-4) match to the ref.
    """
    B, C, N = x.shape
    n = len(weights)
    G = weights[0].shape[1]
    C_out = C + n * G

    idx = knn_graph(x, k)

    # Gather straight into (B, K, C, N) — no post-gather transpose of the K-expanded tensor.
    idx_t = jnp.transpose(idx, (0, 2, 1))                               # (B, k, N)
    x_store = x.astype(neighbor_dtype)
    neigh = jax.vmap(lambda xb, ib: jax.vmap(lambda row: xb[:, row])(ib))(x_store, idx_t)

    # Lane-dense point tiling: pad N to a multiple of 128; default tile 256 (bigger amortizes the
    # ~0.35us/step overhead without spilling the 64-vreg file given base/max_h live across K),
    # dropping to 128 when needed so the "parallel" grid keeps >=2 steps for v7x's two TCs.
    if tile_n is None:
        n128 = _round_up(N, 128)
        tile_n = 256 if (n128 % 256 == 0 and B * (n128 // 256) >= 2) else 128
    assert tile_n % 128 == 0, "point tile must be lane-dense (multiple of 128)"
    N_pad = _round_up(N, tile_n)
    if N_pad != N:
        x_in = jnp.pad(x, ((0, 0), (0, 0), (0, N_pad - N)))
        neigh = jnp.pad(neigh, ((0, 0), (0, 0), (0, 0), (0, N_pad - N)))
    else:
        x_in = x

    w_packed = _pack_weights(weights, biases, C, G, n)

    kernel = functools.partial(_dense_edge_conv_kernel, n, k, C, G, compute_dtype)
    out = pl.pallas_call(
        kernel,
        out_shape=jax.ShapeDtypeStruct((B, C_out, N_pad), jnp.float32),
        grid_spec=pltpu.PrefetchScalarGridSpec(
            num_scalar_prefetch=0,
            grid=(B, N_pad // tile_n),
            in_specs=[
                pl.BlockSpec((1, C, tile_n), lambda b, t: (b, 0, t)),
                pl.BlockSpec((1, k, C, tile_n), lambda b, t: (b, 0, 0, t)),
                pl.BlockSpec(w_packed.shape, lambda b, t: (0, 0)),      # constant block => DMA reused
            ],
            out_specs=pl.BlockSpec((1, C_out, tile_n), lambda b, t: (b, 0, t)),
        ),
        compiler_params=pltpu.CompilerParams(
            dimension_semantics=("parallel", "parallel"),
            vmem_limit_bytes=32 * 1024 * 1024,
        ),
    )(x_in, neigh, w_packed)

    if N_pad != N:
        out = out[:, :, :N]
    return out, idx


def dense_edge_conv_ref(x, weights, biases, k):
    """Pure-JAX reference with identical semantics (for verification)."""
    idx = knn_graph(x, k)
    pts = jnp.transpose(x, (0, 2, 1))                                   # (B, N, C)
    neigh = jax.vmap(lambda p, i: p[i])(pts, idx)                       # (B, N, k, C)
    center = jnp.broadcast_to(pts[:, :, None, :], neigh.shape)
    y = jnp.concatenate([center, neigh - center], axis=-1)              # (B, N, k, 2C)
    n = len(weights)
    for i, (w, bb) in enumerate(zip(weights, biases)):
        h = jnp.einsum("bnkc,cg->bnkg", y, w,
                       precision=jax.lax.Precision.HIGHEST) + bb[0]
        if i == 0:
            h = jnp.maximum(h, 0.0)
            y = jnp.concatenate([h, center], axis=-1)
        elif i == n - 1:
            y = jnp.concatenate([h, y], axis=-1)
        else:
            h = jnp.maximum(h, 0.0)
            y = jnp.concatenate([h, y], axis=-1)
    out = jnp.max(y, axis=2)                                            # (B, N, C_out)
    return jnp.transpose(out, (0, 2, 1)), idx


def init_params(key, in_channels, growth_rate, n):
    """Deterministic weights matching Conv2d(2C,G,1), Conv2d(C+iG,G,1) shapes."""
    weights, biases = [], []
    c_in = 2 * in_channels
    cur = in_channels
    for i in range(n):
        if i > 0:
            cur += growth_rate
            c_in = cur
        key, kw, kb = jax.random.split(key, 3)
        # stored as (C_in, G) == transposed Conv2d weight (G, C_in, 1, 1)
        weights.append(0.1 * jax.random.normal(kw, (c_in, growth_rate), jnp.float32))
        biases.append(0.1 * jax.random.normal(kb, (1, growth_rate), jnp.float32))
    return weights, biases


if __name__ == "__main__":
    B, C, N = 2, 8, 256          # x: (B, C, N) point features
    G, n_layers, k = 16, 3, 8    # growth_rate, n dense layers, k neighbors

    key = jax.random.PRNGKey(0)
    kx, kx2, kp = jax.random.split(key, 3)
    x = jax.random.normal(kx, (B, C, N), jnp.float32)
    weights, biases = init_params(kp, C, G, n_layers)

    y_ref, idx_ref = dense_edge_conv_ref(x, weights, biases, k)

    # exact path: f32 storage + f32 matmul operands
    y32, idx32 = dense_edge_conv(x, weights, biases, k,
                                 compute_dtype=jnp.float32, neighbor_dtype=jnp.float32)
    y32 = jax.block_until_ready(y32)
    assert y32.shape == (B, C + n_layers * G, N), y32.shape
    assert idx32.shape == (B, N, k), idx32.shape
    assert jnp.array_equal(idx32, idx_ref)
    assert jnp.allclose(y32, y_ref, atol=2e-4, rtol=2e-4), float(jnp.max(jnp.abs(y32 - y_ref)))

    # default fast path: bf16 neighbor storage + bf16 matmul operands (f32 accumulation)
    y16, idx16 = dense_edge_conv(x, weights, biases, k)
    y16 = jax.block_until_ready(y16)
    assert jnp.array_equal(idx16, idx_ref)
    assert jnp.allclose(y16, y_ref, atol=6e-2, rtol=6e-2), float(jnp.max(jnp.abs(y16 - y_ref)))

    # ragged N exercises the host-side lane padding + the 128-tile fallback (B=1)
    x2 = jax.random.normal(kx2, (1, C, 200), jnp.float32)
    y2, _ = dense_edge_conv(x2, weights, biases, k,
                            compute_dtype=jnp.float32, neighbor_dtype=jnp.float32)
    y2 = jax.block_until_ready(y2)
    y2_ref, _ = dense_edge_conv_ref(x2, weights, biases, k)
    assert y2.shape == (1, C + n_layers * G, 200), y2.shape
    assert jnp.allclose(y2, y2_ref, atol=2e-4, rtol=2e-4), float(jnp.max(jnp.abs(y2 - y2_ref)))

    print("KERNEL_OK")
</pallas_src>

<mosaic_0001>
module attributes {stable_mosaic.version = 11 : i64} {
  func.func @_dense_edge_conv_kernel(%arg0: i32, %arg1: i32, %arg2: memref<1x8x256xf32, #tpu.memory_space<vmem>>, %arg3: memref<1x8x8x256xf32, #tpu.memory_space<vmem>>, %arg4: memref<144x32xf32, #tpu.memory_space<vmem>>, %arg5: memref<1x56x256xf32, #tpu.memory_space<vmem>>) attributes {dimension_semantics = [#tpu.dimension_semantics<parallel>, #tpu.dimension_semantics<parallel>], iteration_bounds = array<i64: 2, 1>, scalar_prefetch = 0 : i64, scratch_operands = 0 : i64, tpu.core_type = #tpu.core_type<tc>, window_params = [{transform_indices = @transform_0, window_bounds = array<i64: 1, 8, 256>}, {transform_indices = @transform_1, window_bounds = array<i64: 1, 8, 8, 256>}, {pipeline_mode = #tpu.pipeline_mode<synchronous>, transform_indices = @transform_2, window_bounds = array<i64: 144, 32>}, {transform_indices = @transform_3, window_bounds = array<i64: 1, 56, 256>}]} {
    %c0 = arith.constant 0 : index
    %c0_0 = arith.constant 0 : index
    %c0_1 = arith.constant 0 : index
    %0 = vector.load %arg2[%c0, %c0_0, %c0_1] : memref<1x8x256xf32, #tpu.memory_space<vmem>>, vector<1x8x256xf32>
    %1 = vector.shape_cast %0 : vector<1x8x256xf32> to vector<8x256xf32>
    %c0_2 = arith.constant 0 : index
    %c0_3 = arith.constant 0 : index
    %2 = vector.load %arg4[%c0_2, %c0_3] : memref<144x32xf32, #tpu.memory_space<vmem>>, vector<16x8xf32>
    %c16 = arith.constant 16 : index
    %c0_4 = arith.constant 0 : index
    %3 = vector.load %arg4[%c16, %c0_4] : memref<144x32xf32, #tpu.memory_space<vmem>>, vector<16x8xf32>
    %c32 = arith.constant 32 : index
    %c0_5 = arith.constant 0 : index
    %4 = vector.load %arg4[%c32, %c0_5] : memref<144x32xf32, #tpu.memory_space<vmem>>, vector<16x1xf32>
    %c48 = arith.constant 48 : index
    %c0_6 = arith.constant 0 : index
    %5 = vector.load %arg4[%c48, %c0_6] : memref<144x32xf32, #tpu.memory_space<vmem>>, vector<16x8xf32>
    %c64 = arith.constant 64 : index
    %c0_7 = arith.constant 0 : index
    %6 = vector.load %arg4[%c64, %c0_7] : memref<144x32xf32, #tpu.memory_space<vmem>>, vector<16x16xf32>
    %c80 = arith.constant 80 : index
    %c0_8 = arith.constant 0 : index
    %7 = vector.load %arg4[%c80, %c0_8] : memref<144x32xf32, #tpu.memory_space<vmem>>, vector<16x1xf32>
    %c96 = arith.constant 96 : index
    %c0_9 = arith.constant 0 : index
    %8 = vector.load %arg4[%c96, %c0_9] : memref<144x32xf32, #tpu.memory_space<vmem>>, vector<16x8xf32>
    %c112 = arith.constant 112 : index
    %c0_10 = arith.constant 0 : index
    %9 = vector.load %arg4[%c112, %c0_10] : memref<144x32xf32, #tpu.memory_space<vmem>>, vector<16x32xf32>
    %c128 = arith.constant 128 : index
    %c0_11 = arith.constant 0 : index
    %10 = vector.load %arg4[%c128, %c0_11] : memref<144x32xf32, #tpu.memory_space<vmem>>, vector<16x1xf32>
    %cst = arith.constant dense<0.000000e+00> : vector<16x256xf32>
    %11 = tpu.matmul %2, %1, %cst {dimension_numbers = #tpu.dot_dimension_numbers<[1], [0], [0], [1], [0, 0, 1, 1], [], []>} : vector<16x8xf32>, vector<8x256xf32>, vector<16x256xf32> -> vector<16x256xf32>
    %12 = vector.broadcast %4 : vector<16x1xf32> to vector<16x256xf32>
    %13 = arith.addf %11, %12 : vector<16x256xf32>
    %cst_12 = arith.constant dense<0.000000e+00> : vector<16x256xf32>
    %14 = tpu.matmul %5, %1, %cst_12 {dimension_numbers = #tpu.dot_dimension_numbers<[1], [0], [0], [1], [0, 0, 1, 1], [], []>} : vector<16x8xf32>, vector<8x256xf32>, vector<16x256xf32> -> vector<16x256xf32>
    %15 = vector.broadcast %7 : vector<16x1xf32> to vector<16x256xf32>
    %16 = arith.addf %14, %15 : vector<16x256xf32>
    %cst_13 = arith.constant dense<0.000000e+00> : vector<16x256xf32>
    %17 = tpu.matmul %8, %1, %cst_13 {dimension_numbers = #tpu.dot_dimension_numbers<[1], [0], [0], [1], [0, 0, 1, 1], [], []>} : vector<16x8xf32>, vector<8x256xf32>, vector<16x256xf32> -> vector<16x256xf32>
    %18 = vector.broadcast %10 : vector<16x1xf32> to vector<16x256xf32>
    %19 = arith.addf %17, %18 : vector<16x256xf32>
    %c0_14 = arith.constant 0 : index
    %c0_15 = arith.constant 0 : index
    %c0_16 = arith.constant 0 : index
    %c0_17 = arith.constant 0 : index
    %20 = vector.load %arg3[%c0_14, %c0_15, %c0_16, %c0_17] : memref<1x8x8x256xf32, #tpu.memory_space<vmem>>, vector<1x1x8x256xf32>
    %21 = vector.shape_cast %20 : vector<1x1x8x256xf32> to vector<8x256xf32>
    %22 = arith.subf %21, %1 : vector<8x256xf32>
    %cst_18 = arith.constant dense<0.000000e+00> : vector<16x256xf32>
    %23 = tpu.matmul %3, %22, %cst_18 {dimension_numbers = #tpu.dot_dimension_numbers<[1], [0], [0], [1], [0, 0, 1, 1], [], []>} : vector<16x8xf32>, vector<8x256xf32>, vector<16x256xf32> -> vector<16x256xf32>
    %24 = arith.addf %13, %23 : vector<16x256xf32>
    %cst_19 = arith.constant 0.000000e+00 : f32
    %25 = vector.broadcast %cst_19 : f32 to vector<16x256xf32>
    %26 = arith.maximumf %24, %25 : vector<16x256xf32>
    %cst_20 = arith.constant dense<0.000000e+00> : vector<16x256xf32>
    %27 = tpu.matmul %6, %26, %cst_20 {dimension_numbers = #tpu.dot_dimension_numbers<[1], [0], [0], [1], [0, 0, 1, 1], [], []>} : vector<16x16xf32>, vector<16x256xf32>, vector<16x256xf32> -> vector<16x256xf32>
    %28 = arith.addf %16, %27 : vector<16x256xf32>
    %cst_21 = arith.constant 0.000000e+00 : f32
    %29 = vector.broadcast %cst_21 : f32 to vector<16x256xf32>
    %30 = arith.maximumf %28, %29 : vector<16x256xf32>
    %31 = tpu.concatenate %30, %26 in 0 : vector<16x256xf32>, vector<16x256xf32> -> vector<32x256xf32>
    %cst_22 = arith.constant dense<0.000000e+00> : vector<16x256xf32>
    %32 = tpu.matmul %9, %31, %cst_22 {dimension_numbers = #tpu.dot_dimension_numbers<[1], [0], [0], [1], [0, 0, 1, 1], [], []>} : vector<16x32xf32>, vector<32x256xf32>, vector<16x256xf32> -> vector<16x256xf32>
    %33 = arith.addf %19, %32 : vector<16x256xf32>
    %c0_23 = arith.constant 0 : index
    %c1 = arith.constant 1 : index
    %c0_24 = arith.constant 0 : index
    %c0_25 = arith.constant 0 : index
    %34 = vector.load %arg3[%c0_23, %c1, %c0_24, %c0_25] : memref<1x8x8x256xf32, #tpu.memory_space<vmem>>, vector<1x1x8x256xf32>
    %35 = vector.shape_cast %34 : vector<1x1x8x256xf32> to vector<8x256xf32>
    %36 = arith.subf %35, %1 : vector<8x256xf32>
    %cst_26 = arith.constant dense<0.000000e+00> : vector<16x256xf32>
    %37 = tpu.matmul %3, %36, %cst_26 {dimension_numbers = #tpu.dot_dimension_numbers<[1], [0], [0], [1], [0, 0, 1, 1], [], []>} : vector<16x8xf32>, vector<8x256xf32>, vector<16x256xf32> -> vector<16x256xf32>
    %38 = arith.addf %13, %37 : vector<16x256xf32>
    %cst_27 = arith.constant 0.000000e+00 : f32
    %39 = vector.broadcast %cst_27 : f32 to vector<16x256xf32>
    %40 = arith.maximumf %38, %39 : vector<16x256xf32>
    %cst_28 = arith.constant dense<0.000000e+00> : vector<16x256xf32>
    %41 = tpu.matmul %6, %40, %cst_28 {dimension_numbers = #tpu.dot_dimension_numbers<[1], [0], [0], [1], [0, 0, 1, 1], [], []>} : vector<16x16xf32>, vector<16x256xf32>, vector<16x256xf32> -> vector<16x256xf32>
    %42 = arith.addf %16, %41 : vector<16x256xf32>
    %cst_29 = arith.constant 0.000000e+00 : f32
    %43 = vector.broadcast %cst_29 : f32 to vector<16x256xf32>
    %44 = arith.maximumf %42, %43 : vector<16x256xf32>
    %45 = tpu.concatenate %44, %40 in 0 : vector<16x256xf32>, vector<16x256xf32> -> vector<32x256xf32>
    %cst_30 = arith.constant dense<0.000000e+00> : vector<16x256xf32>
    %46 = tpu.matmul %9, %45, %cst_30 {dimension_numbers = #tpu.dot_dimension_numbers<[1], [0], [0], [1], [0, 0, 1, 1], [], []>} : vector<16x32xf32>, vector<32x256xf32>, vector<16x256xf32> -> vector<16x256xf32>
    %47 = arith.addf %19, %46 : vector<16x256xf32>
    %48 = arith.maximumf %26, %40 : vector<16x256xf32>
    %49 = arith.maximumf %30, %44 : vector<16x256xf32>
    %50 = arith.maximumf %33, %47 : vector<16x256xf32>
    %c0_31 = arith.constant 0 : index
    %c2 = arith.constant 2 : index
    %c0_32 = arith.constant 0 : index
    %c0_33 = arith.constant 0 : index
    %51 = vector.load %arg3[%c0_31, %c2, %c0_32, %c0_33] : memref<1x8x8x256xf32, #tpu.memory_space<vmem>>, vector<1x1x8x256xf32>
    %52 = vector.shape_cast %51 : vector<1x1x8x256xf32> to vector<8x256xf32>
    %53 = arith.subf %52, %1 : vector<8x256xf32>
    %cst_34 = arith.constant dense<0.000000e+00> : vector<16x256xf32>
    %54 = tpu.matmul %3, %53, %cst_34 {dimension_numbers = #tpu.dot_dimension_numbers<[1], [0], [0], [1], [0, 0, 1, 1], [], []>} : vector<16x8xf32>, vector<8x256xf32>, vector<16x256xf32> -> vector<16x256xf32>
    %55 = arith.addf %13, %54 : vector<16x256xf32>
    %cst_35 = arith.constant 0.000000e+00 : f32
    %56 = vector.broadcast %cst_35 : f32 to vector<16x256xf32>
    %57 = arith.maximumf %55, %56 : vector<16x256xf32>
    %cst_36 = arith.constant dense<0.000000e+00> : vector<16x256xf32>
    %58 = tpu.matmul %6, %57, %cst_36 {dimension_numbers = #tpu.dot_dimension_numbers<[1], [0], [0], [1], [0, 0, 1, 1], [], []>} : vector<16x16xf32>, vector<16x256xf32>, vector<16x256xf32> -> vector<16x256xf32>
    %59 = arith.addf %16, %58 : vector<16x256xf32>
    %cst_37 = arith.constant 0.000000e+00 : f32
    %60 = vector.broadcast %cst_37 : f32 to vector<16x256xf32>
    %61 = arith.maximumf %59, %60 : vector<16x256xf32>
    %62 = tpu.concatenate %61, %57 in 0 : vector<16x256xf32>, vector<16x256xf32> -> vector<32x256xf32>
    %cst_38 = arith.constant dense<0.000000e+00> : vector<16x256xf32>
    %63 = tpu.matmul %9, %62, %cst_38 {dimension_numbers = #tpu.dot_dimension_numbers<[1], [0], [0], [1], [0, 0, 1, 1], [], []>} : vector<16x32xf32>, vector<32x256xf32>, vector<16x256xf32> -> vector<16x256xf32>
    %64 = arith.addf %19, %63 : vector<16x256xf32>
    %65 = arith.maximumf %48, %57 : vector<16x256xf32>
    %66 = arith.maximumf %49, %61 : vector<16x256xf32>
    %67 = arith.maximumf %50, %64 : vector<16x256xf32>
    %c0_39 = arith.constant 0 : index
    %c3 = arith.constant 3 : index
    %c0_40 = arith.constant 0 : index
    %c0_41 = arith.constant 0 : index
    %68 = vector.load %arg3[%c0_39, %c3, %c0_40, %c0_41] : memref<1x8x8x256xf32, #tpu.memory_space<vmem>>, vector<1x1x8x256xf32>
    %69 = vector.shape_cast %68 : vector<1x1x8x256xf32> to vector<8x256xf32>
    %70 = arith.subf %69, %1 : vector<8x256xf32>
    %cst_42 = arith.constant dense<0.000000e+00> : vector<16x256xf32>
    %71 = tpu.matmul %3, %70, %cst_42 {dimension_numbers = #tpu.dot_dimension_numbers<[1], [0], [0], [1], [0, 0, 1, 1], [], []>} : vector<16x8xf32>, vector<8x256xf32>, vector<16x256xf32> -> vector<16x256xf32>
    %72 = arith.addf %13, %71 : vector<16x256xf32>
    %cst_43 = arith.constant 0.000000e+00 : f32
    %73 = vector.broadcast %cst_43 : f32 to vector<16x256xf32>
    %74 = arith.maximumf %72, %73 : vector<16x256xf32>
    %cst_44 = arith.constant dense<0.000000e+00> : vector<16x256xf32>
    %75 = tpu.matmul %6, %74, %cst_44 {dimension_numbers = #tpu.dot_dimension_numbers<[1], [0], [0], [1], [0, 0, 1, 1], [], []>} : vector<16x16xf32>, vector<16x256xf32>, vector<16x256xf32> -> vector<16x256xf32>
    %76 = arith.addf %16, %75 : vector<16x256xf32>
    %cst_45 = arith.constant 0.000000e+00 : f32
    %77 = vector.broadcast %cst_45 : f32 to vector<16x256xf32>
    %78 = arith.maximumf %76, %77 : vector<16x256xf32>
    %79 = tpu.concatenate %78, %74 in 0 : vector<16x256xf32>, vector<16x256xf32> -> vector<32x256xf32>
    %cst_46 = arith.constant dense<0.000000e+00> : vector<16x256xf32>
    %80 = tpu.matmul %9, %79, %cst_46 {dimension_numbers = #tpu.dot_dimension_numbers<[1], [0], [0], [1], [0, 0, 1, 1], [], []>} : vector<16x32xf32>, vector<32x256xf32>, vector<16x256xf32> -> vector<16x256xf32>
    %81 = arith.addf %19, %80 : vector<16x256xf32>
    %82 = arith.maximumf %65, %74 : vector<16x256xf32>
    %83 = arith.maximumf %66, %78 : vector<16x256xf32>
    %84 = arith.maximumf %67, %81 : vector<16x256xf32>
    %c0_47 = arith.constant 0 : index
    %c4 = arith.constant 4 : index
    %c0_48 = arith.constant 0 : index
    %c0_49 = arith.constant 0 : index
    %85 = vector.load %arg3[%c0_47, %c4, %c0_48, %c0_49] : memref<1x8x8x256xf32, #tpu.memory_space<vmem>>, vector<1x1x8x256xf32>
    %86 = vector.shape_cast %85 : vector<1x1x8x256xf32> to vector<8x256xf32>
    %87 = arith.subf %86, %1 : vector<8x256xf32>
    %cst_50 = arith.constant dense<0.000000e+00> : vector<16x256xf32>
    %88 = tpu.matmul %3, %87, %cst_50 {dimension_numbers = #tpu.dot_dimension_numbers<[1], [0], [0], [1], [0, 0, 1, 1], [], []>} : vector<16x8xf32>, vector<8x256xf32>, vector<16x256xf32> -> vector<16x256xf32>
    %89 = arith.addf %13, %88 : vector<16x256xf32>
    %cst_51 = arith.constant 0.000000e+00 : f32
    %90 = vector.broadcast %cst_51 : f32 to vector<16x256xf32>
    %91 = arith.maximumf %89, %90 : vector<16x256xf32>
    %cst_52 = arith.constant dense<0.000000e+00> : vector<16x256xf32>
    %92 = tpu.matmul %6, %91, %cst_52 {dimension_numbers = #tpu.dot_dimension_numbers<[1], [0], [0], [1], [0, 0, 1, 1], [], []>} : vector<16x16xf32>, vector<16x256xf32>, vector<16x256xf32> -> vector<16x256xf32>
    %93 = arith.addf %16, %92 : vector<16x256xf32>
    %cst_53 = arith.constant 0.000000e+00 : f32
    %94 = vector.broadcast %cst_53 : f32 to vector<16x256xf32>
    %95 = arith.maximumf %93, %94 : vector<16x256xf32>
    %96 = tpu.concatenate %95, %91 in 0 : vector<16x256xf32>, vector<16x256xf32> -> vector<32x256xf32>
    %cst_54 = arith.constant dense<0.000000e+00> : vector<16x256xf32>
    %97 = tpu.matmul %9, %96, %cst_54 {dimension_numbers = #tpu.dot_dimension_numbers<[1], [0], [0], [1], [0, 0, 1, 1], [], []>} : vector<16x32xf32>, vector<32x256xf32>, vector<16x256xf32> -> vector<16x256xf32>
    %98 = arith.addf %19, %97 : vector<16x256xf32>
    %99 = arith.maximumf %82, %91 : vector<16x256xf32>
    %100 = arith.maximumf %83, %95 : vector<16x256xf32>
    %101 = arith.maximumf %84, %98 : vector<16x256xf32>
    %c0_55 = arith.constant 0 : index
    %c5 = arith.constant 5 : index
    %c0_56 = arith.constant 0 : index
    %c0_57 = arith.constant 0 : index
    %102 = vector.load %arg3[%c0_55, %c5, %c0_56, %c0_57] : memref<1x8x8x256xf32, #tpu.memory_space<vmem>>, vector<1x1x8x256xf32>
    %103 = vector.shape_cast %102 : vector<1x1x8x256xf32> to vector<8x256xf32>
    %104 = arith.subf %103, %1 : vector<8x256xf32>
    %cst_58 = arith.constant dense<0.000000e+00> : vector<16x256xf32>
    %105 = tpu.matmul %3, %104, %cst_58 {dimension_numbers = #tpu.dot_dimension_numbers<[1], [0], [0], [1], [0, 0, 1, 1], [], []>} : vector<16x8xf32>, vector<8x256xf32>, vector<16x256xf32> -> vector<16x256xf32>
    %106 = arith.addf %13, %105 : vector<16x256xf32>
    %cst_59 = arith.constant 0.000000e+00 : f32
    %107 = vector.broadcast %cst_59 : f32 to vector<16x256xf32>
    %108 = arith.maximumf %106, %107 : vector<16x256xf32>
    %cst_60 = arith.constant dense<0.000000e+00> : vector<16x256xf32>
    %109 = tpu.matmul %6, %108, %cst_60 {dimension_numbers = #tpu.dot_dimension_numbers<[1], [0], [0], [1], [0, 0, 1, 1], [], []>} : vector<16x16xf32>, vector<16x256xf32>, vector<16x256xf32> -> vector<16x256xf32>
    %110 = arith.addf %16, %109 : vector<16x256xf32>
    %cst_61 = arith.constant 0.000000e+00 : f32
    %111 = vector.broadcast %cst_61 : f32 to vector<16x256xf32>
    %112 = arith.maximumf %110, %111 : vector<16x256xf32>
    %113 = tpu.concatenate %112, %108 in 0 : vector<16x256xf32>, vector<16x256xf32> -> vector<32x256xf32>
    %cst_62 = arith.constant dense<0.000000e+00> : vector<16x256xf32>
    %114 = tpu.matmul %9, %113, %cst_62 {dimension_numbers = #tpu.dot_dimension_numbers<[1], [0], [0], [1], [0, 0, 1, 1], [], []>} : vector<16x32xf32>, vector<32x256xf32>, vector<16x256xf32> -> vector<16x256xf32>
    %115 = arith.addf %19, %114 : vector<16x256xf32>
    %116 = arith.maximumf %99, %108 : vector<16x256xf32>
    %117 = arith.maximumf %100, %112 : vector<16x256xf32>
    %118 = arith.maximumf %101, %115 : vector<16x256xf32>
    %c0_63 = arith.constant 0 : index
    %c6 = arith.constant 6 : index
    %c0_64 = arith.constant 0 : index
    %c0_65 = arith.constant 0 : index
    %119 = vector.load %arg3[%c0_63, %c6, %c0_64, %c0_65] : memref<1x8x8x256xf32, #tpu.memory_space<vmem>>, vector<1x1x8x256xf32>
    %120 = vector.shape_cast %119 : vector<1x1x8x256xf32> to vector<8x256xf32>
    %121 = arith.subf %120, %1 : vector<8x256xf32>
    %cst_66 = arith.constant dense<0.000000e+00> : vector<16x256xf32>
    %122 = tpu.matmul %3, %121, %cst_66 {dimension_numbers = #tpu.dot_dimension_numbers<[1], [0], [0], [1], [0, 0, 1, 1], [], []>} : vector<16x8xf32>, vector<8x256xf32>, vector<16x256xf32> -> vector<16x256xf32>
    %123 = arith.addf %13, %122 : vector<16x256xf32>
    %cst_67 = arith.constant 0.000000e+00 : f32
    %124 = vector.broadcast %cst_67 : f32 to vector<16x256xf32>
    %125 = arith.maximumf %123, %124 : vector<16x256xf32>
    %cst_68 = arith.constant dense<0.000000e+00> : vector<16x256xf32>
    %126 = tpu.matmul %6, %125, %cst_68 {dimension_numbers = #tpu.dot_dimension_numbers<[1], [0], [0], [1], [0, 0, 1, 1], [], []>} : vector<16x16xf32>, vector<16x256xf32>, vector<16x256xf32> -> vector<16x256xf32>
    %127 = arith.addf %16, %126 : vector<16x256xf32>
    %cst_69 = arith.constant 0.000000e+00 : f32
    %128 = vector.broadcast %cst_69 : f32 to vector<16x256xf32>
    %129 = arith.maximumf %127, %128 : vector<16x256xf32>
    %130 = tpu.concatenate %129, %125 in 0 : vector<16x256xf32>, vector<16x256xf32> -> vector<32x256xf32>
    %cst_70 = arith.constant dense<0.000000e+00> : vector<16x256xf32>
    %131 = tpu.matmul %9, %130, %cst_70 {dimension_numbers = #tpu.dot_dimension_numbers<[1], [0], [0], [1], [0, 0, 1, 1], [], []>} : vector<16x32xf32>, vector<32x256xf32>, vector<16x256xf32> -> vector<16x256xf32>
    %132 = arith.addf %19, %131 : vector<16x256xf32>
    %133 = arith.maximumf %116, %125 : vector<16x256xf32>
    %134 = arith.maximumf %117, %129 : vector<16x256xf32>
    %135 = arith.maximumf %118, %132 : vector<16x256xf32>
    %c0_71 = arith.constant 0 : index
    %c7 = arith.constant 7 : index
    %c0_72 = arith.constant 0 : index
    %c0_73 = arith.constant 0 : index
    %136 = vector.load %arg3[%c0_71, %c7, %c0_72, %c0_73] : memref<1x8x8x256xf32, #tpu.memory_space<vmem>>, vector<1x1x8x256xf32>
    %137 = vector.shape_cast %136 : vector<1x1x8x256xf32> to vector<8x256xf32>
    %138 = arith.subf %137, %1 : vector<8x256xf32>
    %cst_74 = arith.constant dense<0.000000e+00> : vector<16x256xf32>
    %139 = tpu.matmul %3, %138, %cst_74 {dimension_numbers = #tpu.dot_dimension_numbers<[1], [0], [0], [1], [0, 0, 1, 1], [], []>} : vector<16x8xf32>, vector<8x256xf32>, vector<16x256xf32> -> vector<16x256xf32>
    %140 = arith.addf %13, %139 : vector<16x256xf32>
    %cst_75 = arith.constant 0.000000e+00 : f32
    %141 = vector.broadcast %cst_75 : f32 to vector<16x256xf32>
    %142 = arith.maximumf %140, %141 : vector<16x256xf32>
    %cst_76 = arith.constant dense<0.000000e+00> : vector<16x256xf32>
    %143 = tpu.matmul %6, %142, %cst_76 {dimension_numbers = #tpu.dot_dimension_numbers<[1], [0], [0], [1], [0, 0, 1, 1], [], []>} : vector<16x16xf32>, vector<16x256xf32>, vector<16x256xf32> -> vector<16x256xf32>
    %144 = arith.addf %16, %143 : vector<16x256xf32>
    %cst_77 = arith.constant 0.000000e+00 : f32
    %145 = vector.broadcast %cst_77 : f32 to vector<16x256xf32>
    %146 = arith.maximumf %144, %145 : vector<16x256xf32>
    %147 = tpu.concatenate %146, %142 in 0 : vector<16x256xf32>, vector<16x256xf32> -> vector<32x256xf32>
    %cst_78 = arith.constant dense<0.000000e+00> : vector<16x256xf32>
    %148 = tpu.matmul %9, %147, %cst_78 {dimension_numbers = #tpu.dot_dimension_numbers<[1], [0], [0], [1], [0, 0, 1, 1], [], []>} : vector<16x32xf32>, vector<32x256xf32>, vector<16x256xf32> -> vector<16x256xf32>
    %149 = arith.addf %19, %148 : vector<16x256xf32>
    %150 = arith.maximumf %133, %142 : vector<16x256xf32>
    %151 = arith.maximumf %134, %146 : vector<16x256xf32>
    %152 = arith.maximumf %135, %149 : vector<16x256xf32>
    %c0_79 = arith.constant 0 : index
    %c32_80 = arith.constant 32 : index
    %c0_81 = arith.constant 0 : index
    %153 = vector.load %arg5[%c0_79, %c32_80, %c0_81] : memref<1x56x256xf32, #tpu.memory_space<vmem>>, vector<1x16x256xf32>
    %154 = vector.shape_cast %153 : vector<1x16x256xf32> to vector<16x256xf32>
    %155 = vector.shape_cast %150 : vector<16x256xf32> to vector<1x16x256xf32>
    tpu.vector_store %arg5[%c0_79, %c32_80, %c0_81], %155 {strides = array<i32>} : memref<1x56x256xf32, #tpu.memory_space<vmem>>, vector<1x16x256xf32>,
    %c0_82 = arith.constant 0 : index
    %c16_83 = arith.constant 16 : index
    %c0_84 = arith.constant 0 : index
    %156 = vector.load %arg5[%c0_82, %c16_83, %c0_84] : memref<1x56x256xf32, #tpu.memory_space<vmem>>, vector<1x16x256xf32>
    %157 = vector.shape_cast %156 : vector<1x16x256xf32> to vector<16x256xf32>
    %158 = vector.shape_cast %151 : vector<16x256xf32> to vector<1x16x256xf32>
    tpu.vector_store %arg5[%c0_82, %c16_83, %c0_84], %158 {strides = array<i32>} : memref<1x56x256xf32, #tpu.memory_space<vmem>>, vector<1x16x256xf32>,
    %c0_85 = arith.constant 0 : index
    %c0_86 = arith.constant 0 : index
    %c0_87 = arith.constant 0 : index
    %159 = vector.load %arg5[%c0_85, %c0_86, %c0_87] : memref<1x56x256xf32, #tpu.memory_space<vmem>>, vector<1x16x256xf32>
    %160 = vector.shape_cast %159 : vector<1x16x256xf32> to vector<16x256xf32>
    %161 = vector.shape_cast %152 : vector<16x256xf32> to vector<1x16x256xf32>
    tpu.vector_store %arg5[%c0_85, %c0_86, %c0_87], %161 {strides = array<i32>} : memref<1x56x256xf32, #tpu.memory_space<vmem>>, vector<1x16x256xf32>,
    %c0_88 = arith.constant 0 : index
    %c48_89 = arith.constant 48 : index
    %c0_90 = arith.constant 0 : index
    %162 = vector.load %arg5[%c0_88, %c48_89, %c0_90] : memref<1x56x256xf32, #tpu.memory_space<vmem>>, vector<1x8x256xf32>
    %163 = vector.shape_cast %162 : vector<1x8x256xf32> to vector<8x256xf32>
    %164 = vector.shape_cast %1 : vector<8x256xf32> to vector<1x8x256xf32>
    tpu.vector_store %arg5[%c0_88, %c48_89, %c0_90], %164 {strides = array<i32>} : memref<1x56x256xf32, #tpu.memory_space<vmem>>, vector<1x8x256xf32>,
    return
  }
  func.func @transform_0(%arg0: i32, %arg1: i32) -> (i32, i32, i32) {
    %c0_i32 = arith.constant 0 : i32
    %c0_i32_0 = arith.constant 0 : i32
    return %arg0, %c0_i32, %arg1 : i32, i32, i32
  }
  func.func @transform_1(%arg0: i32, %arg1: i32) -> (i32, i32, i32, i32) {
    %c0_i32 = arith.constant 0 : i32
    %c0_i32_0 = arith.constant 0 : i32
    %c0_i32_1 = arith.constant 0 : i32
    return %arg0, %c0_i32, %c0_i32_0, %arg1 : i32, i32, i32, i32
  }
  func.func @transform_2(%arg0: i32, %arg1: i32) -> (i32, i32) {
    %c0_i32 = arith.constant 0 : i32
    %c0_i32_0 = arith.constant 0 : i32
    %c0_i32_1 = arith.constant 0 : i32
    return %c0_i32, %c0_i32_0 : i32, i32
  }
  func.func @transform_3(%arg0: i32, %arg1: i32) -> (i32, i32, i32) {
    %c0_i32 = arith.constant 0 : i32
    %c0_i32_0 = arith.constant 0 : i32
    return %arg0, %c0_i32, %arg1 : i32, i32, i32
  }
}

</mosaic_0001>

<llo_original>
// kernel: tpu_custom_call.1
$region0: #{tpu_custom_call.1}
  #allocation0 [shape = 'u32[]', space=smem, size = 0x4, offset = 0x4, fixed_abs, tag = 'smem constant byte address 0x4 - core index']
  #allocation1 [shape = 'u32[144,128]{1,0:T(1,128)}', space=vmem, size = 0x12000, scoped, tag = 'internal scratch']
  %s0 = inlined_call_operand.vmem [shape: f32[2,8,256], index: 0, kind: input, shape index: {}]
  %s1 = inlined_call_operand.hbm [shape: f32[2,8,8,256], index: 1, kind: input, shape index: {}]
  %s2 = inlined_call_operand.vmem [shape: f32[144,32], index: 2, kind: input, shape index: {}]
  %s3 = inlined_call_operand.hbm [shape: f32[2,56,256], index: 3, kind: output, shape index: {}]
  %s4 = sld [smem:[#allocation0]]
  $region49: #{tpu_custom_call.1} parent=0
    _
  %s6 = ssub.s32 1, %s4
  %s7 = scalar_select 0, %s6, %s4
  $region1: #{tpu_custom_call.1} parent=0
    #allocation2 [shape = 'u8[131072]{0}', space=vmem, size = 0x20000, scoped, tag = 'input window, operand 1']
    #allocation3 [shape = 's32[2]{0}', space=sflag, size = 0x8, scoped, tag = 'scoped memory for tpu_custom_call.1']
    #allocation4 [shape = 's32[2]{0}', space=sflag, size = 0x8, scoped, tag = 'scoped memory for tpu_custom_call.1']
    #allocation5 [shape = 'u8[114688]{0}', space=vmem, size = 0x1c000, scoped, tag = 'output window, operand 0']
    %8 = vsyncpa [#allocation3], 0
    %s9 = scalar_lea.sflag [#allocation3], 1
    %10 = vsyncpa %s9, 0
    %11 = vsyncpa [#allocation4], 0
    %s12 = scalar_lea.sflag [#allocation4], 1
    %13 = vsyncpa %s12, 0
    loop: start=0, step=1, limit=4
    $region2: #{tpu_custom_call.1} parent=1 // loop_pre_header
      _
    $region3: #{tpu_custom_call.1} parent=1 // loop_header
      %s15 = sphi 0, %s19
      %p16 = scmp.ge.s32.totalorder %s15, 4
      %s22 = sphi 0, %s34
      %s23 = sphi 0, %s30
      %s24 = sphi 0, %s22
      %s25 = sphi 0, %s23
      %s26 = sphi 0, %s24
      %s27 = sphi 0, %s25
      %s39 = sphi 0, %s41
      %s42 = sphi 0, %s39
      %s43 = sphi 0, %s42
      %s59 = sphi 0, %s43
      %s67 = sphi 0, %s69
      %s70 = sphi 0, %s67
      %s71 = sphi 0, %s70
      %s87 = sphi 0, %s71
      %s91 = sphi 0, %s91
      %s93 = sphi 0, %s91
      %s94 = sphi 0, %s93
      %s108 = sphi 0, %s94
      %s116 = sphi 0, %s118
      %s119 = sphi 0, %s116
      %s120 = sphi 0, %s119
      %s136 = sphi 0, %s120
    $region4: #{tpu_custom_call.1} parent=1 // loop_header_branch
      %18 = sbr.rel (%p16) target = $region8
    $region5: #{tpu_custom_call.1} parent=1 // loop_body
      %s20 = ssub.s32 %s15, 1
      %s21 = ssub.s32 %s15, 2
      %s28 = sadd.s32 1, %s23
      %p29 = scmp.ge.s32.totalorder %s28, 1
      %s30 = scalar_select %p29, 0, %s28
      %s31 = sadd.s32 1, %s22
      %s32 = scalar_select %p29, %s31, %s22
      %p33 = scmp.ge.s32.totalorder %s32, 2
      %s34 = scalar_select %p33, 0, %s32
      %s35 = ssub.s32 %s22, %s34
      %s36 = ssub.s32 %s23, %s30
      %s37 = sor.u32 %s35, %s36
      %p38 = scmp.eq.s32.totalorder %s37, 0
      %s40 = sadd.s32 %s39, 1
      %s41 = scalar_select %p38, %s39, %s40
      %p44 = pneg %p38
      %p45 = scmp.eq.s32.totalorder %s15, 1
      %p46 = por %p44, %p45
      %p47 = scmp.ne.s32.totalorder %s39, %s42
      %p48 = scmp.eq.s32.totalorder %s15, 0
      %p49 = por %p47, %p48
      %p50 = scmp.ne.s32.totalorder %s39, %s42
      %p51 = scmp.eq.s32.totalorder %s20, 1
      %p52 = por %p50, %p51
      %p53 = scmp.ne.s32.totalorder %s42, %s43
      %p54 = scmp.eq.s32.totalorder %s20, 0
      %p55 = por %p53, %p54
      %p56 = scmp.ne.s32.totalorder %s42, %s43
      %p57 = scmp.eq.s32.totalorder %s21, 1
      %p58 = por %p56, %p57
      %p60 = scmp.ne.s32.totalorder %s43, %s59
      %p61 = scmp.eq.s32.totalorder %s21, 0
      %p62 = por %p60, %p61
      %s63 = ssub.s32 %s22, %s34
      %s64 = ssub.s32 %s23, %s30
      %s65 = sor.u32 %s63, %s64
      %p66 = scmp.eq.s32.totalorder %s65, 0
      %s68 = sadd.s32 %s67, 1
      %s69 = scalar_select %p66, %s67, %s68
      %p72 = pneg %p66
      %p73 = scmp.eq.s32.totalorder %s15, 1
      %p74 = por %p72, %p73
      %p75 = scmp.ne.s32.totalorder %s67, %s70
      %p76 = scmp.eq.s32.totalorder %s15, 0
      %p77 = por %p75, %p76
      %p78 = scmp.ne.s32.totalorder %s67, %s70
      %p79 = scmp.eq.s32.totalorder %s20, 1
      %p80 = por %p78, %p79
      %p81 = scmp.ne.s32.totalorder %s70, %s71
      %p82 = scmp.eq.s32.totalorder %s20, 0
      %p83 = por %p81, %p82
      %p84 = scmp.ne.s32.totalorder %s70, %s71
      %p85 = scmp.eq.s32.totalorder %s21, 1
      %p86 = por %p84, %p85
      %p88 = scmp.ne.s32.totalorder %s71, %s87
      %p89 = scmp.eq.s32.totalorder %s21, 0
      %p90 = por %p88, %p89
      %s92 = sadd.s32 %s91, 1
      %p95 = scmp.eq.s32.totalorder %s15, 1
      %p96 = scmp.ne.s32.totalorder %s91, %s93
      %p97 = scmp.eq.s32.totalorder %s15, 0
      %p98 = por %p96, %p97
      %p99 = scmp.ne.s32.totalorder %s91, %s93
      %p100 = scmp.eq.s32.totalorder %s20, 1
      %p101 = por %p99, %p100
      %p102 = scmp.ne.s32.totalorder %s93, %s94
      %p103 = scmp.eq.s32.totalorder %s20, 0
      %p104 = por %p102, %p103
      %p105 = scmp.ne.s32.totalorder %s93, %s94
      %p106 = scmp.eq.s32.totalorder %s21, 1
      %p107 = por %p105, %p106
      %p109 = scmp.ne.s32.totalorder %s94, %s108
      %p110 = scmp.eq.s32.totalorder %s21, 0
      %p111 = por %p109, %p110
      %s112 = ssub.s32 %s22, %s34
      %s113 = ssub.s32 %s23, %s30
      %s114 = sor.u32 %s112, %s113
      %p115 = scmp.eq.s32.totalorder %s114, 0
      %s117 = sadd.s32 %s116, 1
      %s118 = scalar_select %p115, %s116, %s117
      %p121 = pneg %p115
      %p122 = scmp.eq.s32.totalorder %s15, 1
      %p123 = por %p121, %p122
      %p124 = scmp.ne.s32.totalorder %s116, %s119
      %p125 = scmp.eq.s32.totalorder %s15, 0
      %p126 = por %p124, %p125
      %p127 = scmp.ne.s32.totalorder %s116, %s119
      %p128 = scmp.eq.s32.totalorder %s20, 1
      %p129 = por %p127, %p128
      %p130 = scmp.ne.s32.totalorder %s119, %s120
      %p131 = scmp.eq.s32.totalorder %s20, 0
      %p132 = por %p130, %p131
      %p133 = scmp.ne.s32.totalorder %s119, %s120
      %p134 = scmp.eq.s32.totalorder %s21, 1
      %p135 = por %p133, %p134
      %p137 = scmp.ne.s32.totalorder %s120, %s136
      %p138 = scmp.eq.s32.totalorder %s21, 0
      %p139 = por %p137, %p138
      %p140 = scmp.le.s32.totalorder 1, %s15
      %p141 = scmp.lt.s32.totalorder %s15, 3
      %p142 = pnand %p140, %p141
      %p143 = pneg %p142
      // Predicated region
      $region9: #{tpu_custom_call.1} parent=5 // pred_check
        _
      $region10: #{tpu_custom_call.1} parent=5 // pred_check_branch
        %145 = sbr.rel (%p142) target = $region12
      $region11: #{tpu_custom_call.1} parent=5 // pred_region
        %s146 = ssub.s32 %s15, 1
        // Predicated region
        $region13: #{tpu_custom_call.1} parent=11 // pred_check
          %p147 = pneg %p104
        $region14: #{tpu_custom_call.1} parent=11 // pred_check_branch
          %149 = sbr.rel (%p147) target = $region16
        $region15: #{tpu_custom_call.1} parent=11 // pred_region
          _
        $region16: #{tpu_custom_call.1} parent=11 // pred_fallthru
          _
      $region12: #{tpu_custom_call.1} parent=5 // pred_fallthru
        _
      %p150 = scmp.lt.s32.totalorder %s15, 2
      // Predicated region
      $region17: #{tpu_custom_call.1} parent=5 // pred_check
        %p151 = pneg %p150
      $region18: #{tpu_custom_call.1} parent=5 // pred_check_branch
        %153 = sbr.rel (%p151) target = $region20
      $region19: #{tpu_custom_call.1} parent=5 // pred_region
        // Predicated region
        $region21: #{tpu_custom_call.1} parent=19 // pred_check
          %p154 = pneg %p49
        $region22: #{tpu_custom_call.1} parent=19 // pred_check_branch
          %156 = sbr.rel (%p154) target = $region24
        $region23: #{tpu_custom_call.1} parent=19 // pred_region
          %s157 = smul.u32 2, %s23
          %p158 = scmp.lt.s32.totalorder %s22, 1
          %s159 = scalar_select %p158, %s22, 1
          %p160 = scmp.lt.s32.totalorder %s157, 1
          %s161 = scalar_select %p160, %s157, 1
          %s162 = smul.addr %s159, 2
          %s163 = sadd.s32 %s161, %s162
          %s164 = smul.addr %s163, 8
          %s165 = scalar_lea.vmem %s0, %s164
          %s166 = smul.u32 2, %s23
        $region24: #{tpu_custom_call.1} parent=19 // pred_fallthru
          _
        // Predicated region
        $region25: #{tpu_custom_call.1} parent=19 // pred_check
          %p167 = pneg %p77
        $region26: #{tpu_custom_call.1} parent=19 // pred_check_branch
          %169 = sbr.rel (%p167) target = $region28
        $region27: #{tpu_custom_call.1} parent=19 // pred_region
          %s170 = sand.u32 %s67, 1
          %s171 = scalar_lea.sflag [#allocation3], %s170
          %s172 = sand.u32 %s67, 1
          %s173 = smul.addr %s172, 128
          %s174 = scalar_lea.vmem [#allocation2], %s173
          %s175 = smul.u32 2, %s23
          %s177 = ssub.s32 2048, 2048
          %178 = vsyncadd %s171, %s177
          %s179 = smul.addr %s22, 16
          %s180 = sadd.s32 %s175, %s179
          %s181 = smul.addr %s180, 128
          %s182 = scalar_lea.hbm %s1, %s181
          %s183 = sshll.u32 %s174, 4
          %s184 = int_to_ptr.vmem [resolvable:$true] %s183
          %189 = dma.hbm_to_vmem [thread:$0]  %s182, 2048, %s184, %s171, 256, 256, 16
        $region28: #{tpu_custom_call.1} parent=19 // pred_fallthru
          _
      $region20: #{tpu_custom_call.1} parent=5 // pred_fallthru
        _
      %p190 = scmp.le.s32.totalorder 1, %s15
      %p191 = scmp.lt.s32.totalorder %s15, 3
      %p192 = pnand %p190, %p191
      %p193 = pneg %p192
      // Predicated region
      $region29: #{tpu_custom_call.1} parent=5 // pred_check
        _
      $region30: #{tpu_custom_call.1} parent=5 // pred_check_branch
        %195 = sbr.rel (%p192) target = $region32
      $region31: #{tpu_custom_call.1} parent=5 // pred_region
        %s196 = ssub.s32 %s15, 1
        %s197 = sand.u32 %s70, 1
        %s198 = scalar_lea.sflag [#allocation3], %s197
        %s199 = sand.u32 %s70, 1
        %s200 = smul.addr %s199, 128
        %s201 = scalar_lea.vmem [#allocation2], %s200
        // Predicated region
        $region33: #{tpu_custom_call.1} parent=31 // pred_check
          %p202 = pneg %p83
        $region34: #{tpu_custom_call.1} parent=31 // pred_check_branch
          %204 = sbr.rel (%p202) target = $region36
        $region35: #{tpu_custom_call.1} parent=31 // pred_region
          %205 = dma.done %s198, 2048
        $region36: #{tpu_custom_call.1} parent=31 // pred_fallthru
          _
        %s206 = smul.u32 2, %s25
        %p207 = scmp.lt.s32.totalorder %s24, 1
        %s208 = scalar_select %p207, %s24, 1
        %p209 = scmp.lt.s32.totalorder %s206, 1
        %s210 = scalar_select %p209, %s206, 1
        %s211 = smul.addr %s208, 2
        %s212 = sadd.s32 %s210, %s211
        %s213 = smul.addr %s212, 8
        %s214 = scalar_lea.vmem %s0, %s213
        %p215 = pneg %p55
        %p216 = pneg %p52
        %s217 = sand.u32 %s70, 1
        %s218 = scalar_lea.sflag [#allocation3], %s217
        %s219 = sand.u32 %s70, 1
        %s220 = smul.addr %s219, 128
        %s221 = scalar_lea.vmem [#allocation2], %s220
        %p222 = pneg %p83
        %p223 = pneg %p80
        %p224 = pneg %p104
        %p225 = pneg %p101
        %p226 = pneg %p132
        %p227 = pneg %p129
        %s228 = sand.u32 %s119, 1
        %s229 = scalar_lea.sflag [#allocation4], %s228
        %s230 = sand.u32 %s119, 1
        %s231 = smul.addr %s230, 112
        %s232 = scalar_lea.vmem [#allocation5], %s231
        %s233 = smul.u32 2, %s25
        %p234 = scmp.lt.s32.totalorder %s24, 1
        %s235 = scalar_select %p234, %s24, 1
        %p236 = scmp.lt.s32.totalorder %s233, 1
        %s237 = scalar_select %p236, %s233, 1
        %s238 = smul.addr %s235, 2
        %s239 = sadd.s32 %s237, %s238
        %s240 = smul.addr %s239, 8
        %s241 = scalar_lea.vmem %s0, %s240
        %s242 = smul.u32 2, %s25
        %s243 = smul.u32 2, %s25
        %s244 = smul.u32 2, %s25
        %v245 = vld [vmem:[%s241] sm:$0xff]
        %v246 = vld [vmem:[%s241 + $0x8] sm:$0xff]
        %v247 = vld [vmem:[%s2] sm:$0xff]
        %v248 = vld [vmem:[%s2 + $0x8] sm:$0xff]
        %v249 = vld [vmem:[%s2 + $0x10] sm:$0xff]
        %v250 = vld [vmem:[%s2 + $0x18] sm:$0xff]
        %v251 = vld [vmem:[%s2 + $0x20] sm:$0xff]
        %v252 = vld [vmem:[%s2 + $0x28] sm:$0xff]
        %v253 = vld [vmem:[%s2 + $0x30] sm:$0xff]
        %v254 = vld [vmem:[%s2 + $0x38] sm:$0xff]
        %v255 = vld [vmem:[%s2 + $0x40] sm:$0xff]
        %v256 = vld [vmem:[%s2 + $0x48] sm:$0xff]
        %v257 = vld [vmem:[%s2 + $0x50] sm:$0xff]
        %v258 = vld [vmem:[%s2 + $0x58] sm:$0xff]
        %v259 = vld [vmem:[%s2 + $0x60] sm:$0xff]
        %v260 = vld [vmem:[%s2 + $0x68] sm:$0xff]
        %v261 = vld [vmem:[%s2 + $0x70] sm:$0xff]
        %v262 = vld [vmem:[%s2 + $0x78] sm:$0xff]
        %v263 = vld [vmem:[%s2 + $0x80] sm:$0xff]
        %v264 = vld [vmem:[%s2 + $0x88] sm:$0xff]
        %266 = vset.pattern.permute.xlu0 0
        %267 = vperm.xlu0 %266, %v251
        %v268 = vpop.permute.xlu0 %267
        %271 = vset.pattern.permute.xlu0 0
        %272 = vperm.xlu0 %271, %v252
        %v273 = vpop.permute.xlu0 %272
        %vm275 = vcmask 64512
        %v277 = vsel %vm275, %v247, 0
        %v280 = vsel %vm275, %v248, 0
        %282 = vmatprep.subr.mxu0 %v246
        %283 = vmatpush1.msra.mxu0 %v245
        %284 = vmatprep.subr.mxu0 0.0
        %285 = vmatpush1.msra.mxu0 0.0
        %286 = vmatprep.subr.mxu0 0.0
        %287 = vmatpush1.msra.mxu0 0.0
        %288 = vmatprep.subr.mxu0 0.0
        %289 = vmatpush1.msra.mxu0 0.0
        %290 = vmatprep.subr.mxu0 0.0
        %291 = vmatpush1.msra.mxu0 0.0
        %292 = vmatprep.subr.mxu0 0.0
        %293 = vmatpush1.msra.mxu0 0.0
        %294 = vmatprep.subr.mxu0 0.0
        %295 = vmatpush1.msra.mxu0 0.0
        %296 = vmatprep.subr.mxu0 0.0
        %297 = vmatpush1.msra.mxu0 0.0
        %298 = vmatprep.subr.mxu0 0.0
        %299 = vmatpush1.msra.mxu0 0.0
        %300 = vmatprep.subr.mxu0 0.0
        %301 = vmatpush1.msra.mxu0 0.0
        %302 = vmatprep.subr.mxu0 0.0
        %303 = vmatpush1.msra.mxu0 0.0
        %304 = vmatprep.subr.mxu0 0.0
        %305 = vmatpush1.msra.mxu0 0.0
        %306 = vmatprep.subr.mxu0 0.0
        %307 = vmatpush1.msra.mxu0 0.0
        %308 = vmatprep.subr.mxu0 0.0
        %309 = vmatpush1.msra.mxu0 0.0
        %310 = vmatprep.subr.mxu0 0.0
        %311 = vmatpush1.msra.mxu0 0.0
        %312 = vmatprep.subr.mxu0 0.0
        %313 = vmatpush1.msra.mxu0 0.0
        %314 = vmatprep.subr.mxu0 0.0
        %315 = vmatpush1.msra.mxu0 0.0
        %316 = vmatprep.subr.mxu0 0.0
        %317 = vmatpush1.msra.mxu0 0.0
        %318 = vmatprep.subr.mxu0 0.0
        %319 = vmatpush1.msra.mxu0 0.0
        %320 = vmatprep.subr.mxu0 0.0
        %321 = vmatpush1.msra.mxu0 0.0
        %322 = vmatprep.subr.mxu0 0.0
        %323 = vmatpush1.msra.mxu0 0.0
        %324 = vmatprep.subr.mxu0 0.0
        %325 = vmatpush1.msra.mxu0 0.0
        %326 = vmatprep.subr.mxu0 0.0
        %327 = vmatpush1.msra.mxu0 0.0
        %328 = vmatprep.subr.mxu0 0.0
        %329 = vmatpush1.msra.mxu0 0.0
        %330 = vmatprep.subr.mxu0 0.0
        %331 = vmatpush1.msra.mxu0 0.0
        %332 = vmatprep.subr.mxu0 0.0
        %333 = vmatpush1.msra.mxu0 0.0
        %334 = vmatprep.subr.mxu0 0.0
        %335 = vmatpush1.msra.mxu0 0.0
        %336 = vmatprep.subr.mxu0 0.0
        %337 = vmatpush1.msra.mxu0 0.0
        %338 = vmatprep.subr.mxu0 0.0
        %339 = vmatpush1.msra.mxu0 0.0
        %340 = vmatprep.subr.mxu0 0.0
        %341 = vmatpush1.msra.mxu0 0.0
        %342 = vmatprep.subr.mxu0 0.0
        %343 = vmatpush1.msra.mxu0 0.0
        %344 = vmatprep.subr.mxu0 0.0
        %345 = vmatpush1.msra.mxu0 0.0
        %346 = vmatprep.mubr.f32.mxu0 0.0
        %347 = vmatmul.mubr.f32.gmra.mrb[0].mxu0 %v277
        %v348 = vpop.f32.mrb[0].mxu0
        %v349 = vadd.f32 %v268, %v348
        %v350 = vpop.f32.mrb[0].mxu0
        %v351 = vadd.f32 %v268, %v350
        %352 = vmatprep.mubr.f32.mxu0 0.0
        %353 = vmatmul.mubr.f32.gmra.mrb[0].mxu0 %v280
        %v354 = vpop.f32.mrb[0].mxu0
        %v355 = vadd.f32 %v273, %v354
        %v356 = vpop.f32.mrb[0].mxu0
        %v357 = vadd.f32 %v273, %v356
        %358 = vdwg.mxu0
        %360 = vset.pattern.permute.xlu0 0
        %361 = vperm.xlu0 %360, %v257
        %v362 = vpop.permute.xlu0 %361
        %365 = vset.pattern.permute.xlu0 0
        %366 = vperm.xlu0 %365, %v258
        %v367 = vpop.permute.xlu0 %366
        %v370 = vsel %vm275, %v253, 0
        %v373 = vsel %vm275, %v254, 0
        %375 = vmatprep.subr.mxu0 %v246
        %376 = vmatpush1.msra.mxu0 %v245
        %377 = vmatprep.subr.mxu0 0.0
        %378 = vmatpush1.msra.mxu0 0.0
        %379 = vmatprep.subr.mxu0 0.0
        %380 = vmatpush1.msra.mxu0 0.0
        %381 = vmatprep.subr.mxu0 0.0
        %382 = vmatpush1.msra.mxu0 0.0
        %383 = vmatprep.subr.mxu0 0.0
        %384 = vmatpush1.msra.mxu0 0.0
        %385 = vmatprep.subr.mxu0 0.0
        %386 = vmatpush1.msra.mxu0 0.0
        %387 = vmatprep.subr.mxu0 0.0
        %388 = vmatpush1.msra.mxu0 0.0
        %389 = vmatprep.subr.mxu0 0.0
        %390 = vmatpush1.msra.mxu0 0.0
        %391 = vmatprep.subr.mxu0 0.0
        %392 = vmatpush1.msra.mxu0 0.0
        %393 = vmatprep.subr.mxu0 0.0
        %394 = vmatpush1.msra.mxu0 0.0
        %395 = vmatprep.subr.mxu0 0.0
        %396 = vmatpush1.msra.mxu0 0.0
        %397 = vmatprep.subr.mxu0 0.0
        %398 = vmatpush1.msra.mxu0 0.0
        %399 = vmatprep.subr.mxu0 0.0
        %400 = vmatpush1.msra.mxu0 0.0
        %401 = vmatprep.subr.mxu0 0.0
        %402 = vmatpush1.msra.mxu0 0.0
        %403 = vmatprep.subr.mxu0 0.0
        %404 = vmatpush1.msra.mxu0 0.0
        %405 = vmatprep.subr.mxu0 0.0
        %406 = vmatpush1.msra.mxu0 0.0
        %407 = vmatprep.subr.mxu0 0.0
        %408 = vmatpush1.msra.mxu0 0.0
        %409 = vmatprep.subr.mxu0 0.0
        %410 = vmatpush1.msra.mxu0 0.0
        %411 = vmatprep.subr.mxu0 0.0
        %412 = vmatpush1.msra.mxu0 0.0
        %413 = vmatprep.subr.mxu0 0.0
        %414 = vmatpush1.msra.mxu0 0.0
        %415 = vmatprep.subr.mxu0 0.0
        %416 = vmatpush1.msra.mxu0 0.0
        %417 = vmatprep.subr.mxu0 0.0
        %418 = vmatpush1.msra.mxu0 0.0
        %419 = vmatprep.subr.mxu0 0.0
        %420 = vmatpush1.msra.mxu0 0.0
        %421 = vmatprep.subr.mxu0 0.0
        %422 = vmatpush1.msra.mxu0 0.0
        %423 = vmatprep.subr.mxu0 0.0
        %424 = vmatpush1.msra.mxu0 0.0
        %425 = vmatprep.subr.mxu0 0.0
        %426 = vmatpush1.msra.mxu0 0.0
        %427 = vmatprep.subr.mxu0 0.0
        %428 = vmatpush1.msra.mxu0 0.0
        %429 = vmatprep.subr.mxu0 0.0
        %430 = vmatpush1.msra.mxu0 0.0
        %431 = vmatprep.subr.mxu0 0.0
        %432 = vmatpush1.msra.mxu0 0.0
        %433 = vmatprep.subr.mxu0 0.0
        %434 = vmatpush1.msra.mxu0 0.0
        %435 = vmatprep.subr.mxu0 0.0
        %436 = vmatpush1.msra.mxu0 0.0
        %437 = vmatprep.subr.mxu0 0.0
        %438 = vmatpush1.msra.mxu0 0.0
        %439 = vmatprep.mubr.f32.mxu0 0.0
        %440 = vmatmul.mubr.f32.gmra.mrb[0].mxu0 %v370
        %v441 = vpop.f32.mrb[0].mxu0
        %v442 = vadd.f32 %v362, %v441
        %v443 = vpop.f32.mrb[0].mxu0
        %v444 = vadd.f32 %v362, %v443
        %445 = vmatprep.mubr.f32.mxu0 0.0
        %446 = vmatmul.mubr.f32.gmra.mrb[0].mxu0 %v373
        %v447 = vpop.f32.mrb[0].mxu0
        %v448 = vadd.f32 %v367, %v447
        %v449 = vpop.f32.mrb[0].mxu0
        %v450 = vadd.f32 %v367, %v449
        %451 = vdwg.mxu0
        %453 = vset.pattern.permute.xlu0 0
        %454 = vperm.xlu0 %453, %v263
        %v455 = vpop.permute.xlu0 %454
        %458 = vset.pattern.permute.xlu0 0
        %459 = vperm.xlu0 %458, %v264
        %v460 = vpop.permute.xlu0 %459
        %v463 = vsel %vm275, %v259, 0
        %v466 = vsel %vm275, %v260, 0
        %468 = vmatprep.subr.mxu0 %v246
        %469 = vmatpush1.msra.mxu0 %v245
        %470 = vmatprep.subr.mxu0 0.0
        %471 = vmatpush1.msra.mxu0 0.0
        %472 = vmatprep.subr.mxu0 0.0
        %473 = vmatpush1.msra.mxu0 0.0
        %474 = vmatprep.subr.mxu0 0.0
        %475 = vmatpush1.msra.mxu0 0.0
        %476 = vmatprep.subr.mxu0 0.0
        %477 = vmatpush1.msra.mxu0 0.0
        %478 = vmatprep.subr.mxu0 0.0
        %479 = vmatpush1.msra.mxu0 0.0
        %480 = vmatprep.subr.mxu0 0.0
        %481 = vmatpush1.msra.mxu0 0.0
        %482 = vmatprep.subr.mxu0 0.0
        %483 = vmatpush1.msra.mxu0 0.0
        %484 = vmatprep.subr.mxu0 0.0
        %485 = vmatpush1.msra.mxu0 0.0
        %486 = vmatprep.subr.mxu0 0.0
        %487 = vmatpush1.msra.mxu0 0.0
        %488 = vmatprep.subr.mxu0 0.0
        %489 = vmatpush1.msra.mxu0 0.0
        %490 = vmatprep.subr.mxu0 0.0
        %491 = vmatpush1.msra.mxu0 0.0
        %492 = vmatprep.subr.mxu0 0.0
        %493 = vmatpush1.msra.mxu0 0.0
        %494 = vmatprep.subr.mxu0 0.0
        %495 = vmatpush1.msra.mxu0 0.0
        %496 = vmatprep.subr.mxu0 0.0
        %497 = vmatpush1.msra.mxu0 0.0
        %498 = vmatprep.subr.mxu0 0.0
        %499 = vmatpush1.msra.mxu0 0.0
        %500 = vmatprep.subr.mxu0 0.0
        %501 = vmatpush1.msra.mxu0 0.0
        %502 = vmatprep.subr.mxu0 0.0
        %503 = vmatpush1.msra.mxu0 0.0
        %504 = vmatprep.subr.mxu0 0.0
        %505 = vmatpush1.msra.mxu0 0.0
        %506 = vmatprep.subr.mxu0 0.0
        %507 = vmatpush1.msra.mxu0 0.0
        %508 = vmatprep.subr.mxu0 0.0
        %509 = vmatpush1.msra.mxu0 0.0
        %510 = vmatprep.subr.mxu0 0.0
        %511 = vmatpush1.msra.mxu0 0.0
        %512 = vmatprep.subr.mxu0 0.0
        %513 = vmatpush1.msra.mxu0 0.0
        %514 = vmatprep.subr.mxu0 0.0
        %515 = vmatpush1.msra.mxu0 0.0
        %516 = vmatprep.subr.mxu0 0.0
        %517 = vmatpush1.msra.mxu0 0.0
        %518 = vmatprep.subr.mxu0 0.0
        %519 = vmatpush1.msra.mxu0 0.0
        %520 = vmatprep.subr.mxu0 0.0
        %521 = vmatpush1.msra.mxu0 0.0
        %522 = vmatprep.subr.mxu0 0.0
        %523 = vmatpush1.msra.mxu0 0.0
        %524 = vmatprep.subr.mxu0 0.0
        %525 = vmatpush1.msra.mxu0 0.0
        %526 = vmatprep.subr.mxu0 0.0
        %527 = vmatpush1.msra.mxu0 0.0
        %528 = vmatprep.subr.mxu0 0.0
        %529 = vmatpush1.msra.mxu0 0.0
        %530 = vmatprep.subr.mxu0 0.0
        %531 = vmatpush1.msra.mxu0 0.0
        %532 = vmatprep.mubr.f32.mxu0 0.0
        %533 = vmatmul.mubr.f32.gmra.mrb[0].mxu0 %v463
        %v534 = vpop.f32.mrb[0].mxu0
        %v535 = vadd.f32 %v455, %v534
        %v536 = vpop.f32.mrb[0].mxu0
        %v537 = vadd.f32 %v455, %v536
        %538 = vmatprep.mubr.f32.mxu0 0.0
        %539 = vmatmul.mubr.f32.gmra.mrb[0].mxu0 %v466
        %v540 = vpop.f32.mrb[0].mxu0
        %v541 = vadd.f32 %v460, %v540
        %v542 = vpop.f32.mrb[0].mxu0
        %v543 = vadd.f32 %v460, %v542
        %544 = vdwg.mxu0
        %v545 = vld [vmem:[%s201] sm:$0xff]
        %v546 = vld [vmem:[%s201 + $0x8] sm:$0xff]
        %v547 = vsub.f32 %v545, %v245
        %v548 = vsub.f32 %v546, %v246
        %v550 = vsel %vm275, %v249, 0
        %v553 = vsel %vm275, %v250, 0
        %555 = vmatprep.subr.mxu0 %v548
        %556 = vmatpush1.msra.mxu0 %v547
        %557 = vmatprep.subr.mxu0 0.0
        %558 = vmatpush1.msra.mxu0 0.0
        %559 = vmatprep.subr.mxu0 0.0
        %560 = vmatpush1.msra.mxu0 0.0
        %561 = vmatprep.subr.mxu0 0.0
        %562 = vmatpush1.msra.mxu0 0.0
        %563 = vmatprep.subr.mxu0 0.0
        %564 = vmatpush1.msra.mxu0 0.0
        %565 = vmatprep.subr.mxu0 0.0
        %566 = vmatpush1.msra.mxu0 0.0
        %567 = vmatprep.subr.mxu0 0.0
        %568 = vmatpush1.msra.mxu0 0.0
        %569 = vmatprep.subr.mxu0 0.0
        %570 = vmatpush1.msra.mxu0 0.0
        %571 = vmatprep.subr.mxu0 0.0
        %572 = vmatpush1.msra.mxu0 0.0
        %573 = vmatprep.subr.mxu0 0.0
        %574 = vmatpush1.msra.mxu0 0.0
        %575 = vmatprep.subr.mxu0 0.0
        %576 = vmatpush1.msra.mxu0 0.0
        %577 = vmatprep.subr.mxu0 0.0
        %578 = vmatpush1.msra.mxu0 0.0
        %579 = vmatprep.subr.mxu0 0.0
        %580 = vmatpush1.msra.mxu0 0.0
        %581 = vmatprep.subr.mxu0 0.0
        %582 = vmatpush1.msra.mxu0 0.0
        %583 = vmatprep.subr.mxu0 0.0
        %584 = vmatpush1.msra.mxu0 0.0
        %585 = vmatprep.subr.mxu0 0.0
        %586 = vmatpush1.msra.mxu0 0.0
        %587 = vmatprep.subr.mxu0 0.0
        %588 = vmatpush1.msra.mxu0 0.0
        %589 = vmatprep.subr.mxu0 0.0
        %590 = vmatpush1.msra.mxu0 0.0
        %591 = vmatprep.subr.mxu0 0.0
        %592 = vmatpush1.msra.mxu0 0.0
        %593 = vmatprep.subr.mxu0 0.0
        %594 = vmatpush1.msra.mxu0 0.0
        %595 = vmatprep.subr.mxu0 0.0
        %596 = vmatpush1.msra.mxu0 0.0
        %597 = vmatprep.subr.mxu0 0.0
        %598 = vmatpush1.msra.mxu0 0.0
        %599 = vmatprep.subr.mxu0 0.0
        %600 = vmatpush1.msra.mxu0 0.0
        %601 = vmatprep.subr.mxu0 0.0
        %602 = vmatpush1.msra.mxu0 0.0
        %603 = vmatprep.subr.mxu0 0.0
        %604 = vmatpush1.msra.mxu0 0.0
        %605 = vmatprep.subr.mxu0 0.0
        %606 = vmatpush1.msra.mxu0 0.0
        %607 = vmatprep.subr.mxu0 0.0
        %608 = vmatpush1.msra.mxu0 0.0
        %609 = vmatprep.subr.mxu0 0.0
        %610 = vmatpush1.msra.mxu0 0.0
        %611 = vmatprep.subr.mxu0 0.0
        %612 = vmatpush1.msra.mxu0 0.0
        %613 = vmatprep.subr.mxu0 0.0
        %614 = vmatpush1.msra.mxu0 0.0
        %615 = vmatprep.subr.mxu0 0.0
        %616 = vmatpush1.msra.mxu0 0.0
        %617 = vmatprep.subr.mxu0 0.0
        %618 = vmatpush1.msra.mxu0 0.0
        %619 = vmatprep.mubr.f32.mxu0 0.0
        %620 = vmatmul.mubr.f32.gmra.mrb[0].mxu0 %v550
        %v621 = vpop.f32.mrb[0].mxu0
        %v622 = vadd.f32 0.0, %v621
        %v623 = vpop.f32.mrb[0].mxu0
        %v624 = vadd.f32 0.0, %v623
        %625 = vmatprep.mubr.f32.mxu0 0.0
        %626 = vmatmul.mubr.f32.gmra.mrb[0].mxu0 %v553
        %v627 = vpop.f32.mrb[0].mxu0
        %v628 = vadd.f32 0.0, %v627
        %v629 = vpop.f32.mrb[0].mxu0
        %v630 = vadd.f32 0.0, %v629
        %631 = vdwg.mxu0
        %v632 = vadd.f32 %v349, %v622
        %v633 = vadd.f32 %v351, %v624
        %v634 = vadd.f32 %v355, %v628
        %v635 = vadd.f32 %v357, %v630
        %v636 = vmax.f32 %v632, 0.0
        %v637 = vmax.f32 %v633, 0.0
        %v638 = vmax.f32 %v634, 0.0
        %v639 = vmax.f32 %v635, 0.0
        %vm640 = vcmask 130048
        %v642 = vsel %vm640, %v255, 0
        %v645 = vsel %vm640, %v256, 0
        %647 = vmatprep.subr.mxu0 %v637
        %648 = vmatpush1.msra.mxu0 %v636
        %649 = vmatprep.subr.mxu0 %v639
        %650 = vmatpush1.msra.mxu0 %v638
        %651 = vmatprep.subr.mxu0 0.0
        %652 = vmatpush1.msra.mxu0 0.0
        %653 = vmatprep.subr.mxu0 0.0
        %654 = vmatpush1.msra.mxu0 0.0
        %655 = vmatprep.subr.mxu0 0.0
        %656 = vmatpush1.msra.mxu0 0.0
        %657 = vmatprep.subr.mxu0 0.0
        %658 = vmatpush1.msra.mxu0 0.0
        %659 = vmatprep.subr.mxu0 0.0
        %660 = vmatpush1.msra.mxu0 0.0
        %661 = vmatprep.subr.mxu0 0.0
        %662 = vmatpush1.msra.mxu0 0.0
        %663 = vmatprep.subr.mxu0 0.0
        %664 = vmatpush1.msra.mxu0 0.0
        %665 = vmatprep.subr.mxu0 0.0
        %666 = vmatpush1.msra.mxu0 0.0
        %667 = vmatprep.subr.mxu0 0.0
        %668 = vmatpush1.msra.mxu0 0.0
        %669 = vmatprep.subr.mxu0 0.0
        %670 = vmatpush1.msra.mxu0 0.0
        %671 = vmatprep.subr.mxu0 0.0
        %672 = vmatpush1.msra.mxu0 0.0
        %673 = vmatprep.subr.mxu0 0.0
        %674 = vmatpush1.msra.mxu0 0.0
        %675 = vmatprep.subr.mxu0 0.0
        %676 = vmatpush1.msra.mxu0 0.0
        %677 = vmatprep.subr.mxu0 0.0
        %678 = vmatpush1.msra.mxu0 0.0
        %679 = vmatprep.subr.mxu0 0.0
        %680 = vmatpush1.msra.mxu0 0.0
        %681 = vmatprep.subr.mxu0 0.0
        %682 = vmatpush1.msra.mxu0 0.0
        %683 = vmatprep.subr.mxu0 0.0
        %684 = vmatpush1.msra.mxu0 0.0
        %685 = vmatprep.subr.mxu0 0.0
        %686 = vmatpush1.msra.mxu0 0.0
        %687 = vmatprep.subr.mxu0 0.0
        %688 = vmatpush1.msra.mxu0 0.0
        %689 = vmatprep.subr.mxu0 0.0
        %690 = vmatpush1.msra.mxu0 0.0
        %691 = vmatprep.subr.mxu0 0.0
        %692 = vmatpush1.msra.mxu0 0.0
        %693 = vmatprep.subr.mxu0 0.0
        %694 = vmatpush1.msra.mxu0 0.0
        %695 = vmatprep.subr.mxu0 0.0
        %696 = vmatpush1.msra.mxu0 0.0
        %697 = vmatprep.subr.mxu0 0.0
        %698 = vmatpush1.msra.mxu0 0.0
        %699 = vmatprep.subr.mxu0 0.0
        %700 = vmatpush1.msra.mxu0 0.0
        %701 = vmatprep.subr.mxu0 0.0
        %702 = vmatpush1.msra.mxu0 0.0
        %703 = vmatprep.subr.mxu0 0.0
        %704 = vmatpush1.msra.mxu0 0.0
        %705 = vmatprep.subr.mxu0 0.0
        %706 = vmatpush1.msra.mxu0 0.0
        %707 = vmatprep.subr.mxu0 0.0
        %708 = vmatpush1.msra.mxu0 0.0
        %709 = vmatprep.subr.mxu0 0.0
        %710 = vmatpush1.msra.mxu0 0.0
        %711 = vmatprep.mubr.f32.mxu0 0.0
        %712 = vmatmul.mubr.f32.gmra.mrb[0].mxu0 %v642
        %v713 = vpop.f32.mrb[0].mxu0
        %v714 = vadd.f32 0.0, %v713
        %v715 = vpop.f32.mrb[0].mxu0
        %v716 = vadd.f32 0.0, %v715
        %717 = vmatprep.mubr.f32.mxu0 0.0
        %718 = vmatmul.mubr.f32.gmra.mrb[0].mxu0 %v645
        %v719 = vpop.f32.mrb[0].mxu0
        %v720 = vadd.f32 0.0, %v719
        %v721 = vpop.f32.mrb[0].mxu0
        %v722 = vadd.f32 0.0, %v721
        %723 = vdwg.mxu0
        %v724 = vadd.f32 %v442, %v714
        %v725 = vadd.f32 %v444, %v716
        %v726 = vadd.f32 %v448, %v720
        %v727 = vadd.f32 %v450, %v722
        %v728 = vmax.f32 %v724, 0.0
        %v729 = vmax.f32 %v725, 0.0
        %v730 = vmax.f32 %v726, 0.0
        %v731 = vmax.f32 %v727, 0.0
        %vm732 = vcmask 261120
        %v734 = vsel %vm732, %v261, 0
        %v737 = vsel %vm732, %v262, 0
        %739 = vmatprep.subr.mxu0 %v729
        %740 = vmatpush1.msra.mxu0 %v728
        %741 = vmatprep.subr.mxu0 %v731
        %742 = vmatpush1.msra.mxu0 %v730
        %743 = vmatprep.subr.mxu0 %v637
        %744 = vmatpush1.msra.mxu0 %v636
        %745 = vmatprep.subr.mxu0 %v639
        %746 = vmatpush1.msra.mxu0 %v638
        %747 = vmatprep.subr.mxu0 0.0
        %748 = vmatpush1.msra.mxu0 0.0
        %749 = vmatprep.subr.mxu0 0.0
        %750 = vmatpush1.msra.mxu0 0.0
        %751 = vmatprep.subr.mxu0 0.0
        %752 = vmatpush1.msra.mxu0 0.0
        %753 = vmatprep.subr.mxu0 0.0
        %754 = vmatpush1.msra.mxu0 0.0
        %755 = vmatprep.subr.mxu0 0.0
        %756 = vmatpush1.msra.mxu0 0.0
        %757 = vmatprep.subr.mxu0 0.0
        %758 = vmatpush1.msra.mxu0 0.0
        %759 = vmatprep.subr.mxu0 0.0
        %760 = vmatpush1.msra.mxu0 0.0
        %761 = vmatprep.subr.mxu0 0.0
        %762 = vmatpush1.msra.mxu0 0.0
        %763 = vmatprep.subr.mxu0 0.0
        %764 = vmatpush1.msra.mxu0 0.0
        %765 = vmatprep.subr.mxu0 0.0
        %766 = vmatpush1.msra.mxu0 0.0
        %767 = vmatprep.subr.mxu0 0.0
        %768 = vmatpush1.msra.mxu0 0.0
        %769 = vmatprep.subr.mxu0 0.0
        %770 = vmatpush1.msra.mxu0 0.0
        %771 = vmatprep.subr.mxu0 0.0
        %772 = vmatpush1.msra.mxu0 0.0
        %773 = vmatprep.subr.mxu0 0.0
        %774 = vmatpush1.msra.mxu0 0.0
        %775 = vmatprep.subr.mxu0 0.0
        %776 = vmatpush1.msra.mxu0 0.0
        %777 = vmatprep.subr.mxu0 0.0
        %778 = vmatpush1.msra.mxu0 0.0
        %779 = vmatprep.subr.mxu0 0.0
        %780 = vmatpush1.msra.mxu0 0.0
        %781 = vmatprep.subr.mxu0 0.0
        %782 = vmatpush1.msra.mxu0 0.0
        %783 = vmatprep.subr.mxu0 0.0
        %784 = vmatpush1.msra.mxu0 0.0
        %785 = vmatprep.subr.mxu0 0.0
        %786 = vmatpush1.msra.mxu0 0.0
        %787 = vmatprep.subr.mxu0 0.0
        %788 = vmatpush1.msra.mxu0 0.0
        %789 = vmatprep.subr.mxu0 0.0
        %790 = vmatpush1.msra.mxu0 0.0
        %791 = vmatprep.subr.mxu0 0.0
        %792 = vmatpush1.msra.mxu0 0.0
        %793 = vmatprep.subr.mxu0 0.0
        %794 = vmatpush1.msra.mxu0 0.0
        %795 = vmatprep.subr.mxu0 0.0
        %796 = vmatpush1.msra.mxu0 0.0
        %797 = vmatprep.subr.mxu0 0.0
        %798 = vmatpush1.msra.mxu0 0.0
        %799 = vmatprep.subr.mxu0 0.0
        %800 = vmatpush1.msra.mxu0 0.0
        %801 = vmatprep.subr.mxu0 0.0
        %802 = vmatpush1.msra.mxu0 0.0
        %803 = vmatprep.mubr.f32.mxu0 0.0
        %804 = vmatmul.mubr.f32.gmra.mrb[0].mxu0 %v734
        %v805 = vpop.f32.mrb[0].mxu0
        %v806 = vadd.f32 0.0, %v805
        %v807 = vpop.f32.mrb[0].mxu0
        %v808 = vadd.f32 0.0, %v807
        %809 = vmatprep.mubr.f32.mxu0 0.0
        %810 = vmatmul.mubr.f32.gmra.mrb[0].mxu0 %v737
        %v811 = vpop.f32.mrb[0].mxu0
        %v812 = vadd.f32 0.0, %v811
        %v813 = vpop.f32.mrb[0].mxu0
        %v814 = vadd.f32 0.0, %v813
        %815 = vdwg.mxu0
        %v816 = vadd.f32 %v535, %v806
        %v817 = vadd.f32 %v537, %v808
        %v818 = vadd.f32 %v541, %v812
        %v819 = vadd.f32 %v543, %v814
        %s820 = scalar_lea.vmem %s201, 16 [#allocation2]
        %v821 = vld [vmem:[%s820] sm:$0xff]
        %v822 = vld [vmem:[%s820 + $0x8] sm:$0xff]
        %v823 = vsub.f32 %v821, %v245
        %v824 = vsub.f32 %v822, %v246
        %825 = vmatprep.subr.mxu0 %v824
        %826 = vmatpush1.msra.mxu0 %v823
        %827 = vmatprep.subr.mxu0 0.0
        %828 = vmatpush1.msra.mxu0 0.0
        %829 = vmatprep.subr.mxu0 0.0
        %830 = vmatpush1.msra.mxu0 0.0
        %831 = vmatprep.subr.mxu0 0.0
        %832 = vmatpush1.msra.mxu0 0.0
        %833 = vmatprep.subr.mxu0 0.0
        %834 = vmatpush1.msra.mxu0 0.0
        %835 = vmatprep.subr.mxu0 0.0
        %836 = vmatpush1.msra.mxu0 0.0
        %837 = vmatprep.subr.mxu0 0.0
        %838 = vmatpush1.msra.mxu0 0.0
        %839 = vmatprep.subr.mxu0 0.0
        %840 = vmatpush1.msra.mxu0 0.0
        %841 = vmatprep.subr.mxu0 0.0
        %842 = vmatpush1.msra.mxu0 0.0
        %843 = vmatprep.subr.mxu0 0.0
        %844 = vmatpush1.msra.mxu0 0.0
        %845 = vmatprep.subr.mxu0 0.0
        %846 = vmatpush1.msra.mxu0 0.0
        %847 = vmatprep.subr.mxu0 0.0
        %848 = vmatpush1.msra.mxu0 0.0
        %849 = vmatprep.subr.mxu0 0.0
        %850 = vmatpush1.msra.mxu0 0.0
        %851 = vmatprep.subr.mxu0 0.0
        %852 = vmatpush1.msra.mxu0 0.0
        %853 = vmatprep.subr.mxu0 0.0
        %854 = vmatpush1.msra.mxu0 0.0
        %855 = vmatprep.subr.mxu0 0.0
        %856 = vmatpush1.msra.mxu0 0.0
        %857 = vmatprep.subr.mxu0 0.0
        %858 = vmatpush1.msra.mxu0 0.0
        %859 = vmatprep.subr.mxu0 0.0
        %860 = vmatpush1.msra.mxu0 0.0
        %861 = vmatprep.subr.mxu0 0.0
        %862 = vmatpush1.msra.mxu0 0.0
        %863 = vmatprep.subr.mxu0 0.0
        %864 = vmatpush1.msra.mxu0 0.0
        %865 = vmatprep.subr.mxu0 0.0
        %866 = vmatpush1.msra.mxu0 0.0
        %867 = vmatprep.subr.mxu0 0.0
        %868 = vmatpush1.msra.mxu0 0.0
        %869 = vmatprep.subr.mxu0 0.0
        %870 = vmatpush1.msra.mxu0 0.0
        %871 = vmatprep.subr.mxu0 0.0
        %872 = vmatpush1.msra.mxu0 0.0
        %873 = vmatprep.subr.mxu0 0.0
        %874 = vmatpush1.msra.mxu0 0.0
        %875 = vmatprep.subr.mxu0 0.0
        %876 = vmatpush1.msra.mxu0 0.0
        %877 = vmatprep.subr.mxu0 0.0
        %878 = vmatpush1.msra.mxu0 0.0
        %879 = vmatprep.subr.mxu0 0.0
        %880 = vmatpush1.msra.mxu0 0.0
        %881 = vmatprep.subr.mxu0 0.0
        %882 = vmatpush1.msra.mxu0 0.0
        %883 = vmatprep.subr.mxu0 0.0
        %884 = vmatpush1.msra.mxu0 0.0
        %885 = vmatprep.subr.mxu0 0.0
        %886 = vmatpush1.msra.mxu0 0.0
        %887 = vmatprep.subr.mxu0 0.0
        %888 = vmatpush1.msra.mxu0 0.0
        %889 = vmatprep.mubr.f32.mxu0 0.0
        %890 = vmatmul.mubr.f32.gmra.mrb[0].mxu0 %v550
        %v891 = vpop.f32.mrb[0].mxu0
        %v892 = vadd.f32 0.0, %v891
        %v893 = vpop.f32.mrb[0].mxu0
        %v894 = vadd.f32 0.0, %v893
        %895 = vmatprep.mubr.f32.mxu0 0.0
        %896 = vmatmul.mubr.f32.gmra.mrb[0].mxu0 %v553
        %v897 = vpop.f32.mrb[0].mxu0
        %v898 = vadd.f32 0.0, %v897
        %v899 = vpop.f32.mrb[0].mxu0
        %v900 = vadd.f32 0.0, %v899
        %901 = vdwg.mxu0
        %v902 = vadd.f32 %v349, %v892
        %v903 = vadd.f32 %v351, %v894
        %v904 = vadd.f32 %v355, %v898
        %v905 = vadd.f32 %v357, %v900
        %v906 = vmax.f32 %v902, 0.0
        %v907 = vmax.f32 %v903, 0.0
        %v908 = vmax.f32 %v904, 0.0
        %v909 = vmax.f32 %v905, 0.0
        %910 = vmatprep.subr.mxu0 %v907
        %911 = vmatpush1.msra.mxu0 %v906
        %912 = vmatprep.subr.mxu0 %v909
        %913 = vmatpush1.msra.mxu0 %v908
        %914 = vmatprep.subr.mxu0 0.0
        %915 = vmatpush1.msra.mxu0 0.0
        %916 = vmatprep.subr.mxu0 0.0
        %917 = vmatpush1.msra.mxu0 0.0
        %918 = vmatprep.subr.mxu0 0.0
        %919 = vmatpush1.msra.mxu0 0.0
        %920 = vmatprep.subr.mxu0 0.0
        %921 = vmatpush1.msra.mxu0 0.0
        %922 = vmatprep.subr.mxu0 0.0
        %923 = vmatpush1.msra.mxu0 0.0
        %924 = vmatprep.subr.mxu0 0.0
        %925 = vmatpush1.msra.mxu0 0.0
        %926 = vmatprep.subr.mxu0 0.0
        %927 = vmatpush1.msra.mxu0 0.0
        %928 = vmatprep.subr.mxu0 0.0
        %929 = vmatpush1.msra.mxu0 0.0
        %930 = vmatprep.subr.mxu0 0.0
        %931 = vmatpush1.msra.mxu0 0.0
        %932 = vmatprep.subr.mxu0 0.0
        %933 = vmatpush1.msra.mxu0 0.0
        %934 = vmatprep.subr.mxu0 0.0
        %935 = vmatpush1.msra.mxu0 0.0
        %936 = vmatprep.subr.mxu0 0.0
        %937 = vmatpush1.msra.mxu0 0.0
        %938 = vmatprep.subr.mxu0 0.0
        %939 = vmatpush1.msra.mxu0 0.0
        %940 = vmatprep.subr.mxu0 0.0
        %941 = vmatpush1.msra.mxu0 0.0
        %942 = vmatprep.subr.mxu0 0.0
        %943 = vmatpush1.msra.mxu0 0.0
        %944 = vmatprep.subr.mxu0 0.0
        %945 = vmatpush1.msra.mxu0 0.0
        %946 = vmatprep.subr.mxu0 0.0
        %947 = vmatpush1.msra.mxu0 0.0
        %948 = vmatprep.subr.mxu0 0.0
        %949 = vmatpush1.msra.mxu0 0.0
        %950 = vmatprep.subr.mxu0 0.0
        %951 = vmatpush1.msra.mxu0 0.0
        %952 = vmatprep.subr.mxu0 0.0
        %953 = vmatpush1.msra.mxu0 0.0
        %954 = vmatprep.subr.mxu0 0.0
        %955 = vmatpush1.msra.mxu0 0.0
        %956 = vmatprep.subr.mxu0 0.0
        %957 = vmatpush1.msra.mxu0 0.0
        %958 = vmatprep.subr.mxu0 0.0
        %959 = vmatpush1.msra.mxu0 0.0
        %960 = vmatprep.subr.mxu0 0.0
        %961 = vmatpush1.msra.mxu0 0.0
        %962 = vmatprep.subr.mxu0 0.0
        %963 = vmatpush1.msra.mxu0 0.0
        %964 = vmatprep.subr.mxu0 0.0
        %965 = vmatpush1.msra.mxu0 0.0
        %966 = vmatprep.subr.mxu0 0.0
        %967 = vmatpush1.msra.mxu0 0.0
        %968 = vmatprep.subr.mxu0 0.0
        %969 = vmatpush1.msra.mxu0 0.0
        %970 = vmatprep.subr.mxu0 0.0
        %971 = vmatpush1.msra.mxu0 0.0
        %972 = vmatprep.subr.mxu0 0.0
        %973 = vmatpush1.msra.mxu0 0.0
        %974 = vmatprep.mubr.f32.mxu0 0.0
        %975 = vmatmul.mubr.f32.gmra.mrb[0].mxu0 %v642
        %v976 = vpop.f32.mrb[0].mxu0
        %v977 = vadd.f32 0.0, %v976
        %v978 = vpop.f32.mrb[0].mxu0
        %v979 = vadd.f32 0.0, %v978
        %980 = vmatprep.mubr.f32.mxu0 0.0
        %981 = vmatmul.mubr.f32.gmra.mrb[0].mxu0 %v645
        %v982 = vpop.f32.mrb[0].mxu0
        %v983 = vadd.f32 0.0, %v982
        %v984 = vpop.f32.mrb[0].mxu0
        %v985 = vadd.f32 0.0, %v984
        %986 = vdwg.mxu0
        %v987 = vadd.f32 %v442, %v977
        %v988 = vadd.f32 %v444, %v979
        %v989 = vadd.f32 %v448, %v983
        %v990 = vadd.f32 %v450, %v985
        %v991 = vmax.f32 %v987, 0.0
        %v992 = vmax.f32 %v988, 0.0
        %v993 = vmax.f32 %v989, 0.0
        %v994 = vmax.f32 %v990, 0.0
        %995 = vmatprep.subr.mxu0 %v992
        %996 = vmatpush1.msra.mxu0 %v991
        %997 = vmatprep.subr.mxu0 %v994
        %998 = vmatpush1.msra.mxu0 %v993
        %999 = vmatprep.subr.mxu0 %v907
        %1000 = vmatpush1.msra.mxu0 %v906
        %1001 = vmatprep.subr.mxu0 %v909
        %1002 = vmatpush1.msra.mxu0 %v908
        %1003 = vmatprep.subr.mxu0 0.0
        %1004 = vmatpush1.msra.mxu0 0.0
        %1005 = vmatprep.subr.mxu0 0.0
        %1006 = vmatpush1.msra.mxu0 0.0
        %1007 = vmatprep.subr.mxu0 0.0
        %1008 = vmatpush1.msra.mxu0 0.0
        %1009 = vmatprep.subr.mxu0 0.0
        %1010 = vmatpush1.msra.mxu0 0.0
        %1011 = vmatprep.subr.mxu0 0.0
        %1012 = vmatpush1.msra.mxu0 0.0
        %1013 = vmatprep.subr.mxu0 0.0
        %1014 = vmatpush1.msra.mxu0 0.0
        %1015 = vmatprep.subr.mxu0 0.0
        %1016 = vmatpush1.msra.mxu0 0.0
        %1017 = vmatprep.subr.mxu0 0.0
        %1018 = vmatpush1.msra.mxu0 0.0
        %1019 = vmatprep.subr.mxu0 0.0
        %1020 = vmatpush1.msra.mxu0 0.0
        %1021 = vmatprep.subr.mxu0 0.0
        %1022 = vmatpush1.msra.mxu0 0.0
        %1023 = vmatprep.subr.mxu0 0.0
        %1024 = vmatpush1.msra.mxu0 0.0
        %1025 = vmatprep.subr.mxu0 0.0
        %1026 = vmatpush1.msra.mxu0 0.0
        %1027 = vmatprep.subr.mxu0 0.0
        %1028 = vmatpush1.msra.mxu0 0.0
        %1029 = vmatprep.subr.mxu0 0.0
        %1030 = vmatpush1.msra.mxu0 0.0
        %1031 = vmatprep.subr.mxu0 0.0
        %1032 = vmatpush1.msra.mxu0 0.0
        %1033 = vmatprep.subr.mxu0 0.0
        %1034 = vmatpush1.msra.mxu0 0.0
        %1035 = vmatprep.subr.mxu0 0.0
        %1036 = vmatpush1.msra.mxu0 0.0
        %1037 = vmatprep.subr.mxu0 0.0
        %1038 = vmatpush1.msra.mxu0 0.0
        %1039 = vmatprep.subr.mxu0 0.0
        %1040 = vmatpush1.msra.mxu0 0.0
        %1041 = vmatprep.subr.mxu0 0.0
        %1042 = vmatpush1.msra.mxu0 0.0
        %1043 = vmatprep.subr.mxu0 0.0
        %1044 = vmatpush1.msra.mxu0 0.0
        %1045 = vmatprep.subr.mxu0 0.0
        %1046 = vmatpush1.msra.mxu0 0.0
        %1047 = vmatprep.subr.mxu0 0.0
        %1048 = vmatpush1.msra.mxu0 0.0
        %1049 = vmatprep.subr.mxu0 0.0
        %1050 = vmatpush1.msra.mxu0 0.0
        %1051 = vmatprep.subr.mxu0 0.0
        %1052 = vmatpush1.msra.mxu0 0.0
        %1053 = vmatprep.subr.mxu0 0.0
        %1054 = vmatpush1.msra.mxu0 0.0
        %1055 = vmatprep.subr.mxu0 0.0
        %1056 = vmatpush1.msra.mxu0 0.0
        %1057 = vmatprep.subr.mxu0 0.0
        %1058 = vmatpush1.msra.mxu0 0.0
        %1059 = vmatprep.mubr.f32.mxu0 0.0
        %1060 = vmatmul.mubr.f32.gmra.mrb[0].mxu0 %v734
        %v1061 = vpop.f32.mrb[0].mxu0
        %v1062 = vadd.f32 0.0, %v1061
        %v1063 = vpop.f32.mrb[0].mxu0
        %v1064 = vadd.f32 0.0, %v1063
        %1065 = vmatprep.mubr.f32.mxu0 0.0
        %1066 = vmatmul.mubr.f32.gmra.mrb[0].mxu0 %v737
        %v1067 = vpop.f32.mrb[0].mxu0
        %v1068 = vadd.f32 0.0, %v1067
        %v1069 = vpop.f32.mrb[0].mxu0
        %v1070 = vadd.f32 0.0, %v1069
        %1071 = vdwg.mxu0
        %v1072 = vadd.f32 %v535, %v1062
        %v1073 = vadd.f32 %v537, %v1064
        %v1074 = vadd.f32 %v541, %v1068
        %v1075 = vadd.f32 %v543, %v1070
        %v1076 = vmax.f32 %v636, %v906
        %v1077 = vmax.f32 %v637, %v907
        %v1078 = vmax.f32 %v638, %v908
        %v1079 = vmax.f32 %v639, %v909
        %v1080 = vmax.f32 %v728, %v991
        %v1081 = vmax.f32 %v729, %v992
        %v1082 = vmax.f32 %v730, %v993
        %v1083 = vmax.f32 %v731, %v994
        %v1084 = vmax.f32 %v816, %v1072
        %v1085 = vmax.f32 %v817, %v1073
        %v1086 = vmax.f32 %v818, %v1074
        %v1087 = vmax.f32 %v819, %v1075
        %s1088 = scalar_lea.vmem %s201, 32 [#allocation2]
        %v1089 = vld [vmem:[%s1088] sm:$0xff]
        %v1090 = vld [vmem:[%s1088 + $0x8] sm:$0xff]
        %v1091 = vsub.f32 %v1089, %v245
        %v1092 = vsub.f32 %v1090, %v246
        %1093 = vmatprep.subr.mxu0 %v1092
        %1094 = vmatpush1.msra.mxu0 %v1091
        %1095 = vmatprep.subr.mxu0 0.0
        %1096 = vmatpush1.msra.mxu0 0.0
        %1097 = vmatprep.subr.mxu0 0.0
        %1098 = vmatpush1.msra.mxu0 0.0
        %1099 = vmatprep.subr.mxu0 0.0
        %1100 = vmatpush1.msra.mxu0 0.0
        %1101 = vmatprep.subr.mxu0 0.0
        %1102 = vmatpush1.msra.mxu0 0.0
        %1103 = vmatprep.subr.mxu0 0.0
        %1104 = vmatpush1.msra.mxu0 0.0
        %1105 = vmatprep.subr.mxu0 0.0
        %1106 = vmatpush1.msra.mxu0 0.0
        %1107 = vmatprep.subr.mxu0 0.0
        %1108 = vmatpush1.msra.mxu0 0.0
        %1109 = vmatprep.subr.mxu0 0.0
        %1110 = vmatpush1.msra.mxu0 0.0
        %1111 = vmatprep.subr.mxu0 0.0
        %1112 = vmatpush1.msra.mxu0 0.0
        %1113 = vmatprep.subr.mxu0 0.0
        %1114 = vmatpush1.msra.mxu0 0.0
        %1115 = vmatprep.subr.mxu0 0.0
        %1116 = vmatpush1.msra.mxu0 0.0
        %1117 = vmatprep.subr.mxu0 0.0
        %1118 = vmatpush1.msra.mxu0 0.0
        %1119 = vmatprep.subr.mxu0 0.0
        %1120 = vmatpush1.msra.mxu0 0.0
        %1121 = vmatprep.subr.mxu0 0.0
        %1122 = vmatpush1.msra.mxu0 0.0
        %1123 = vmatprep.subr.mxu0 0.0
        %1124 = vmatpush1.msra.mxu0 0.0
        %1125 = vmatprep.subr.mxu0 0.0
        %1126 = vmatpush1.msra.mxu0 0.0
        %1127 = vmatprep.subr.mxu0 0.0
        %1128 = vmatpush1.msra.mxu0 0.0
        %1129 = vmatprep.subr.mxu0 0.0
        %1130 = vmatpush1.msra.mxu0 0.0
        %1131 = vmatprep.subr.mxu0 0.0
        %1132 = vmatpush1.msra.mxu0 0.0
        %1133 = vmatprep.subr.mxu0 0.0
        %1134 = vmatpush1.msra.mxu0 0.0
        %1135 = vmatprep.subr.mxu0 0.0
        %1136 = vmatpush1.msra.mxu0 0.0
        %1137 = vmatprep.subr.mxu0 0.0
        %1138 = vmatpush1.msra.mxu0 0.0
        %1139 = vmatprep.subr.mxu0 0.0
        %1140 = vmatpush1.msra.mxu0 0.0
        %1141 = vmatprep.subr.mxu0 0.0
        %1142 = vmatpush1.msra.mxu0 0.0
        %1143 = vmatprep.subr.mxu0 0.0
        %1144 = vmatpush1.msra.mxu0 0.0
        %1145 = vmatprep.subr.mxu0 0.0
        %1146 = vmatpush1.msra.mxu0 0.0
        %1147 = vmatprep.subr.mxu0 0.0
        %1148 = vmatpush1.msra.mxu0 0.0
        %1149 = vmatprep.subr.mxu0 0.0
        %1150 = vmatpush1.msra.mxu0 0.0
        %1151 = vmatprep.subr.mxu0 0.0
        %1152 = vmatpush1.msra.mxu0 0.0
        %1153 = vmatprep.subr.mxu0 0.0
        %1154 = vmatpush1.msra.mxu0 0.0
        %1155 = vmatprep.subr.mxu0 0.0
        %1156 = vmatpush1.msra.mxu0 0.0
        %1157 = vmatprep.mubr.f32.mxu0 0.0
        %1158 = vmatmul.mubr.f32.gmra.mrb[0].mxu0 %v550
        %v1159 = vpop.f32.mrb[0].mxu0
        %v1160 = vadd.f32 0.0, %v1159
        %v1161 = vpop.f32.mrb[0].mxu0
        %v1162 = vadd.f32 0.0, %v1161
        %1163 = vmatprep.mubr.f32.mxu0 0.0
        %1164 = vmatmul.mubr.f32.gmra.mrb[0].mxu0 %v553
        %v1165 = vpop.f32.mrb[0].mxu0
        %v1166 = vadd.f32 0.0, %v1165
        %v1167 = vpop.f32.mrb[0].mxu0
        %v1168 = vadd.f32 0.0, %v1167
        %1169 = vdwg.mxu0
        %v1170 = vadd.f32 %v349, %v1160
        %v1171 = vadd.f32 %v351, %v1162
        %v1172 = vadd.f32 %v355, %v1166
        %v1173 = vadd.f32 %v357, %v1168
        %v1174 = vmax.f32 %v1170, 0.0
        %v1175 = vmax.f32 %v1171, 0.0
        %v1176 = vmax.f32 %v1172, 0.0
        %v1177 = vmax.f32 %v1173, 0.0
        %1178 = vmatprep.subr.mxu0 %v1175
        %1179 = vmatpush1.msra.mxu0 %v1174
        %1180 = vmatprep.subr.mxu0 %v1177
        %1181 = vmatpush1.msra.mxu0 %v1176
        %1182 = vmatprep.subr.mxu0 0.0
        %1183 = vmatpush1.msra.mxu0 0.0
        %1184 = vmatprep.subr.mxu0 0.0
        %1185 = vmatpush1.msra.mxu0 0.0
        %1186 = vmatprep.subr.mxu0 0.0
        %1187 = vmatpush1.msra.mxu0 0.0
        %1188 = vmatprep.subr.mxu0 0.0
        %1189 = vmatpush1.msra.mxu0 0.0
        %1190 = vmatprep.subr.mxu0 0.0
        %1191 = vmatpush1.msra.mxu0 0.0
        %1192 = vmatprep.subr.mxu0 0.0
        %1193 = vmatpush1.msra.mxu0 0.0
        %1194 = vmatprep.subr.mxu0 0.0
        %1195 = vmatpush1.msra.mxu0 0.0
        %1196 = vmatprep.subr.mxu0 0.0
        %1197 = vmatpush1.msra.mxu0 0.0
        %1198 = vmatprep.subr.mxu0 0.0
        %1199 = vmatpush1.msra.mxu0 0.0
        %1200 = vmatprep.subr.mxu0 0.0
        %1201 = vmatpush1.msra.mxu0 0.0
        %1202 = vmatprep.subr.mxu0 0.0
        %1203 = vmatpush1.msra.mxu0 0.0
        %1204 = vmatprep.subr.mxu0 0.0
        %1205 = vmatpush1.msra.mxu0 0.0
        %1206 = vmatprep.subr.mxu0 0.0
        %1207 = vmatpush1.msra.mxu0 0.0
        %1208 = vmatprep.subr.mxu0 0.0
        %1209 = vmatpush1.msra.mxu0 0.0
        %1210 = vmatprep.subr.mxu0 0.0
        %1211 = vmatpush1.msra.mxu0 0.0
        %1212 = vmatprep.subr.mxu0 0.0
        %1213 = vmatpush1.msra.mxu0 0.0
        %1214 = vmatprep.subr.mxu0 0.0
        %1215 = vmatpush1.msra.mxu0 0.0
        %1216 = vmatprep.subr.mxu0 0.0
        %1217 = vmatpush1.msra.mxu0 0.0
        %1218 = vmatprep.subr.mxu0 0.0
        %1219 = vmatpush1.msra.mxu0 0.0
        %1220 = vmatprep.subr.mxu0 0.0
        %1221 = vmatpush1.msra.mxu0 0.0
        %1222 = vmatprep.subr.mxu0 0.0
        %1223 = vmatpush1.msra.mxu0 0.0
        %1224 = vmatprep.subr.mxu0 0.0
        %1225 = vmatpush1.msra.mxu0 0.0
        %1226 = vmatprep.subr.mxu0 0.0
        %1227 = vmatpush1.msra.mxu0 0.0
        %1228 = vmatprep.subr.mxu0 0.0
        %1229 = vmatpush1.msra.mxu0 0.0
        %1230 = vmatprep.subr.mxu0 0.0
        %1231 = vmatpush1.msra.mxu0 0.0
        %1232 = vmatprep.subr.mxu0 0.0
        %1233 = vmatpush1.msra.mxu0 0.0
        %1234 = vmatprep.subr.mxu0 0.0
        %1235 = vmatpush1.msra.mxu0 0.0
        %1236 = vmatprep.subr.mxu0 0.0
        %1237 = vmatpush1.msra.mxu0 0.0
        %1238 = vmatprep.subr.mxu0 0.0
        %1239 = vmatpush1.msra.mxu0 0.0
        %1240 = vmatprep.subr.mxu0 0.0
        %1241 = vmatpush1.msra.mxu0 0.0
        %1242 = vmatprep.mubr.f32.mxu0 0.0
        %1243 = vmatmul.mubr.f32.gmra.mrb[0].mxu0 %v642
        %v1244 = vpop.f32.mrb[0].mxu0
        %v1245 = vadd.f32 0.0, %v1244
        %v1246 = vpop.f32.mrb[0].mxu0
        %v1247 = vadd.f32 0.0, %v1246
        %1248 = vmatprep.mubr.f32.mxu0 0.0
        %1249 = vmatmul.mubr.f32.gmra.mrb[0].mxu0 %v645
        %v1250 = vpop.f32.mrb[0].mxu0
        %v1251 = vadd.f32 0.0, %v1250
        %v1252 = vpop.f32.mrb[0].mxu0
        %v1253 = vadd.f32 0.0, %v1252
        %1254 = vdwg.mxu0
        %v1255 = vadd.f32 %v442, %v1245
        %v1256 = vadd.f32 %v444, %v1247
        %v1257 = vadd.f32 %v448, %v1251
        %v1258 = vadd.f32 %v450, %v1253
        %v1259 = vmax.f32 %v1255, 0.0
        %v1260 = vmax.f32 %v1256, 0.0
        %v1261 = vmax.f32 %v1257, 0.0
        %v1262 = vmax.f32 %v1258, 0.0
        %1263 = vmatprep.subr.mxu0 %v1260
        %1264 = vmatpush1.msra.mxu0 %v1259
        %1265 = vmatprep.subr.mxu0 %v1262
        %1266 = vmatpush1.msra.mxu0 %v1261
        %1267 = vmatprep.subr.mxu0 %v1175
        %1268 = vmatpush1.msra.mxu0 %v1174
        %1269 = vmatprep.subr.mxu0 %v1177
        %1270 = vmatpush1.msra.mxu0 %v1176
        %1271 = vmatprep.subr.mxu0 0.0
        %1272 = vmatpush1.msra.mxu0 0.0
        %1273 = vmatprep.subr.mxu0 0.0
        %1274 = vmatpush1.msra.mxu0 0.0
        %1275 = vmatprep.subr.mxu0 0.0
        %1276 = vmatpush1.msra.mxu0 0.0
        %1277 = vmatprep.subr.mxu0 0.0
        %1278 = vmatpush1.msra.mxu0 0.0
        %1279 = vmatprep.subr.mxu0 0.0
        %1280 = vmatpush1.msra.mxu0 0.0
        %1281 = vmatprep.subr.mxu0 0.0
        %1282 = vmatpush1.msra.mxu0 0.0
        %1283 = vmatprep.subr.mxu0 0.0
        %1284 = vmatpush1.msra.mxu0 0.0
        %1285 = vmatprep.subr.mxu0 0.0
        %1286 = vmatpush1.msra.mxu0 0.0
        %1287 = vmatprep.subr.mxu0 0.0
        %1288 = vmatpush1.msra.mxu0 0.0
        %1289 = vmatprep.subr.mxu0 0.0
        %1290 = vmatpush1.msra.mxu0 0.0
        %1291 = vmatprep.subr.mxu0 0.0
        %1292 = vmatpush1.msra.mxu0 0.0
        %1293 = vmatprep.subr.mxu0 0.0
        %1294 = vmatpush1.msra.mxu0 0.0
        %1295 = vmatprep.subr.mxu0 0.0
        %1296 = vmatpush1.msra.mxu0 0.0
        %1297 = vmatprep.subr.mxu0 0.0
        %1298 = vmatpush1.msra.mxu0 0.0
        %1299 = vmatprep.subr.mxu0 0.0
        %1300 = vmatpush1.msra.mxu0 0.0
        %1301 = vmatprep.subr.mxu0 0.0
        %1302 = vmatpush1.msra.mxu0 0.0
        %1303 = vmatprep.subr.mxu0 0.0
        %1304 = vmatpush1.msra.mxu0 0.0
        %1305 = vmatprep.subr.mxu0 0.0
        %1306 = vmatpush1.msra.mxu0 0.0
        %1307 = vmatprep.subr.mxu0 0.0
        %1308 = vmatpush1.msra.mxu0 0.0
        %1309 = vmatprep.subr.mxu0 0.0
        %1310 = vmatpush1.msra.mxu0 0.0
        %1311 = vmatprep.subr.mxu0 0.0
        %1312 = vmatpush1.msra.mxu0 0.0
        %1313 = vmatprep.subr.mxu0 0.0
        %1314 = vmatpush1.msra.mxu0 0.0
        %1315 = vmatprep.subr.mxu0 0.0
        %1316 = vmatpush1.msra.mxu0 0.0
        %1317 = vmatprep.subr.mxu0 0.0
        %1318 = vmatpush1.msra.mxu0 0.0
        %1319 = vmatprep.subr.mxu0 0.0
        %1320 = vmatpush1.msra.mxu0 0.0
        %1321 = vmatprep.subr.mxu0 0.0
        %1322 = vmatpush1.msra.mxu0 0.0
        %1323 = vmatprep.subr.mxu0 0.0
        %1324 = vmatpush1.msra.mxu0 0.0
        %1325 = vmatprep.subr.mxu0 0.0
        %1326 = vmatpush1.msra.mxu0 0.0
        %1327 = vmatprep.mubr.f32.mxu0 0.0
        %1328 = vmatmul.mubr.f32.gmra.mrb[0].mxu0 %v734
        %v1329 = vpop.f32.mrb[0].mxu0
        %v1330 = vadd.f32 0.0, %v1329
        %v1331 = vpop.f32.mrb[0].mxu0
        %v1332 = vadd.f32 0.0, %v1331
        %1333 = vmatprep.mubr.f32.mxu0 0.0
        %1334 = vmatmul.mubr.f32.gmra.mrb[0].mxu0 %v737
        %v1335 = vpop.f32.mrb[0].mxu0
        %v1336 = vadd.f32 0.0, %v1335
        %v1337 = vpop.f32.mrb[0].mxu0
        %v1338 = vadd.f32 0.0, %v1337
        %1339 = vdwg.mxu0
        %v1340 = vadd.f32 %v535, %v1330
        %v1341 = vadd.f32 %v537, %v1332
        %v1342 = vadd.f32 %v541, %v1336
        %v1343 = vadd.f32 %v543, %v1338
        %v1344 = vmax.f32 %v1076, %v1174
        %v1345 = vmax.f32 %v1077, %v1175
        %v1346 = vmax.f32 %v1078, %v1176
        %v1347 = vmax.f32 %v1079, %v1177
        %v1348 = vmax.f32 %v1080, %v1259
        %v1349 = vmax.f32 %v1081, %v1260
        %v1350 = vmax.f32 %v1082, %v1261
        %v1351 = vmax.f32 %v1083, %v1262
        %v1352 = vmax.f32 %v1084, %v1340
        %v1353 = vmax.f32 %v1085, %v1341
        %v1354 = vmax.f32 %v1086, %v1342
        %v1355 = vmax.f32 %v1087, %v1343
        %s1356 = scalar_lea.vmem %s201, 48 [#allocation2]
        %v1357 = vld [vmem:[%s1356] sm:$0xff]
        %v1358 = vld [vmem:[%s1356 + $0x8] sm:$0xff]
        %v1359 = vsub.f32 %v1357, %v245
        %v1360 = vsub.f32 %v1358, %v246
        %1361 = vmatprep.subr.mxu0 %v1360
        %1362 = vmatpush1.msra.mxu0 %v1359
        %1363 = vmatprep.subr.mxu0 0.0
        %1364 = vmatpush1.msra.mxu0 0.0
        %1365 = vmatprep.subr.mxu0 0.0
        %1366 = vmatpush1.msra.mxu0 0.0
        %1367 = vmatprep.subr.mxu0 0.0
        %1368 = vmatpush1.msra.mxu0 0.0
        %1369 = vmatprep.subr.mxu0 0.0
        %1370 = vmatpush1.msra.mxu0 0.0
        %1371 = vmatprep.subr.mxu0 0.0
        %1372 = vmatpush1.msra.mxu0 0.0
        %1373 = vmatprep.subr.mxu0 0.0
        %1374 = vmatpush1.msra.mxu0 0.0
        %1375 = vmatprep.subr.mxu0 0.0
        %1376 = vmatpush1.msra.mxu0 0.0
        %1377 = vmatprep.subr.mxu0 0.0
        %1378 = vmatpush1.msra.mxu0 0.0
        %1379 = vmatprep.subr.mxu0 0.0
        %1380 = vmatpush1.msra.mxu0 0.0
        %1381 = vmatprep.subr.mxu0 0.0
        %1382 = vmatpush1.msra.mxu0 0.0
        %1383 = vmatprep.subr.mxu0 0.0
        %1384 = vmatpush1.msra.mxu0 0.0
        %1385 = vmatprep.subr.mxu0 0.0
        %1386 = vmatpush1.msra.mxu0 0.0
        %1387 = vmatprep.subr.mxu0 0.0
        %1388 = vmatpush1.msra.mxu0 0.0
        %1389 = vmatprep.subr.mxu0 0.0
        %1390 = vmatpush1.msra.mxu0 0.0
        %1391 = vmatprep.subr.mxu0 0.0
        %1392 = vmatpush1.msra.mxu0 0.0
        %1393 = vmatprep.subr.mxu0 0.0
        %1394 = vmatpush1.msra.mxu0 0.0
        %1395 = vmatprep.subr.mxu0 0.0
        %1396 = vmatpush1.msra.mxu0 0.0
        %1397 = vmatprep.subr.mxu0 0.0
        %1398 = vmatpush1.msra.mxu0 0.0
        %1399 = vmatprep.subr.mxu0 0.0
        %1400 = vmatpush1.msra.mxu0 0.0
        %1401 = vmatprep.subr.mxu0 0.0
        %1402 = vmatpush1.msra.mxu0 0.0
        %1403 = vmatprep.subr.mxu0 0.0
        %1404 = vmatpush1.msra.mxu0 0.0
        %1405 = vmatprep.subr.mxu0 0.0
        %1406 = vmatpush1.msra.mxu0 0.0
        %1407 = vmatprep.subr.mxu0 0.0
        %1408 = vmatpush1.msra.mxu0 0.0
        %1409 = vmatprep.subr.mxu0 0.0
        %1410 = vmatpush1.msra.mxu0 0.0
        %1411 = vmatprep.subr.mxu0 0.0
        %1412 = vmatpush1.msra.mxu0 0.0
        %1413 = vmatprep.subr.mxu0 0.0
        %1414 = vmatpush1.msra.mxu0 0.0
        %1415 = vmatprep.subr.mxu0 0.0
        %1416 = vmatpush1.msra.mxu0 0.0
        %1417 = vmatprep.subr.mxu0 0.0
        %1418 = vmatpush1.msra.mxu0 0.0
        %1419 = vmatprep.subr.mxu0 0.0
        %1420 = vmatpush1.msra.mxu0 0.0
        %1421 = vmatprep.subr.mxu0 0.0
        %1422 = vmatpush1.msra.mxu0 0.0
        %1423 = vmatprep.subr.mxu0 0.0
        %1424 = vmatpush1.msra.mxu0 0.0
        %1425 = vmatprep.mubr.f32.mxu0 0.0
        %1426 = vmatmul.mubr.f32.gmra.mrb[0].mxu0 %v550
        %v1427 = vpop.f32.mrb[0].mxu0
        %v1428 = vadd.f32 0.0, %v1427
        %v1429 = vpop.f32.mrb[0].mxu0
        %v1430 = vadd.f32 0.0, %v1429
        %1431 = vmatprep.mubr.f32.mxu0 0.0
        %1432 = vmatmul.mubr.f32.gmra.mrb[0].mxu0 %v553
        %v1433 = vpop.f32.mrb[0].mxu0
        %v1434 = vadd.f32 0.0, %v1433
        %v1435 = vpop.f32.mrb[0].mxu0
        %v1436 = vadd.f32 0.0, %v1435
        %1437 = vdwg.mxu0
        %v1438 = vadd.f32 %v349, %v1428
        %v1439 = vadd.f32 %v351, %v1430
        %v1440 = vadd.f32 %v355, %v1434
        %v1441 = vadd.f32 %v357, %v1436
        %v1442 = vmax.f32 %v1438, 0.0
        %v1443 = vmax.f32 %v1439, 0.0
        %v1444 = vmax.f32 %v1440, 0.0
        %v1445 = vmax.f32 %v1441, 0.0
        %1446 = vmatprep.subr.mxu0 %v1443
        %1447 = vmatpush1.msra.mxu0 %v1442
        %1448 = vmatprep.subr.mxu0 %v1445
        %1449 = vmatpush1.msra.mxu0 %v1444
        %1450 = vmatprep.subr.mxu0 0.0
        %1451 = vmatpush1.msra.mxu0 0.0
        %1452 = vmatprep.subr.mxu0 0.0
        %1453 = vmatpush1.msra.mxu0 0.0
        %1454 = vmatprep.subr.mxu0 0.0
        %1455 = vmatpush1.msra.mxu0 0.0
        %1456 = vmatprep.subr.mxu0 0.0
        %1457 = vmatpush1.msra.mxu0 0.0
        %1458 = vmatprep.subr.mxu0 0.0
        %1459 = vmatpush1.msra.mxu0 0.0
        %1460 = vmatprep.subr.mxu0 0.0
        %1461 = vmatpush1.msra.mxu0 0.0
        %1462 = vmatprep.subr.mxu0 0.0
        %1463 = vmatpush1.msra.mxu0 0.0
        %1464 = vmatprep.subr.mxu0 0.0
        %1465 = vmatpush1.msra.mxu0 0.0
        %1466 = vmatprep.subr.mxu0 0.0
        %1467 = vmatpush1.msra.mxu0 0.0
        %1468 = vmatprep.subr.mxu0 0.0
        %1469 = vmatpush1.msra.mxu0 0.0
        %1470 = vmatprep.subr.mxu0 0.0
        %1471 = vmatpush1.msra.mxu0 0.0
        %1472 = vmatprep.subr.mxu0 0.0
        %1473 = vmatpush1.msra.mxu0 0.0
        %1474 = vmatprep.subr.mxu0 0.0
        %1475 = vmatpush1.msra.mxu0 0.0
        %1476 = vmatprep.subr.mxu0 0.0
        %1477 = vmatpush1.msra.mxu0 0.0
        %1478 = vmatprep.subr.mxu0 0.0
        %1479 = vmatpush1.msra.mxu0 0.0
        %1480 = vmatprep.subr.mxu0 0.0
        %1481 = vmatpush1.msra.mxu0 0.0
        %1482 = vmatprep.subr.mxu0 0.0
        %1483 = vmatpush1.msra.mxu0 0.0
        %1484 = vmatprep.subr.mxu0 0.0
        %1485 = vmatpush1.msra.mxu0 0.0
        %1486 = vmatprep.subr.mxu0 0.0
        %1487 = vmatpush1.msra.mxu0 0.0
        %1488 = vmatprep.subr.mxu0 0.0
        %1489 = vmatpush1.msra.mxu0 0.0
        %1490 = vmatprep.subr.mxu0 0.0
        %1491 = vmatpush1.msra.mxu0 0.0
        %1492 = vmatprep.subr.mxu0 0.0
        %1493 = vmatpush1.msra.mxu0 0.0
        %1494 = vmatprep.subr.mxu0 0.0
        %1495 = vmatpush1.msra.mxu0 0.0
        %1496 = vmatprep.subr.mxu0 0.0
        %1497 = vmatpush1.msra.mxu0 0.0
        %1498 = vmatprep.subr.mxu0 0.0
        %1499 = vmatpush1.msra.mxu0 0.0
        %1500 = vmatprep.subr.mxu0 0.0
        %1501 = vmatpush1.msra.mxu0 0.0
        %1502 = vmatprep.subr.mxu0 0.0
        %1503 = vmatpush1.msra.mxu0 0.0
        %1504 = vmatprep.subr.mxu0 0.0
        %1505 = vmatpush1.msra.mxu0 0.0
        %1506 = vmatprep.subr.mxu0 0.0
        %1507 = vmatpush1.msra.mxu0 0.0
        %1508 = vmatprep.subr.mxu0 0.0
        %1509 = vmatpush1.msra.mxu0 0.0
        %1510 = vmatprep.mubr.f32.mxu0 0.0
        %1511 = vmatmul.mubr.f32.gmra.mrb[0].mxu0 %v642
        %v1512 = vpop.f32.mrb[0].mxu0
        %v1513 = vadd.f32 0.0, %v1512
        %v1514 = vpop.f32.mrb[0].mxu0
        %v1515 = vadd.f32 0.0, %v1514
        %1516 = vmatprep.mubr.f32.mxu0 0.0
        %1517 = vmatmul.mubr.f32.gmra.mrb[0].mxu0 %v645
        %v1518 = vpop.f32.mrb[0].mxu0
        %v1519 = vadd.f32 0.0, %v1518
        %v1520 = vpop.f32.mrb[0].mxu0
        %v1521 = vadd.f32 0.0, %v1520
        %1522 = vdwg.mxu0
        %v1523 = vadd.f32 %v442, %v1513
        %v1524 = vadd.f32 %v444, %v1515
        %v1525 = vadd.f32 %v448, %v1519
        %v1526 = vadd.f32 %v450, %v1521
        %v1527 = vmax.f32 %v1523, 0.0
        %v1528 = vmax.f32 %v1524, 0.0
        %v1529 = vmax.f32 %v1525, 0.0
        %v1530 = vmax.f32 %v1526, 0.0
        %1531 = vmatprep.subr.mxu0 %v1528
        %1532 = vmatpush1.msra.mxu0 %v1527
        %1533 = vmatprep.subr.mxu0 %v1530
        %1534 = vmatpush1.msra.mxu0 %v1529
        %1535 = vmatprep.subr.mxu0 %v1443
        %1536 = vmatpush1.msra.mxu0 %v1442
        %1537 = vmatprep.subr.mxu0 %v1445
        %1538 = vmatpush1.msra.mxu0 %v1444
        %1539 = vmatprep.subr.mxu0 0.0
        %1540 = vmatpush1.msra.mxu0 0.0
        %1541 = vmatprep.subr.mxu0 0.0
        %1542 = vmatpush1.msra.mxu0 0.0
        %1543 = vmatprep.subr.mxu0 0.0
        %1544 = vmatpush1.msra.mxu0 0.0
        %1545 = vmatprep.subr.mxu0 0.0
        %1546 = vmatpush1.msra.mxu0 0.0
        %1547 = vmatprep.subr.mxu0 0.0
        %1548 = vmatpush1.msra.mxu0 0.0
        %1549 = vmatprep.subr.mxu0 0.0
        %1550 = vmatpush1.msra.mxu0 0.0
        %1551 = vmatprep.subr.mxu0 0.0
        %1552 = vmatpush1.msra.mxu0 0.0
        %1553 = vmatprep.subr.mxu0 0.0
        %1554 = vmatpush1.msra.mxu0 0.0
        %1555 = vmatprep.subr.mxu0 0.0
        %1556 = vmatpush1.msra.mxu0 0.0
        %1557 = vmatprep.subr.mxu0 0.0
        %1558 = vmatpush1.msra.mxu0 0.0
        %1559 = vmatprep.subr.mxu0 0.0
        %1560 = vmatpush1.msra.mxu0 0.0
        %1561 = vmatprep.subr.mxu0 0.0
        %1562 = vmatpush1.msra.mxu0 0.0
        %1563 = vmatprep.subr.mxu0 0.0
        %1564 = vmatpush1.msra.mxu0 0.0
        %1565 = vmatprep.subr.mxu0 0.0
        %1566 = vmatpush1.msra.mxu0 0.0
        %1567 = vmatprep.subr.mxu0 0.0
        %1568 = vmatpush1.msra.mxu0 0.0
        %1569 = vmatprep.subr.mxu0 0.0
        %1570 = vmatpush1.msra.mxu0 0.0
        %1571 = vmatprep.subr.mxu0 0.0
        %1572 = vmatpush1.msra.mxu0 0.0
        %1573 = vmatprep.subr.mxu0 0.0
        %1574 = vmatpush1.msra.mxu0 0.0
        %1575 = vmatprep.subr.mxu0 0.0
        %1576 = vmatpush1.msra.mxu0 0.0
        %1577 = vmatprep.subr.mxu0 0.0
        %1578 = vmatpush1.msra.mxu0 0.0
        %1579 = vmatprep.subr.mxu0 0.0
        %1580 = vmatpush1.msra.mxu0 0.0
        %1581 = vmatprep.subr.mxu0 0.0
        %1582 = vmatpush1.msra.mxu0 0.0
        %1583 = vmatprep.subr.mxu0 0.0
        %1584 = vmatpush1.msra.mxu0 0.0
        %1585 = vmatprep.subr.mxu0 0.0
        %1586 = vmatpush1.msra.mxu0 0.0
        %1587 = vmatprep.subr.mxu0 0.0
        %1588 = vmatpush1.msra.mxu0 0.0
        %1589 = vmatprep.subr.mxu0 0.0
        %1590 = vmatpush1.msra.mxu0 0.0
        %1591 = vmatprep.subr.mxu0 0.0
        %1592 = vmatpush1.msra.mxu0 0.0
        %1593 = vmatprep.subr.mxu0 0.0
        %1594 = vmatpush1.msra.mxu0 0.0
        %1595 = vmatprep.mubr.f32.mxu0 0.0
        %1596 = vmatmul.mubr.f32.gmra.mrb[0].mxu0 %v734
        %v1597 = vpop.f32.mrb[0].mxu0
        %v1598 = vadd.f32 0.0, %v1597
        %v1599 = vpop.f32.mrb[0].mxu0
        %v1600 = vadd.f32 0.0, %v1599
        %1601 = vmatprep.mubr.f32.mxu0 0.0
        %1602 = vmatmul.mubr.f32.gmra.mrb[0].mxu0 %v737
        %v1603 = vpop.f32.mrb[0].mxu0
        %v1604 = vadd.f32 0.0, %v1603
        %v1605 = vpop.f32.mrb[0].mxu0
        %v1606 = vadd.f32 0.0, %v1605
        %1607 = vdwg.mxu0
        %v1608 = vadd.f32 %v535, %v1598
        %v1609 = vadd.f32 %v537, %v1600
        %v1610 = vadd.f32 %v541, %v1604
        %v1611 = vadd.f32 %v543, %v1606
        %v1612 = vmax.f32 %v1344, %v1442
        %v1613 = vmax.f32 %v1345, %v1443
        %v1614 = vmax.f32 %v1346, %v1444
        %v1615 = vmax.f32 %v1347, %v1445
        %v1616 = vmax.f32 %v1348, %v1527
        %v1617 = vmax.f32 %v1349, %v1528
        %v1618 = vmax.f32 %v1350, %v1529
        %v1619 = vmax.f32 %v1351, %v1530
        %v1620 = vmax.f32 %v1352, %v1608
        %v1621 = vmax.f32 %v1353, %v1609
        %v1622 = vmax.f32 %v1354, %v1610
        %v1623 = vmax.f32 %v1355, %v1611
        %s1624 = scalar_lea.vmem %s201, 64 [#allocation2]
        %v1625 = vld [vmem:[%s1624] sm:$0xff]
        %v1626 = vld [vmem:[%s1624 + $0x8] sm:$0xff]
        %v1627 = vsub.f32 %v1625, %v245
        %v1628 = vsub.f32 %v1626, %v246
        %1629 = vmatprep.subr.mxu0 %v1628
        %1630 = vmatpush1.msra.mxu0 %v1627
        %1631 = vmatprep.subr.mxu0 0.0
        %1632 = vmatpush1.msra.mxu0 0.0
        %1633 = vmatprep.subr.mxu0 0.0
        %1634 = vmatpush1.msra.mxu0 0.0
        %1635 = vmatprep.subr.mxu0 0.0
        %1636 = vmatpush1.msra.mxu0 0.0
        %1637 = vmatprep.subr.mxu0 0.0
        %1638 = vmatpush1.msra.mxu0 0.0
        %1639 = vmatprep.subr.mxu0 0.0
        %1640 = vmatpush1.msra.mxu0 0.0
        %1641 = vmatprep.subr.mxu0 0.0
        %1642 = vmatpush1.msra.mxu0 0.0
        %1643 = vmatprep.subr.mxu0 0.0
        %1644 = vmatpush1.msra.mxu0 0.0
        %1645 = vmatprep.subr.mxu0 0.0
        %1646 = vmatpush1.msra.mxu0 0.0
        %1647 = vmatprep.subr.mxu0 0.0
        %1648 = vmatpush1.msra.mxu0 0.0
        %1649 = vmatprep.subr.mxu0 0.0
        %1650 = vmatpush1.msra.mxu0 0.0
        %1651 = vmatprep.subr.mxu0 0.0
        %1652 = vmatpush1.msra.mxu0 0.0
        %1653 = vmatprep.subr.mxu0 0.0
        %1654 = vmatpush1.msra.mxu0 0.0
        %1655 = vmatprep.subr.mxu0 0.0
        %1656 = vmatpush1.msra.mxu0 0.0
        %1657 = vmatprep.subr.mxu0 0.0
        %1658 = vmatpush1.msra.mxu0 0.0
        %1659 = vmatprep.subr.mxu0 0.0
        %1660 = vmatpush1.msra.mxu0 0.0
        %1661 = vmatprep.subr.mxu0 0.0
        %1662 = vmatpush1.msra.mxu0 0.0
        %1663 = vmatprep.subr.mxu0 0.0
        %1664 = vmatpush1.msra.mxu0 0.0
        %1665 = vmatprep.subr.mxu0 0.0
        %1666 = vmatpush1.msra.mxu0 0.0
        %1667 = vmatprep.subr.mxu0 0.0
        %1668 = vmatpush1.msra.mxu0 0.0
        %1669 = vmatprep.subr.mxu0 0.0
        %1670 = vmatpush1.msra.mxu0 0.0
        %1671 = vmatprep.subr.mxu0 0.0
        %1672 = vmatpush1.msra.mxu0 0.0
        %1673 = vmatprep.subr.mxu0 0.0
        %1674 = vmatpush1.msra.mxu0 0.0
        %1675 = vmatprep.subr.mxu0 0.0
        %1676 = vmatpush1.msra.mxu0 0.0
        %1677 = vmatprep.subr.mxu0 0.0
        %1678 = vmatpush1.msra.mxu0 0.0
        %1679 = vmatprep.subr.mxu0 0.0
        %1680 = vmatpush1.msra.mxu0 0.0
        %1681 = vmatprep.subr.mxu0 0.0
        %1682 = vmatpush1.msra.mxu0 0.0
        %1683 = vmatprep.subr.mxu0 0.0
        %1684 = vmatpush1.msra.mxu0 0.0
        %1685 = vmatprep.subr.mxu0 0.0
        %1686 = vmatpush1.msra.mxu0 0.0
        %1687 = vmatprep.subr.mxu0 0.0
        %1688 = vmatpush1.msra.mxu0 0.0
        %1689 = vmatprep.subr.mxu0 0.0
        %1690 = vmatpush1.msra.mxu0 0.0
        %1691 = vmatprep.subr.mxu0 0.0
        %1692 = vmatpush1.msra.mxu0 0.0
        %1693 = vmatprep.mubr.f32.mxu0 0.0
        %1694 = vmatmul.mubr.f32.gmra.mrb[0].mxu0 %v550
        %v1695 = vpop.f32.mrb[0].mxu0
        %v1696 = vadd.f32 0.0, %v1695
        %v1697 = vpop.f32.mrb[0].mxu0
        %v1698 = vadd.f32 0.0, %v1697
        %1699 = vmatprep.mubr.f32.mxu0 0.0
        %1700 = vmatmul.mubr.f32.gmra.mrb[0].mxu0 %v553
        %v1701 = vpop.f32.mrb[0].mxu0
        %v1702 = vadd.f32 0.0, %v1701
        %v1703 = vpop.f32.mrb[0].mxu0
        %v1704 = vadd.f32 0.0, %v1703
        %1705 = vdwg.mxu0
        %v1706 = vadd.f32 %v349, %v1696
        %v1707 = vadd.f32 %v351, %v1698
        %v1708 = vadd.f32 %v355, %v1702
        %v1709 = vadd.f32 %v357, %v1704
        %v1710 = vmax.f32 %v1706, 0.0
        %v1711 = vmax.f32 %v1707, 0.0
        %v1712 = vmax.f32 %v1708, 0.0
        %v1713 = vmax.f32 %v1709, 0.0
        %1714 = vmatprep.subr.mxu0 %v1711
        %1715 = vmatpush1.msra.mxu0 %v1710
        %1716 = vmatprep.subr.mxu0 %v1713
        %1717 = vmatpush1.msra.mxu0 %v1712
        %1718 = vmatprep.subr.mxu0 0.0
        %1719 = vmatpush1.msra.mxu0 0.0
        %1720 = vmatprep.subr.mxu0 0.0
        %1721 = vmatpush1.msra.mxu0 0.0
        %1722 = vmatprep.subr.mxu0 0.0
        %1723 = vmatpush1.msra.mxu0 0.0
        %1724 = vmatprep.subr.mxu0 0.0
        %1725 = vmatpush1.msra.mxu0 0.0
        %1726 = vmatprep.subr.mxu0 0.0
        %1727 = vmatpush1.msra.mxu0 0.0
        %1728 = vmatprep.subr.mxu0 0.0
        %1729 = vmatpush1.msra.mxu0 0.0
        %1730 = vmatprep.subr.mxu0 0.0
        %1731 = vmatpush1.msra.mxu0 0.0
        %1732 = vmatprep.subr.mxu0 0.0
        %1733 = vmatpush1.msra.mxu0 0.0
        %1734 = vmatprep.subr.mxu0 0.0
        %1735 = vmatpush1.msra.mxu0 0.0
        %1736 = vmatprep.subr.mxu0 0.0
        %1737 = vmatpush1.msra.mxu0 0.0
        %1738 = vmatprep.subr.mxu0 0.0
        %1739 = vmatpush1.msra.mxu0 0.0
        %1740 = vmatprep.subr.mxu0 0.0
        %1741 = vmatpush1.msra.mxu0 0.0
        %1742 = vmatprep.subr.mxu0 0.0
        %1743 = vmatpush1.msra.mxu0 0.0
        %1744 = vmatprep.subr.mxu0 0.0
        %1745 = vmatpush1.msra.mxu0 0.0
        %1746 = vmatprep.subr.mxu0 0.0
        %1747 = vmatpush1.msra.mxu0 0.0
        %1748 = vmatprep.subr.mxu0 0.0
        %1749 = vmatpush1.msra.mxu0 0.0
        %1750 = vmatprep.subr.mxu0 0.0
        %1751 = vmatpush1.msra.mxu0 0.0
        %1752 = vmatprep.subr.mxu0 0.0
        %1753 = vmatpush1.msra.mxu0 0.0
        %1754 = vmatprep.subr.mxu0 0.0
        %1755 = vmatpush1.msra.mxu0 0.0
        %1756 = vmatprep.subr.mxu0 0.0
        %1757 = vmatpush1.msra.mxu0 0.0
        %1758 = vmatprep.subr.mxu0 0.0
        %1759 = vmatpush1.msra.mxu0 0.0
        %1760 = vmatprep.subr.mxu0 0.0
        %1761 = vmatpush1.msra.mxu0 0.0
        %1762 = vmatprep.subr.mxu0 0.0
        %1763 = vmatpush1.msra.mxu0 0.0
        %1764 = vmatprep.subr.mxu0 0.0
        %1765 = vmatpush1.msra.mxu0 0.0
        %1766 = vmatprep.subr.mxu0 0.0
        %1767 = vmatpush1.msra.mxu0 0.0
        %1768 = vmatprep.subr.mxu0 0.0
        %1769 = vmatpush1.msra.mxu0 0.0
        %1770 = vmatprep.subr.mxu0 0.0
        %1771 = vmatpush1.msra.mxu0 0.0
        %1772 = vmatprep.subr.mxu0 0.0
        %1773 = vmatpush1.msra.mxu0 0.0
        %1774 = vmatprep.subr.mxu0 0.0
        %1775 = vmatpush1.msra.mxu0 0.0
        %1776 = vmatprep.subr.mxu0 0.0
        %1777 = vmatpush1.msra.mxu0 0.0
        %1778 = vmatprep.mubr.f32.mxu0 0.0
        %1779 = vmatmul.mubr.f32.gmra.mrb[0].mxu0 %v642
        %v1780 = vpop.f32.mrb[0].mxu0
        %v1781 = vadd.f32 0.0, %v1780
        %v1782 = vpop.f32.mrb[0].mxu0
        %v1783 = vadd.f32 0.0, %v1782
        %1784 = vmatprep.mubr.f32.mxu0 0.0
        %1785 = vmatmul.mubr.f32.gmra.mrb[0].mxu0 %v645
        %v1786 = vpop.f32.mrb[0].mxu0
        %v1787 = vadd.f32 0.0, %v1786
        %v1788 = vpop.f32.mrb[0].mxu0
        %v1789 = vadd.f32 0.0, %v1788
        %1790 = vdwg.mxu0
        %v1791 = vadd.f32 %v442, %v1781
        %v1792 = vadd.f32 %v444, %v1783
        %v1793 = vadd.f32 %v448, %v1787
        %v1794 = vadd.f32 %v450, %v1789
        %v1795 = vmax.f32 %v1791, 0.0
        %v1796 = vmax.f32 %v1792, 0.0
        %v1797 = vmax.f32 %v1793, 0.0
        %v1798 = vmax.f32 %v1794, 0.0
        %1799 = vmatprep.subr.mxu0 %v1796
        %1800 = vmatpush1.msra.mxu0 %v1795
        %1801 = vmatprep.subr.mxu0 %v1798
        %1802 = vmatpush1.msra.mxu0 %v1797
        %1803 = vmatprep.subr.mxu0 %v1711
        %1804 = vmatpush1.msra.mxu0 %v1710
        %1805 = vmatprep.subr.mxu0 %v1713
        %1806 = vmatpush1.msra.mxu0 %v1712
        %1807 = vmatprep.subr.mxu0 0.0
        %1808 = vmatpush1.msra.mxu0 0.0
        %1809 = vmatprep.subr.mxu0 0.0
        %1810 = vmatpush1.msra.mxu0 0.0
        %1811 = vmatprep.subr.mxu0 0.0
        %1812 = vmatpush1.msra.mxu0 0.0
        %1813 = vmatprep.subr.mxu0 0.0
        %1814 = vmatpush1.msra.mxu0 0.0
        %1815 = vmatprep.subr.mxu0 0.0
        %1816 = vmatpush1.msra.mxu0 0.0
        %1817 = vmatprep.subr.mxu0 0.0
        %1818 = vmatpush1.msra.mxu0 0.0
        %1819 = vmatprep.subr.mxu0 0.0
        %1820 = vmatpush1.msra.mxu0 0.0
        %1821 = vmatprep.subr.mxu0 0.0
        %1822 = vmatpush1.msra.mxu0 0.0
        %1823 = vmatprep.subr.mxu0 0.0
        %1824 = vmatpush1.msra.mxu0 0.0
        %1825 = vmatprep.subr.mxu0 0.0
        %1826 = vmatpush1.msra.mxu0 0.0
        %1827 = vmatprep.subr.mxu0 0.0
        %1828 = vmatpush1.msra.mxu0 0.0
        %1829 = vmatprep.subr.mxu0 0.0
        %1830 = vmatpush1.msra.mxu0 0.0
        %1831 = vmatprep.subr.mxu0 0.0
        %1832 = vmatpush1.msra.mxu0 0.0
        %1833 = vmatprep.subr.mxu0 0.0
        %1834 = vmatpush1.msra.mxu0 0.0
        %1835 = vmatprep.subr.mxu0 0.0
        %1836 = vmatpush1.msra.mxu0 0.0
        %1837 = vmatprep.subr.mxu0 0.0
        %1838 = vmatpush1.msra.mxu0 0.0
        %1839 = vmatprep.subr.mxu0 0.0
        %1840 = vmatpush1.msra.mxu0 0.0
        %1841 = vmatprep.subr.mxu0 0.0
        %1842 = vmatpush1.msra.mxu0 0.0
        %1843 = vmatprep.subr.mxu0 0.0
        %1844 = vmatpush1.msra.mxu0 0.0
        %1845 = vmatprep.subr.mxu0 0.0
        %1846 = vmatpush1.msra.mxu0 0.0
        %1847 = vmatprep.subr.mxu0 0.0
        %1848 = vmatpush1.msra.mxu0 0.0
        %1849 = vmatprep.subr.mxu0 0.0
        %1850 = vmatpush1.msra.mxu0 0.0
        %1851 = vmatprep.subr.mxu0 0.0
        %1852 = vmatpush1.msra.mxu0 0.0
        %1853 = vmatprep.subr.mxu0 0.0
        %1854 = vmatpush1.msra.mxu0 0.0
        %1855 = vmatprep.subr.mxu0 0.0
        %1856 = vmatpush1.msra.mxu0 0.0
        %1857 = vmatprep.subr.mxu0 0.0
        %1858 = vmatpush1.msra.mxu0 0.0
        %1859 = vmatprep.subr.mxu0 0.0
        %1860 = vmatpush1.msra.mxu0 0.0
        %1861 = vmatprep.subr.mxu0 0.0
        %1862 = vmatpush1.msra.mxu0 0.0
        %1863 = vmatprep.mubr.f32.mxu0 0.0
        %1864 = vmatmul.mubr.f32.gmra.mrb[0].mxu0 %v734
        %v1865 = vpop.f32.mrb[0].mxu0
        %v1866 = vadd.f32 0.0, %v1865
        %v1867 = vpop.f32.mrb[0].mxu0
        %v1868 = vadd.f32 0.0, %v1867
        %1869 = vmatprep.mubr.f32.mxu0 0.0
        %1870 = vmatmul.mubr.f32.gmra.mrb[0].mxu0 %v737
        %v1871 = vpop.f32.mrb[0].mxu0
        %v1872 = vadd.f32 0.0, %v1871
        %v1873 = vpop.f32.mrb[0].mxu0
        %v1874 = vadd.f32 0.0, %v1873
        %1875 = vdwg.mxu0
        %v1876 = vadd.f32 %v535, %v1866
        %v1877 = vadd.f32 %v537, %v1868
        %v1878 = vadd.f32 %v541, %v1872
        %v1879 = vadd.f32 %v543, %v1874
        %v1880 = vmax.f32 %v1612, %v1710
        %v1881 = vmax.f32 %v1613, %v1711
        %v1882 = vmax.f32 %v1614, %v1712
        %v1883 = vmax.f32 %v1615, %v1713
        %v1884 = vmax.f32 %v1616, %v1795
        %v1885 = vmax.f32 %v1617, %v1796
        %v1886 = vmax.f32 %v1618, %v1797
        %v1887 = vmax.f32 %v1619, %v1798
        %v1888 = vmax.f32 %v1620, %v1876
        %v1889 = vmax.f32 %v1621, %v1877
        %v1890 = vmax.f32 %v1622, %v1878
        %v1891 = vmax.f32 %v1623, %v1879
        %s1892 = scalar_lea.vmem %s201, 80 [#allocation2]
        %v1893 = vld [vmem:[%s1892] sm:$0xff]
        %v1894 = vld [vmem:[%s1892 + $0x8] sm:$0xff]
        %v1895 = vsub.f32 %v1893, %v245
        %v1896 = vsub.f32 %v1894, %v246
        %1897 = vmatprep.subr.mxu0 %v1896
        %1898 = vmatpush1.msra.mxu0 %v1895
        %1899 = vmatprep.subr.mxu0 0.0
        %1900 = vmatpush1.msra.mxu0 0.0
        %1901 = vmatprep.subr.mxu0 0.0
        %1902 = vmatpush1.msra.mxu0 0.0
        %1903 = vmatprep.subr.mxu0 0.0
        %1904 = vmatpush1.msra.mxu0 0.0
        %1905 = vmatprep.subr.mxu0 0.0
        %1906 = vmatpush1.msra.mxu0 0.0
        %1907 = vmatprep.subr.mxu0 0.0
        %1908 = vmatpush1.msra.mxu0 0.0
        %1909 = vmatprep.subr.mxu0 0.0
        %1910 = vmatpush1.msra.mxu0 0.0
        %1911 = vmatprep.subr.mxu0 0.0
        %1912 = vmatpush1.msra.mxu0 0.0
        %1913 = vmatprep.subr.mxu0 0.0
        %1914 = vmatpush1.msra.mxu0 0.0
        %1915 = vmatprep.subr.mxu0 0.0
        %1916 = vmatpush1.msra.mxu0 0.0
        %1917 = vmatprep.subr.mxu0 0.0
        %1918 = vmatpush1.msra.mxu0 0.0
        %1919 = vmatprep.subr.mxu0 0.0
        %1920 = vmatpush1.msra.mxu0 0.0
        %1921 = vmatprep.subr.mxu0 0.0
        %1922 = vmatpush1.msra.mxu0 0.0
        %1923 = vmatprep.subr.mxu0 0.0
        %1924 = vmatpush1.msra.mxu0 0.0
        %1925 = vmatprep.subr.mxu0 0.0
        %1926 = vmatpush1.msra.mxu0 0.0
        %1927 = vmatprep.subr.mxu0 0.0
        %1928 = vmatpush1.msra.mxu0 0.0
        %1929 = vmatprep.subr.mxu0 0.0
        %1930 = vmatpush1.msra.mxu0 0.0
        %1931 = vmatprep.subr.mxu0 0.0
        %1932 = vmatpush1.msra.mxu0 0.0
        %1933 = vmatprep.subr.mxu0 0.0
        %1934 = vmatpush1.msra.mxu0 0.0
        %1935 = vmatprep.subr.mxu0 0.0
        %1936 = vmatpush1.msra.mxu0 0.0
        %1937 = vmatprep.subr.mxu0 0.0
        %1938 = vmatpush1.msra.mxu0 0.0
        %1939 = vmatprep.subr.mxu0 0.0
        %1940 = vmatpush1.msra.mxu0 0.0
        %1941 = vmatprep.subr.mxu0 0.0
        %1942 = vmatpush1.msra.mxu0 0.0
        %1943 = vmatprep.subr.mxu0 0.0
        %1944 = vmatpush1.msra.mxu0 0.0
        %1945 = vmatprep.subr.mxu0 0.0
        %1946 = vmatpush1.msra.mxu0 0.0
        %1947 = vmatprep.subr.mxu0 0.0
        %1948 = vmatpush1.msra.mxu0 0.0
        %1949 = vmatprep.subr.mxu0 0.0
        %1950 = vmatpush1.msra.mxu0 0.0
        %1951 = vmatprep.subr.mxu0 0.0
        %1952 = vmatpush1.msra.mxu0 0.0
        %1953 = vmatprep.subr.mxu0 0.0
        %1954 = vmatpush1.msra.mxu0 0.0
        %1955 = vmatprep.subr.mxu0 0.0
        %1956 = vmatpush1.msra.mxu0 0.0
        %1957 = vmatprep.subr.mxu0 0.0
        %1958 = vmatpush1.msra.mxu0 0.0
        %1959 = vmatprep.subr.mxu0 0.0
        %1960 = vmatpush1.msra.mxu0 0.0
        %1961 = vmatprep.mubr.f32.mxu0 0.0
        %1962 = vmatmul.mubr.f32.gmra.mrb[0].mxu0 %v550
        %v1963 = vpop.f32.mrb[0].mxu0
        %v1964 = vadd.f32 0.0, %v1963
        %v1965 = vpop.f32.mrb[0].mxu0
        %v1966 = vadd.f32 0.0, %v1965
        %1967 = vmatprep.mubr.f32.mxu0 0.0
        %1968 = vmatmul.mubr.f32.gmra.mrb[0].mxu0 %v553
        %v1969 = vpop.f32.mrb[0].mxu0
        %v1970 = vadd.f32 0.0, %v1969
        %v1971 = vpop.f32.mrb[0].mxu0
        %v1972 = vadd.f32 0.0, %v1971
        %1973 = vdwg.mxu0
        %v1974 = vadd.f32 %v349, %v1964
        %v1975 = vadd.f32 %v351, %v1966
        %v1976 = vadd.f32 %v355, %v1970
        %v1977 = vadd.f32 %v357, %v1972
        %v1978 = vmax.f32 %v1974, 0.0
        %v1979 = vmax.f32 %v1975, 0.0
        %v1980 = vmax.f32 %v1976, 0.0
        %v1981 = vmax.f32 %v1977, 0.0
        %1982 = vmatprep.subr.mxu0 %v1979
        %1983 = vmatpush1.msra.mxu0 %v1978
        %1984 = vmatprep.subr.mxu0 %v1981
        %1985 = vmatpush1.msra.mxu0 %v1980
        %1986 = vmatprep.subr.mxu0 0.0
        %1987 = vmatpush1.msra.mxu0 0.0
        %1988 = vmatprep.subr.mxu0 0.0
        %1989 = vmatpush1.msra.mxu0 0.0
        %1990 = vmatprep.subr.mxu0 0.0
        %1991 = vmatpush1.msra.mxu0 0.0
        %1992 = vmatprep.subr.mxu0 0.0
        %1993 = vmatpush1.msra.mxu0 0.0
        %1994 = vmatprep.subr.mxu0 0.0
        %1995 = vmatpush1.msra.mxu0 0.0
        %1996 = vmatprep.subr.mxu0 0.0
        %1997 = vmatpush1.msra.mxu0 0.0
        %1998 = vmatprep.subr.mxu0 0.0
        %1999 = vmatpush1.msra.mxu0 0.0
        %2000 = vmatprep.subr.mxu0 0.0
        %2001 = vmatpush1.msra.mxu0 0.0
        %2002 = vmatprep.subr.mxu0 0.0
        %2003 = vmatpush1.msra.mxu0 0.0
        %2004 = vmatprep.subr.mxu0 0.0
        %2005 = vmatpush1.msra.mxu0 0.0
        %2006 = vmatprep.subr.mxu0 0.0
        %2007 = vmatpush1.msra.mxu0 0.0
        %2008 = vmatprep.subr.mxu0 0.0
        %2009 = vmatpush1.msra.mxu0 0.0
        %2010 = vmatprep.subr.mxu0 0.0
        %2011 = vmatpush1.msra.mxu0 0.0
        %2012 = vmatprep.subr.mxu0 0.0
        %2013 = vmatpush1.msra.mxu0 0.0
        %2014 = vmatprep.subr.mxu0 0.0
        %2015 = vmatpush1.msra.mxu0 0.0
        %2016 = vmatprep.subr.mxu0 0.0
        %2017 = vmatpush1.msra.mxu0 0.0
        %2018 = vmatprep.subr.mxu0 0.0
        %2019 = vmatpush1.msra.mxu0 0.0
        %2020 = vmatprep.subr.mxu0 0.0
        %2021 = vmatpush1.msra.mxu0 0.0
        %2022 = vmatprep.subr.mxu0 0.0
        %2023 = vmatpush1.msra.mxu0 0.0
        %2024 = vmatprep.subr.mxu0 0.0
        %2025 = vmatpush1.msra.mxu0 0.0
        %2026 = vmatprep.subr.mxu0 0.0
        %2027 = vmatpush1.msra.mxu0 0.0
        %2028 = vmatprep.subr.mxu0 0.0
        %2029 = vmatpush1.msra.mxu0 0.0
        %2030 = vmatprep.subr.mxu0 0.0
        %2031 = vmatpush1.msra.mxu0 0.0
        %2032 = vmatprep.subr.mxu0 0.0
        %2033 = vmatpush1.msra.mxu0 0.0
        %2034 = vmatprep.subr.mxu0 0.0
        %2035 = vmatpush1.msra.mxu0 0.0
        %2036 = vmatprep.subr.mxu0 0.0
        %2037 = vmatpush1.msra.mxu0 0.0
        %2038 = vmatprep.subr.mxu0 0.0
        %2039 = vmatpush1.msra.mxu0 0.0
        %2040 = vmatprep.subr.mxu0 0.0
        %2041 = vmatpush1.msra.mxu0 0.0
        %2042 = vmatprep.subr.mxu0 0.0
        %2043 = vmatpush1.msra.mxu0 0.0
        %2044 = vmatprep.subr.mxu0 0.0
        %2045 = vmatpush1.msra.mxu0 0.0
        %2046 = vmatprep.mubr.f32.mxu0 0.0
        %2047 = vmatmul.mubr.f32.gmra.mrb[0].mxu0 %v642
        %v2048 = vpop.f32.mrb[0].mxu0
        %v2049 = vadd.f32 0.0, %v2048
        %v2050 = vpop.f32.mrb[0].mxu0
        %v2051 = vadd.f32 0.0, %v2050
        %2052 = vmatprep.mubr.f32.mxu0 0.0
        %2053 = vmatmul.mubr.f32.gmra.mrb[0].mxu0 %v645
        %v2054 = vpop.f32.mrb[0].mxu0
        %v2055 = vadd.f32 0.0, %v2054
        %v2056 = vpop.f32.mrb[0].mxu0
        %v2057 = vadd.f32 0.0, %v2056
        %2058 = vdwg.mxu0
        %v2059 = vadd.f32 %v442, %v2049
        %v2060 = vadd.f32 %v444, %v2051
        %v2061 = vadd.f32 %v448, %v2055
        %v2062 = vadd.f32 %v450, %v2057
        %v2063 = vmax.f32 %v2059, 0.0
        %v2064 = vmax.f32 %v2060, 0.0
        %v2065 = vmax.f32 %v2061, 0.0
        %v2066 = vmax.f32 %v2062, 0.0
        %2067 = vmatprep.subr.mxu0 %v2064
        %2068 = vmatpush1.msra.mxu0 %v2063
        %2069 = vmatprep.subr.mxu0 %v2066
        %2070 = vmatpush1.msra.mxu0 %v2065
        %2071 = vmatprep.subr.mxu0 %v1979
        %2072 = vmatpush1.msra.mxu0 %v1978
        %2073 = vmatprep.subr.mxu0 %v1981
        %2074 = vmatpush1.msra.mxu0 %v1980
        %2075 = vmatprep.subr.mxu0 0.0
        %2076 = vmatpush1.msra.mxu0 0.0
        %2077 = vmatprep.subr.mxu0 0.0
        %2078 = vmatpush1.msra.mxu0 0.0
        %2079 = vmatprep.subr.mxu0 0.0
        %2080 = vmatpush1.msra.mxu0 0.0
        %2081 = vmatprep.subr.mxu0 0.0
        %2082 = vmatpush1.msra.mxu0 0.0
        %2083 = vmatprep.subr.mxu0 0.0
        %2084 = vmatpush1.msra.mxu0 0.0
        %2085 = vmatprep.subr.mxu0 0.0
        %2086 = vmatpush1.msra.mxu0 0.0
        %2087 = vmatprep.subr.mxu0 0.0
        %2088 = vmatpush1.msra.mxu0 0.0
        %2089 = vmatprep.subr.mxu0 0.0
        %2090 = vmatpush1.msra.mxu0 0.0
        %2091 = vmatprep.subr.mxu0 0.0
        %2092 = vmatpush1.msra.mxu0 0.0
        %2093 = vmatprep.subr.mxu0 0.0
        %2094 = vmatpush1.msra.mxu0 0.0
        %2095 = vmatprep.subr.mxu0 0.0
        %2096 = vmatpush1.msra.mxu0 0.0
        %2097 = vmatprep.subr.mxu0 0.0
        %2098 = vmatpush1.msra.mxu0 0.0
        %2099 = vmatprep.subr.mxu0 0.0
        %2100 = vmatpush1.msra.mxu0 0.0
        %2101 = vmatprep.subr.mxu0 0.0
        %2102 = vmatpush1.msra.mxu0 0.0
        %2103 = vmatprep.subr.mxu0 0.0
        %2104 = vmatpush1.msra.mxu0 0.0
        %2105 = vmatprep.subr.mxu0 0.0
        %2106 = vmatpush1.msra.mxu0 0.0
        %2107 = vmatprep.subr.mxu0 0.0
        %2108 = vmatpush1.msra.mxu0 0.0
        %2109 = vmatprep.subr.mxu0 0.0
        %2110 = vmatpush1.msra.mxu0 0.0
        %2111 = vmatprep.subr.mxu0 0.0
        %2112 = vmatpush1.msra.mxu0 0.0
        %2113 = vmatprep.subr.mxu0 0.0
        %2114 = vmatpush1.msra.mxu0 0.0
        %2115 = vmatprep.subr.mxu0 0.0
        %2116 = vmatpush1.msra.mxu0 0.0
        %2117 = vmatprep.subr.mxu0 0.0
        %2118 = vmatpush1.msra.mxu0 0.0
        %2119 = vmatprep.subr.mxu0 0.0
        %2120 = vmatpush1.msra.mxu0 0.0
        %2121 = vmatprep.subr.mxu0 0.0
        %2122 = vmatpush1.msra.mxu0 0.0
        %2123 = vmatprep.subr.mxu0 0.0
        %2124 = vmatpush1.msra.mxu0 0.0
        %2125 = vmatprep.subr.mxu0 0.0
        %2126 = vmatpush1.msra.mxu0 0.0
        %2127 = vmatprep.subr.mxu0 0.0
        %2128 = vmatpush1.msra.mxu0 0.0
        %2129 = vmatprep.subr.mxu0 0.0
        %2130 = vmatpush1.msra.mxu0 0.0
        %2131 = vmatprep.mubr.f32.mxu0 0.0
        %2132 = vmatmul.mubr.f32.gmra.mrb[0].mxu0 %v734
        %v2133 = vpop.f32.mrb[0].mxu0
        %v2134 = vadd.f32 0.0, %v2133
        %v2135 = vpop.f32.mrb[0].mxu0
        %v2136 = vadd.f32 0.0, %v2135
        %2137 = vmatprep.mubr.f32.mxu0 0.0
        %2138 = vmatmul.mubr.f32.gmra.mrb[0].mxu0 %v737
        %v2139 = vpop.f32.mrb[0].mxu0
        %v2140 = vadd.f32 0.0, %v2139
        %v2141 = vpop.f32.mrb[0].mxu0
        %v2142 = vadd.f32 0.0, %v2141
        %2143 = vdwg.mxu0
        %v2144 = vadd.f32 %v535, %v2134
        %v2145 = vadd.f32 %v537, %v2136
        %v2146 = vadd.f32 %v541, %v2140
        %v2147 = vadd.f32 %v543, %v2142
        %v2148 = vmax.f32 %v1880, %v1978
        %v2149 = vmax.f32 %v1881, %v1979
        %v2150 = vmax.f32 %v1882, %v1980
        %v2151 = vmax.f32 %v1883, %v1981
        %v2152 = vmax.f32 %v1884, %v2063
        %v2153 = vmax.f32 %v1885, %v2064
        %v2154 = vmax.f32 %v1886, %v2065
        %v2155 = vmax.f32 %v1887, %v2066
        %v2156 = vmax.f32 %v1888, %v2144
        %v2157 = vmax.f32 %v1889, %v2145
        %v2158 = vmax.f32 %v1890, %v2146
        %v2159 = vmax.f32 %v1891, %v2147
        %s2160 = scalar_lea.vmem %s201, 96 [#allocation2]
        %v2161 = vld [vmem:[%s2160] sm:$0xff]
        %v2162 = vld [vmem:[%s2160 + $0x8] sm:$0xff]
        %v2163 = vsub.f32 %v2161, %v245
        %v2164 = vsub.f32 %v2162, %v246
        %2165 = vmatprep.subr.mxu0 %v2164
        %2166 = vmatpush1.msra.mxu0 %v2163
        %2167 = vmatprep.subr.mxu0 0.0
        %2168 = vmatpush1.msra.mxu0 0.0
        %2169 = vmatprep.subr.mxu0 0.0
        %2170 = vmatpush1.msra.mxu0 0.0
        %2171 = vmatprep.subr.mxu0 0.0
        %2172 = vmatpush1.msra.mxu0 0.0
        %2173 = vmatprep.subr.mxu0 0.0
        %2174 = vmatpush1.msra.mxu0 0.0
        %2175 = vmatprep.subr.mxu0 0.0
        %2176 = vmatpush1.msra.mxu0 0.0
        %2177 = vmatprep.subr.mxu0 0.0
        %2178 = vmatpush1.msra.mxu0 0.0
        %2179 = vmatprep.subr.mxu0 0.0
        %2180 = vmatpush1.msra.mxu0 0.0
        %2181 = vmatprep.subr.mxu0 0.0
        %2182 = vmatpush1.msra.mxu0 0.0
        %2183 = vmatprep.subr.mxu0 0.0
        %2184 = vmatpush1.msra.mxu0 0.0
        %2185 = vmatprep.subr.mxu0 0.0
        %2186 = vmatpush1.msra.mxu0 0.0
        %2187 = vmatprep.subr.mxu0 0.0
        %2188 = vmatpush1.msra.mxu0 0.0
        %2189 = vmatprep.subr.mxu0 0.0
        %2190 = vmatpush1.msra.mxu0 0.0
        %2191 = vmatprep.subr.mxu0 0.0
        %2192 = vmatpush1.msra.mxu0 0.0
        %2193 = vmatprep.subr.mxu0 0.0
        %2194 = vmatpush1.msra.mxu0 0.0
        %2195 = vmatprep.subr.mxu0 0.0
        %2196 = vmatpush1.msra.mxu0 0.0
        %2197 = vmatprep.subr.mxu0 0.0
        %2198 = vmatpush1.msra.mxu0 0.0
        %2199 = vmatprep.subr.mxu0 0.0
        %2200 = vmatpush1.msra.mxu0 0.0
        %2201 = vmatprep.subr.mxu0 0.0
        %2202 = vmatpush1.msra.mxu0 0.0
        %2203 = vmatprep.subr.mxu0 0.0
        %2204 = vmatpush1.msra.mxu0 0.0
        %2205 = vmatprep.subr.mxu0 0.0
        %2206 = vmatpush1.msra.mxu0 0.0
        %2207 = vmatprep.subr.mxu0 0.0
        %2208 = vmatpush1.msra.mxu0 0.0
        %2209 = vmatprep.subr.mxu0 0.0
        %2210 = vmatpush1.msra.mxu0 0.0
        %2211 = vmatprep.subr.mxu0 0.0
        %2212 = vmatpush1.msra.mxu0 0.0
        %2213 = vmatprep.subr.mxu0 0.0
        %2214 = vmatpush1.msra.mxu0 0.0
        %2215 = vmatprep.subr.mxu0 0.0
        %2216 = vmatpush1.msra.mxu0 0.0
        %2217 = vmatprep.subr.mxu0 0.0
        %2218 = vmatpush1.msra.mxu0 0.0
        %2219 = vmatprep.subr.mxu0 0.0
        %2220 = vmatpush1.msra.mxu0 0.0
        %2221 = vmatprep.subr.mxu0 0.0
        %2222 = vmatpush1.msra.mxu0 0.0
        %2223 = vmatprep.subr.mxu0 0.0
        %2224 = vmatpush1.msra.mxu0 0.0
        %2225 = vmatprep.subr.mxu0 0.0
        %2226 = vmatpush1.msra.mxu0 0.0
        %2227 = vmatprep.subr.mxu0 0.0
        %2228 = vmatpush1.msra.mxu0 0.0
        %2229 = vmatprep.mubr.f32.mxu0 0.0
        %2230 = vmatmul.mubr.f32.gmra.mrb[0].mxu0 %v550
        %v2231 = vpop.f32.mrb[0].mxu0
        %v2232 = vadd.f32 0.0, %v2231
        %v2233 = vpop.f32.mrb[0].mxu0
        %v2234 = vadd.f32 0.0, %v2233
        %2235 = vmatprep.mubr.f32.mxu0 0.0
        %2236 = vmatmul.mubr.f32.gmra.mrb[0].mxu0 %v553
        %v2237 = vpop.f32.mrb[0].mxu0
        %v2238 = vadd.f32 0.0, %v2237
        %v2239 = vpop.f32.mrb[0].mxu0
        %v2240 = vadd.f32 0.0, %v2239
        %2241 = vdwg.mxu0
        %v2242 = vadd.f32 %v349, %v2232
        %v2243 = vadd.f32 %v351, %v2234
        %v2244 = vadd.f32 %v355, %v2238
        %v2245 = vadd.f32 %v357, %v2240
        %v2246 = vmax.f32 %v2242, 0.0
        %v2247 = vmax.f32 %v2243, 0.0
        %v2248 = vmax.f32 %v2244, 0.0
        %v2249 = vmax.f32 %v2245, 0.0
        %2250 = vmatprep.subr.mxu0 %v2247
        %2251 = vmatpush1.msra.mxu0 %v2246
        %2252 = vmatprep.subr.mxu0 %v2249
        %2253 = vmatpush1.msra.mxu0 %v2248
        %2254 = vmatprep.subr.mxu0 0.0
        %2255 = vmatpush1.msra.mxu0 0.0
        %2256 = vmatprep.subr.mxu0 0.0
        %2257 = vmatpush1.msra.mxu0 0.0
        %2258 = vmatprep.subr.mxu0 0.0
        %2259 = vmatpush1.msra.mxu0 0.0
        %2260 = vmatprep.subr.mxu0 0.0
        %2261 = vmatpush1.msra.mxu0 0.0
        %2262 = vmatprep.subr.mxu0 0.0
        %2263 = vmatpush1.msra.mxu0 0.0
        %2264 = vmatprep.subr.mxu0 0.0
        %2265 = vmatpush1.msra.mxu0 0.0
        %2266 = vmatprep.subr.mxu0 0.0
        %2267 = vmatpush1.msra.mxu0 0.0
        %2268 = vmatprep.subr.mxu0 0.0
        %2269 = vmatpush1.msra.mxu0 0.0
        %2270 = vmatprep.subr.mxu0 0.0
        %2271 = vmatpush1.msra.mxu0 0.0
        %2272 = vmatprep.subr.mxu0 0.0
        %2273 = vmatpush1.msra.mxu0 0.0
        %2274 = vmatprep.subr.mxu0 0.0
        %2275 = vmatpush1.msra.mxu0 0.0
        %2276 = vmatprep.subr.mxu0 0.0
        %2277 = vmatpush1.msra.mxu0 0.0
        %2278 = vmatprep.subr.mxu0 0.0
        %2279 = vmatpush1.msra.mxu0 0.0
        %2280 = vmatprep.subr.mxu0 0.0
        %2281 = vmatpush1.msra.mxu0 0.0
        %2282 = vmatprep.subr.mxu0 0.0
        %2283 = vmatpush1.msra.mxu0 0.0
        %2284 = vmatprep.subr.mxu0 0.0
        %2285 = vmatpush1.msra.mxu0 0.0
        %2286 = vmatprep.subr.mxu0 0.0
        %2287 = vmatpush1.msra.mxu0 0.0
        %2288 = vmatprep.subr.mxu0 0.0
        %2289 = vmatpush1.msra.mxu0 0.0
        %2290 = vmatprep.subr.mxu0 0.0
        %2291 = vmatpush1.msra.mxu0 0.0
        %2292 = vmatprep.subr.mxu0 0.0
        %2293 = vmatpush1.msra.mxu0 0.0
        %2294 = vmatprep.subr.mxu0 0.0
        %2295 = vmatpush1.msra.mxu0 0.0
        %2296 = vmatprep.subr.mxu0 0.0
        %2297 = vmatpush1.msra.mxu0 0.0
        %2298 = vmatprep.subr.mxu0 0.0
        %2299 = vmatpush1.msra.mxu0 0.0
        %2300 = vmatprep.subr.mxu0 0.0
        %2301 = vmatpush1.msra.mxu0 0.0
        %2302 = vmatprep.subr.mxu0 0.0
        %2303 = vmatpush1.msra.mxu0 0.0
        %2304 = vmatprep.subr.mxu0 0.0
        %2305 = vmatpush1.msra.mxu0 0.0
        %2306 = vmatprep.subr.mxu0 0.0
        %2307 = vmatpush1.msra.mxu0 0.0
        %2308 = vmatprep.subr.mxu0 0.0
        %2309 = vmatpush1.msra.mxu0 0.0
        %2310 = vmatprep.subr.mxu0 0.0
        %2311 = vmatpush1.msra.mxu0 0.0
        %2312 = vmatprep.subr.mxu0 0.0
        %2313 = vmatpush1.msra.mxu0 0.0
        %2314 = vmatprep.mubr.f32.mxu0 0.0
        %2315 = vmatmul.mubr.f32.gmra.mrb[0].mxu0 %v642
        %v2316 = vpop.f32.mrb[0].mxu0
        %v2317 = vadd.f32 0.0, %v2316
        %v2318 = vpop.f32.mrb[0].mxu0
        %v2319 = vadd.f32 0.0, %v2318
        %2320 = vmatprep.mubr.f32.mxu0 0.0
        %2321 = vmatmul.mubr.f32.gmra.mrb[0].mxu0 %v645
        %v2322 = vpop.f32.mrb[0].mxu0
        %v2323 = vadd.f32 0.0, %v2322
        %v2324 = vpop.f32.mrb[0].mxu0
        %v2325 = vadd.f32 0.0, %v2324
        %2326 = vdwg.mxu0
        %v2327 = vadd.f32 %v442, %v2317
        %v2328 = vadd.f32 %v444, %v2319
        %v2329 = vadd.f32 %v448, %v2323
        %v2330 = vadd.f32 %v450, %v2325
        %v2331 = vmax.f32 %v2327, 0.0
        %v2332 = vmax.f32 %v2328, 0.0
        %v2333 = vmax.f32 %v2329, 0.0
        %v2334 = vmax.f32 %v2330, 0.0
        %2335 = vmatprep.subr.mxu0 %v2332
        %2336 = vmatpush1.msra.mxu0 %v2331
        %2337 = vmatprep.subr.mxu0 %v2334
        %2338 = vmatpush1.msra.mxu0 %v2333
        %2339 = vmatprep.subr.mxu0 %v2247
        %2340 = vmatpush1.msra.mxu0 %v2246
        %2341 = vmatprep.subr.mxu0 %v2249
        %2342 = vmatpush1.msra.mxu0 %v2248
        %2343 = vmatprep.subr.mxu0 0.0
        %2344 = vmatpush1.msra.mxu0 0.0
        %2345 = vmatprep.subr.mxu0 0.0
        %2346 = vmatpush1.msra.mxu0 0.0
        %2347 = vmatprep.subr.mxu0 0.0
        %2348 = vmatpush1.msra.mxu0 0.0
        %2349 = vmatprep.subr.mxu0 0.0
        %2350 = vmatpush1.msra.mxu0 0.0
        %2351 = vmatprep.subr.mxu0 0.0
        %2352 = vmatpush1.msra.mxu0 0.0
        %2353 = vmatprep.subr.mxu0 0.0
        %2354 = vmatpush1.msra.mxu0 0.0
        %2355 = vmatprep.subr.mxu0 0.0
        %2356 = vmatpush1.msra.mxu0 0.0
        %2357 = vmatprep.subr.mxu0 0.0
        %2358 = vmatpush1.msra.mxu0 0.0
        %2359 = vmatprep.subr.mxu0 0.0
        %2360 = vmatpush1.msra.mxu0 0.0
        %2361 = vmatprep.subr.mxu0 0.0
        %2362 = vmatpush1.msra.mxu0 0.0
        %2363 = vmatprep.subr.mxu0 0.0
        %2364 = vmatpush1.msra.mxu0 0.0
        %2365 = vmatprep.subr.mxu0 0.0
        %2366 = vmatpush1.msra.mxu0 0.0
        %2367 = vmatprep.subr.mxu0 0.0
        %2368 = vmatpush1.msra.mxu0 0.0
        %2369 = vmatprep.subr.mxu0 0.0
        %2370 = vmatpush1.msra.mxu0 0.0
        %2371 = vmatprep.subr.mxu0 0.0
        %2372 = vmatpush1.msra.mxu0 0.0
        %2373 = vmatprep.subr.mxu0 0.0
        %2374 = vmatpush1.msra.mxu0 0.0
        %2375 = vmatprep.subr.mxu0 0.0
        %2376 = vmatpush1.msra.mxu0 0.0
        %2377 = vmatprep.subr.mxu0 0.0
        %2378 = vmatpush1.msra.mxu0 0.0
        %2379 = vmatprep.subr.mxu0 0.0
        %2380 = vmatpush1.msra.mxu0 0.0
        %2381 = vmatprep.subr.mxu0 0.0
        %2382 = vmatpush1.msra.mxu0 0.0
        %2383 = vmatprep.subr.mxu0 0.0
        %2384 = vmatpush1.msra.mxu0 0.0
        %2385 = vmatprep.subr.mxu0 0.0
        %2386 = vmatpush1.msra.mxu0 0.0
        %2387 = vmatprep.subr.mxu0 0.0
        %2388 = vmatpush1.msra.mxu0 0.0
        %2389 = vmatprep.subr.mxu0 0.0
        %2390 = vmatpush1.msra.mxu0 0.0
        %2391 = vmatprep.subr.mxu0 0.0
        %2392 = vmatpush1.msra.mxu0 0.0
        %2393 = vmatprep.subr.mxu0 0.0
        %2394 = vmatpush1.msra.mxu0 0.0
        %2395 = vmatprep.subr.mxu0 0.0
        %2396 = vmatpush1.msra.mxu0 0.0
        %2397 = vmatprep.subr.mxu0 0.0
        %2398 = vmatpush1.msra.mxu0 0.0
        %2399 = vmatprep.mubr.f32.mxu0 0.0
        %2400 = vmatmul.mubr.f32.gmra.mrb[0].mxu0 %v734
        %v2401 = vpop.f32.mrb[0].mxu0
        %v2402 = vadd.f32 0.0, %v2401
        %v2403 = vpop.f32.mrb[0].mxu0
        %v2404 = vadd.f32 0.0, %v2403
        %2405 = vmatprep.mubr.f32.mxu0 0.0
        %2406 = vmatmul.mubr.f32.gmra.mrb[0].mxu0 %v737
        %v2407 = vpop.f32.mrb[0].mxu0
        %v2408 = vadd.f32 0.0, %v2407
        %v2409 = vpop.f32.mrb[0].mxu0
        %v2410 = vadd.f32 0.0, %v2409
        %2411 = vdwg.mxu0
        %v2412 = vadd.f32 %v535, %v2402
        %v2413 = vadd.f32 %v537, %v2404
        %v2414 = vadd.f32 %v541, %v2408
        %v2415 = vadd.f32 %v543, %v2410
        %v2416 = vmax.f32 %v2148, %v2246
        %v2417 = vmax.f32 %v2149, %v2247
        %v2418 = vmax.f32 %v2150, %v2248
        %v2419 = vmax.f32 %v2151, %v2249
        %v2420 = vmax.f32 %v2152, %v2331
        %v2421 = vmax.f32 %v2153, %v2332
        %v2422 = vmax.f32 %v2154, %v2333
        %v2423 = vmax.f32 %v2155, %v2334
        %v2424 = vmax.f32 %v2156, %v2412
        %v2425 = vmax.f32 %v2157, %v2413
        %v2426 = vmax.f32 %v2158, %v2414
        %v2427 = vmax.f32 %v2159, %v2415
        %s2428 = scalar_lea.vmem %s201, 112 [#allocation2]
        %v2429 = vld [vmem:[%s2428] sm:$0xff]
        %v2430 = vld [vmem:[%s2428 + $0x8] sm:$0xff]
        %v2431 = vsub.f32 %v2429, %v245
        %v2432 = vsub.f32 %v2430, %v246
        %2433 = vmatprep.subr.mxu0 %v2432
        %2434 = vmatpush1.msra.mxu0 %v2431
        %2435 = vmatprep.subr.mxu0 0.0
        %2436 = vmatpush1.msra.mxu0 0.0
        %2437 = vmatprep.subr.mxu0 0.0
        %2438 = vmatpush1.msra.mxu0 0.0
        %2439 = vmatprep.subr.mxu0 0.0
        %2440 = vmatpush1.msra.mxu0 0.0
        %2441 = vmatprep.subr.mxu0 0.0
        %2442 = vmatpush1.msra.mxu0 0.0
        %2443 = vmatprep.subr.mxu0 0.0
        %2444 = vmatpush1.msra.mxu0 0.0
        %2445 = vmatprep.subr.mxu0 0.0
        %2446 = vmatpush1.msra.mxu0 0.0
        %2447 = vmatprep.subr.mxu0 0.0
        %2448 = vmatpush1.msra.mxu0 0.0
        %2449 = vmatprep.subr.mxu0 0.0
        %2450 = vmatpush1.msra.mxu0 0.0
        %2451 = vmatprep.subr.mxu0 0.0
        %2452 = vmatpush1.msra.mxu0 0.0
        %2453 = vmatprep.subr.mxu0 0.0
        %2454 = vmatpush1.msra.mxu0 0.0
        %2455 = vmatprep.subr.mxu0 0.0
        %2456 = vmatpush1.msra.mxu0 0.0
        %2457 = vmatprep.subr.mxu0 0.0
        %2458 = vmatpush1.msra.mxu0 0.0
        %2459 = vmatprep.subr.mxu0 0.0
        %2460 = vmatpush1.msra.mxu0 0.0
        %2461 = vmatprep.subr.mxu0 0.0
        %2462 = vmatpush1.msra.mxu0 0.0
        %2463 = vmatprep.subr.mxu0 0.0
        %2464 = vmatpush1.msra.mxu0 0.0
        %2465 = vmatprep.subr.mxu0 0.0
        %2466 = vmatpush1.msra.mxu0 0.0
        %2467 = vmatprep.subr.mxu0 0.0
        %2468 = vmatpush1.msra.mxu0 0.0
        %2469 = vmatprep.subr.mxu0 0.0
        %2470 = vmatpush1.msra.mxu0 0.0
        %2471 = vmatprep.subr.mxu0 0.0
        %2472 = vmatpush1.msra.mxu0 0.0
        %2473 = vmatprep.subr.mxu0 0.0
        %2474 = vmatpush1.msra.mxu0 0.0
        %2475 = vmatprep.subr.mxu0 0.0
        %2476 = vmatpush1.msra.mxu0 0.0
        %2477 = vmatprep.subr.mxu0 0.0
        %2478 = vmatpush1.msra.mxu0 0.0
        %2479 = vmatprep.subr.mxu0 0.0
        %2480 = vmatpush1.msra.mxu0 0.0
        %2481 = vmatprep.subr.mxu0 0.0
        %2482 = vmatpush1.msra.mxu0 0.0
        %2483 = vmatprep.subr.mxu0 0.0
        %2484 = vmatpush1.msra.mxu0 0.0
        %2485 = vmatprep.subr.mxu0 0.0
        %2486 = vmatpush1.msra.mxu0 0.0
        %2487 = vmatprep.subr.mxu0 0.0
        %2488 = vmatpush1.msra.mxu0 0.0
        %2489 = vmatprep.subr.mxu0 0.0
        %2490 = vmatpush1.msra.mxu0 0.0
        %2491 = vmatprep.subr.mxu0 0.0
        %2492 = vmatpush1.msra.mxu0 0.0
        %2493 = vmatprep.subr.mxu0 0.0
        %2494 = vmatpush1.msra.mxu0 0.0
        %2495 = vmatprep.subr.mxu0 0.0
        %2496 = vmatpush1.msra.mxu0 0.0
        %2497 = vmatprep.mubr.f32.mxu0 0.0
        %2498 = vmatmul.mubr.f32.gmra.mrb[0].mxu0 %v550
        %v2499 = vpop.f32.mrb[0].mxu0
        %v2500 = vadd.f32 0.0, %v2499
        %v2501 = vpop.f32.mrb[0].mxu0
        %v2502 = vadd.f32 0.0, %v2501
        %2503 = vmatprep.mubr.f32.mxu0 0.0
        %2504 = vmatmul.mubr.f32.gmra.mrb[0].mxu0 %v553
        %v2505 = vpop.f32.mrb[0].mxu0
        %v2506 = vadd.f32 0.0, %v2505
        %v2507 = vpop.f32.mrb[0].mxu0
        %v2508 = vadd.f32 0.0, %v2507
        %2509 = vdwg.mxu0
        %v2510 = vadd.f32 %v349, %v2500
        %v2511 = vadd.f32 %v351, %v2502
        %v2512 = vadd.f32 %v355, %v2506
        %v2513 = vadd.f32 %v357, %v2508
        %v2514 = vmax.f32 %v2510, 0.0
        %v2515 = vmax.f32 %v2511, 0.0
        %v2516 = vmax.f32 %v2512, 0.0
        %v2517 = vmax.f32 %v2513, 0.0
        %2518 = vmatprep.subr.mxu0 %v2515
        %2519 = vmatpush1.msra.mxu0 %v2514
        %2520 = vmatprep.subr.mxu0 %v2517
        %2521 = vmatpush1.msra.mxu0 %v2516
        %2522 = vmatprep.subr.mxu0 0.0
        %2523 = vmatpush1.msra.mxu0 0.0
        %2524 = vmatprep.subr.mxu0 0.0
        %2525 = vmatpush1.msra.mxu0 0.0
        %2526 = vmatprep.subr.mxu0 0.0
        %2527 = vmatpush1.msra.mxu0 0.0
        %2528 = vmatprep.subr.mxu0 0.0
        %2529 = vmatpush1.msra.mxu0 0.0
        %2530 = vmatprep.subr.mxu0 0.0
        %2531 = vmatpush1.msra.mxu0 0.0
        %2532 = vmatprep.subr.mxu0 0.0
        %2533 = vmatpush1.msra.mxu0 0.0
        %2534 = vmatprep.subr.mxu0 0.0
        %2535 = vmatpush1.msra.mxu0 0.0
        %2536 = vmatprep.subr.mxu0 0.0
        %2537 = vmatpush1.msra.mxu0 0.0
        %2538 = vmatprep.subr.mxu0 0.0
        %2539 = vmatpush1.msra.mxu0 0.0
        %2540 = vmatprep.subr.mxu0 0.0
        %2541 = vmatpush1.msra.mxu0 0.0
        %2542 = vmatprep.subr.mxu0 0.0
        %2543 = vmatpush1.msra.mxu0 0.0
        %2544 = vmatprep.subr.mxu0 0.0
        %2545 = vmatpush1.msra.mxu0 0.0
        %2546 = vmatprep.subr.mxu0 0.0
        %2547 = vmatpush1.msra.mxu0 0.0
        %2548 = vmatprep.subr.mxu0 0.0
        %2549 = vmatpush1.msra.mxu0 0.0
        %2550 = vmatprep.subr.mxu0 0.0
        %2551 = vmatpush1.msra.mxu0 0.0
        %2552 = vmatprep.subr.mxu0 0.0
        %2553 = vmatpush1.msra.mxu0 0.0
        %2554 = vmatprep.subr.mxu0 0.0
        %2555 = vmatpush1.msra.mxu0 0.0
        %2556 = vmatprep.subr.mxu0 0.0
        %2557 = vmatpush1.msra.mxu0 0.0
        %2558 = vmatprep.subr.mxu0 0.0
        %2559 = vmatpush1.msra.mxu0 0.0
        %2560 = vmatprep.subr.mxu0 0.0
        %2561 = vmatpush1.msra.mxu0 0.0
        %2562 = vmatprep.subr.mxu0 0.0
        %2563 = vmatpush1.msra.mxu0 0.0
        %2564 = vmatprep.subr.mxu0 0.0
        %2565 = vmatpush1.msra.mxu0 0.0
        %2566 = vmatprep.subr.mxu0 0.0
        %2567 = vmatpush1.msra.mxu0 0.0
        %2568 = vmatprep.subr.mxu0 0.0
        %2569 = vmatpush1.msra.mxu0 0.0
        %2570 = vmatprep.subr.mxu0 0.0
        %2571 = vmatpush1.msra.mxu0 0.0
        %2572 = vmatprep.subr.mxu0 0.0
        %2573 = vmatpush1.msra.mxu0 0.0
        %2574 = vmatprep.subr.mxu0 0.0
        %2575 = vmatpush1.msra.mxu0 0.0
        %2576 = vmatprep.subr.mxu0 0.0
        %2577 = vmatpush1.msra.mxu0 0.0
        %2578 = vmatprep.subr.mxu0 0.0
        %2579 = vmatpush1.msra.mxu0 0.0
        %2580 = vmatprep.subr.mxu0 0.0
        %2581 = vmatpush1.msra.mxu0 0.0
        %2582 = vmatprep.mubr.f32.mxu0 0.0
        %2583 = vmatmul.mubr.f32.gmra.mrb[0].mxu0 %v642
        %v2584 = vpop.f32.mrb[0].mxu0
        %v2585 = vadd.f32 0.0, %v2584
        %v2586 = vpop.f32.mrb[0].mxu0
        %v2587 = vadd.f32 0.0, %v2586
        %2588 = vmatprep.mubr.f32.mxu0 0.0
        %2589 = vmatmul.mubr.f32.gmra.mrb[0].mxu0 %v645
        %v2590 = vpop.f32.mrb[0].mxu0
        %v2591 = vadd.f32 0.0, %v2590
        %v2592 = vpop.f32.mrb[0].mxu0
        %v2593 = vadd.f32 0.0, %v2592
        %2594 = vdwg.mxu0
        %v2595 = vadd.f32 %v442, %v2585
        %v2596 = vadd.f32 %v444, %v2587
        %v2597 = vadd.f32 %v448, %v2591
        %v2598 = vadd.f32 %v450, %v2593
        %v2599 = vmax.f32 %v2595, 0.0
        %v2600 = vmax.f32 %v2596, 0.0
        %v2601 = vmax.f32 %v2597, 0.0
        %v2602 = vmax.f32 %v2598, 0.0
        %2603 = vmatprep.subr.mxu0 %v2600
        %2604 = vmatpush1.msra.mxu0 %v2599
        %2605 = vmatprep.subr.mxu0 %v2602
        %2606 = vmatpush1.msra.mxu0 %v2601
        %2607 = vmatprep.subr.mxu0 %v2515
        %2608 = vmatpush1.msra.mxu0 %v2514
        %2609 = vmatprep.subr.mxu0 %v2517
        %2610 = vmatpush1.msra.mxu0 %v2516
        %2611 = vmatprep.subr.mxu0 0.0
        %2612 = vmatpush1.msra.mxu0 0.0
        %2613 = vmatprep.subr.mxu0 0.0
        %2614 = vmatpush1.msra.mxu0 0.0
        %2615 = vmatprep.subr.mxu0 0.0
        %2616 = vmatpush1.msra.mxu0 0.0
        %2617 = vmatprep.subr.mxu0 0.0
        %2618 = vmatpush1.msra.mxu0 0.0
        %2619 = vmatprep.subr.mxu0 0.0
        %2620 = vmatpush1.msra.mxu0 0.0
        %2621 = vmatprep.subr.mxu0 0.0
        %2622 = vmatpush1.msra.mxu0 0.0
        %2623 = vmatprep.subr.mxu0 0.0
        %2624 = vmatpush1.msra.mxu0 0.0
        %2625 = vmatprep.subr.mxu0 0.0
        %2626 = vmatpush1.msra.mxu0 0.0
        %2627 = vmatprep.subr.mxu0 0.0
        %2628 = vmatpush1.msra.mxu0 0.0
        %2629 = vmatprep.subr.mxu0 0.0
        %2630 = vmatpush1.msra.mxu0 0.0
        %2631 = vmatprep.subr.mxu0 0.0
        %2632 = vmatpush1.msra.mxu0 0.0
        %2633 = vmatprep.subr.mxu0 0.0
        %2634 = vmatpush1.msra.mxu0 0.0
        %2635 = vmatprep.subr.mxu0 0.0
        %2636 = vmatpush1.msra.mxu0 0.0
        %2637 = vmatprep.subr.mxu0 0.0
        %2638 = vmatpush1.msra.mxu0 0.0
        %2639 = vmatprep.subr.mxu0 0.0
        %2640 = vmatpush1.msra.mxu0 0.0
        %2641 = vmatprep.subr.mxu0 0.0
        %2642 = vmatpush1.msra.mxu0 0.0
        %2643 = vmatprep.subr.mxu0 0.0
        %2644 = vmatpush1.msra.mxu0 0.0
        %2645 = vmatprep.subr.mxu0 0.0
        %2646 = vmatpush1.msra.mxu0 0.0
        %2647 = vmatprep.subr.mxu0 0.0
        %2648 = vmatpush1.msra.mxu0 0.0
        %2649 = vmatprep.subr.mxu0 0.0
        %2650 = vmatpush1.msra.mxu0 0.0
        %2651 = vmatprep.subr.mxu0 0.0
        %2652 = vmatpush1.msra.mxu0 0.0
        %2653 = vmatprep.subr.mxu0 0.0
        %2654 = vmatpush1.msra.mxu0 0.0
        %2655 = vmatprep.subr.mxu0 0.0
        %2656 = vmatpush1.msra.mxu0 0.0
        %2657 = vmatprep.subr.mxu0 0.0
        %2658 = vmatpush1.msra.mxu0 0.0
        %2659 = vmatprep.subr.mxu0 0.0
        %2660 = vmatpush1.msra.mxu0 0.0
        %2661 = vmatprep.subr.mxu0 0.0
        %2662 = vmatpush1.msra.mxu0 0.0
        %2663 = vmatprep.subr.mxu0 0.0
        %2664 = vmatpush1.msra.mxu0 0.0
        %2665 = vmatprep.subr.mxu0 0.0
        %2666 = vmatpush1.msra.mxu0 0.0
        %2667 = vmatprep.mubr.f32.mxu0 0.0
        %2668 = vmatmul.mubr.f32.gmra.mrb[0].mxu0 %v734
        %v2669 = vpop.f32.mrb[0].mxu0
        %v2670 = vadd.f32 0.0, %v2669
        %v2671 = vpop.f32.mrb[0].mxu0
        %v2672 = vadd.f32 0.0, %v2671
        %2673 = vmatprep.mubr.f32.mxu0 0.0
        %2674 = vmatmul.mubr.f32.gmra.mrb[0].mxu0 %v737
        %v2675 = vpop.f32.mrb[0].mxu0
        %v2676 = vadd.f32 0.0, %v2675
        %v2677 = vpop.f32.mrb[0].mxu0
        %v2678 = vadd.f32 0.0, %v2677
        %2679 = vdwg.mxu0
        %v2680 = vadd.f32 %v535, %v2670
        %v2681 = vadd.f32 %v537, %v2672
        %v2682 = vadd.f32 %v541, %v2676
        %v2683 = vadd.f32 %v543, %v2678
        %v2684 = vmax.f32 %v2416, %v2514
        %v2685 = vmax.f32 %v2417, %v2515
        %v2686 = vmax.f32 %v2418, %v2516
        %v2687 = vmax.f32 %v2419, %v2517
        %v2688 = vmax.f32 %v2420, %v2599
        %v2689 = vmax.f32 %v2421, %v2600
        %v2690 = vmax.f32 %v2422, %v2601
        %v2691 = vmax.f32 %v2423, %v2602
        %v2692 = vmax.f32 %v2424, %v2680
        %v2693 = vmax.f32 %v2425, %v2681
        %v2694 = vmax.f32 %v2426, %v2682
        %v2695 = vmax.f32 %v2427, %v2683
        %2696 = vst [vmem:[%s232 + $0x40] sm:$0xff] %v2684
        %2697 = vst [vmem:[%s232 + $0x48] sm:$0xff] %v2685
        %2698 = vst [vmem:[%s232 + $0x50] sm:$0xff] %v2686
        %2699 = vst [vmem:[%s232 + $0x58] sm:$0xff] %v2687
        %2700 = vst [vmem:[%s232 + $0x20] sm:$0xff] %v2688
        %2701 = vst [vmem:[%s232 + $0x28] sm:$0xff] %v2689
        %2702 = vst [vmem:[%s232 + $0x30] sm:$0xff] %v2690
        %2703 = vst [vmem:[%s232 + $0x38] sm:$0xff] %v2691
        %2704 = vst [vmem:[%s232] sm:$0xff] %v2692
        %2705 = vst [vmem:[%s232 + $0x8] sm:$0xff] %v2693
        %2706 = vst [vmem:[%s232 + $0x10] sm:$0xff] %v2694
        %2707 = vst [vmem:[%s232 + $0x18] sm:$0xff] %v2695
        %2708 = vst [vmem:[%s232 + $0x60] sm:$0xff] %v245
        %2709 = vst [vmem:[%s232 + $0x68] sm:$0xff] %v246
        %s2710 = sand.u32 %s119, 1
        %s2711 = scalar_lea.sflag [#allocation4], %s2710
        %s2712 = sand.u32 %s119, 1
        %s2713 = smul.addr %s2712, 112
        %s2714 = scalar_lea.vmem [#allocation5], %s2713
        // Predicated region
        $region37: #{tpu_custom_call.1} parent=31 // pred_check
          %p2715 = pneg %p129
        $region38: #{tpu_custom_call.1} parent=31 // pred_check_branch
          %2717 = sbr.rel (%p2715) target = $region40
        $region39: #{tpu_custom_call.1} parent=31 // pred_region
          %s2718 = smul.u32 2, %s25
          %s2720 = ssub.s32 1792, 1792
          %2721 = vsyncadd %s2711, %s2720
          %s2722 = smul.addr %s24, 14
          %s2723 = sadd.s32 %s2718, %s2722
          %s2724 = smul.addr %s2723, 128
          %s2725 = scalar_lea.hbm %s3, %s2724
          %s2726 = sshll.u32 %s2714, 4
          %s2727 = int_to_ptr.vmem [resolvable:$true] %s2726
          %2732 = dma.vmem_to_hbm [thread:$0]  %s2727, 1792, %s2725, %s2711, 256, 256, 16
        $region40: #{tpu_custom_call.1} parent=31 // pred_fallthru
          _
      $region32: #{tpu_custom_call.1} parent=5 // pred_fallthru
        _
      %p2733 = scmp.le.s32.totalorder 2, %s15
      // Predicated region
      $region41: #{tpu_custom_call.1} parent=5 // pred_check
        %p2734 = pneg %p2733
      $region42: #{tpu_custom_call.1} parent=5 // pred_check_branch
        %2736 = sbr.rel (%p2734) target = $region44
      $region43: #{tpu_custom_call.1} parent=5 // pred_region
        %s2737 = ssub.s32 %s15, 2
        // Predicated region
        $region45: #{tpu_custom_call.1} parent=43 // pred_check
          %p2738 = pneg %p135
        $region46: #{tpu_custom_call.1} parent=43 // pred_check_branch
          %2740 = sbr.rel (%p2738) target = $region48
        $region47: #{tpu_custom_call.1} parent=43 // pred_region
          %s2741 = sand.u32 %s120, 1
          %s2742 = scalar_lea.sflag [#allocation4], %s2741
          %s2743 = sand.u32 %s120, 1
          %s2744 = smul.addr %s2743, 112
          %s2745 = scalar_lea.vmem [#allocation5], %s2744
          %2746 = dma.done %s2742, 1792
        $region48: #{tpu_custom_call.1} parent=43 // pred_fallthru
          _
      $region44: #{tpu_custom_call.1} parent=5 // pred_fallthru
        _
    $region6: #{tpu_custom_call.1} parent=1 // loop_footer
      %s19 = sadd.s32 1, %s15
    $region7: #{tpu_custom_call.1} parent=1 // loop_footer_branch
      %14 = sbr.rel target = $region3
    $region8: #{tpu_custom_call.1} parent=1 // loop_exit
      _
    %2747 = vsyncpa [#allocation3], 1
    %s2748 = scalar_lea.sflag [#allocation3], 1
    %2749 = vsyncpa %s2748, 1
    %2750 = vsyncpa [#allocation4], 1
    %s2751 = scalar_lea.sflag [#allocation4], 1
    %2752 = vsyncpa %s2751, 1

</llo_original>
